<compile_context>
chip_gen: v5e
topology: v5e:2x2
jax: 0.10.0
libtpu: 0.0.40
codegen_flags: <defaults>
</compile_context>

<pallas_src>
import functools

import jax
import jax.numpy as jnp
from jax.experimental import pallas as pl
from jax.experimental.pallas import tpu as pltpu


def _round_up(v, m):
    return ((v + m - 1) // m) * m


# -----------------------------------------------------------------------------
# Fused whole-model kernel: PG stack + all refinement stacks in one body.
# -----------------------------------------------------------------------------
def _fused_tcn_kernel(*refs, stage_dilations, C, TILE, emit_features):
    """Refs layout (positional):
         x_ref                                   (1, Cin0, TILE)
         per stage: w_in (C,Cin), b_in (C,1), wd (L,C,3C), bd (L,C,1),
                    w1 (L,C,C),  b1 (L,C,1),  w_out (O,C), b_out (O,1)
         outputs:   o_s (1, O, TILE) per stage [+ f_s (1, C, TILE) per stage]
         scratch:   x3_ref (3C, TILE)            tap matrix [t-2d | t-d | t]
                    halo_ref (n_layers, C, TILE) carried previous-tile act
       wd is packed along K as [W(t-2d) | W(t-d) | W(t)]  (PyTorch Conv1d
       weights (Cout,Cin,3) must be permuted into this layout when imported).
    """
    n_stages = len(stage_dilations)
    NW = 8
    x_ref = refs[0]
    w_refs = refs[1:1 + NW * n_stages]
    pos = 1 + NW * n_stages
    o_refs = refs[pos:pos + n_stages]
    pos += n_stages
    f_refs = refs[pos:pos + n_stages] if emit_features else None
    pos += n_stages if emit_features else 0
    x3_ref, halo_ref = refs[pos], refs[pos + 1]

    tt = pl.program_id(1)

    # Start of a batch element's T sweep: clear every carried halo.
    @pl.when(tt == 0)
    def _():
        halo_ref[...] = jnp.zeros_like(halo_ref)

    col = jax.lax.broadcasted_iota(jnp.int32, (C, TILE), 1)   # hoisted out of loops

    def shifted_tap(cur, prev, s):
        # lane t of the result = activation at global position (tile*TILE + t - s):
        # lanes t >= s come from this tile, lanes t < s from the previous tile's
        # tail (zeros at tile 0).  pltpu.roll == jnp.roll semantics (XLU rotate).
        return jnp.where(col >= s, pltpu.roll(cur, s, 1), pltpu.roll(prev, s, 1))

    inp = x_ref[0]           # (Cin, TILE) current stage input, stays in vregs
    li = 0                   # running dilated-layer index into halo_ref
    for s in range(n_stages):
        w_in, b_in, wd, bd, w1, b1, w_out, b_out = w_refs[NW * s:NW * (s + 1)]
        # stage conv_1x1 on the MXU: (C, Cin) @ (Cin, TILE)
        act = jnp.dot(w_in[...], inp, preferred_element_type=jnp.float32) + b_in[...]
        for i, d in enumerate(stage_dilations[s]):
            prev = halo_ref[li]                        # previous tile's layer input
            # taps [t-2d | t-d | t] written straight into the persistent scratch
            x3_ref[0:C, :] = shifted_tap(act, prev, 2 * d)
            x3_ref[C:2 * C, :] = shifted_tap(act, prev, d)
            x3_ref[2 * C:3 * C, :] = act
            halo_ref[li] = act                         # halo for the next T tile
            li += 1
            h = jnp.dot(wd[i], x3_ref[...], preferred_element_type=jnp.float32) + bd[i]
            h = jnp.maximum(h, 0.0)                    # ReLU; dropout = identity
            act = act + jnp.dot(w1[i], h, preferred_element_type=jnp.float32) + b1[i]
        out = jnp.dot(w_out[...], act, preferred_element_type=jnp.float32) + b_out[...]
        o_refs[s][0] = out
        if emit_features:
            f_refs[s][0] = act
        inp = out            # next stage consumes the logits (args.output=True)


# -----------------------------------------------------------------------------
# Tile-width selection: biggest lane-dense tile that fits a v7x-safe VMEM budget
# -----------------------------------------------------------------------------
def _choose_tile_t(T, stage_params, emit_features, max_tile_t, vmem_budget_bytes):
    C = stage_params[0]["w_in"].shape[0]
    O = stage_params[0]["w_out"].shape[0]
    S = len(stage_params)
    cin0 = stage_params[0]["w_in"].shape[1]
    n_layers = sum(int(p["wd"].shape[0]) for p in stage_params)
    max_d = max(2 ** (int(p["wd"].shape[0]) - 1) for p in stage_params)
    # f32 bytes of VMEM that scale with the tile width: double-buffered input /
    # output blocks + the two persistent scratch buffers.
    per_col = 4 * (2 * cin0 + 2 * S * O
                   + (2 * S * C if emit_features else 0)
                   + 3 * C + n_layers * C)
    cap = max(128, (vmem_budget_bytes // per_col) // 128 * 128)
    tile = min(cap, _round_up(max_tile_t, 128), _round_up(T, 128))
    tile = max(tile, _round_up(2 * max_d, 128))   # halo must fit in ONE previous tile
    return tile


# -----------------------------------------------------------------------------
# Model glue (mirrors the PyTorch module forward for the configured args)
# -----------------------------------------------------------------------------
def hierarch_causal_tcn(params, x_ntc, *, emit_features=True,
                        max_tile_t=512, vmem_budget_bytes=40 * 1024 * 1024):
    """x_ntc: (N, T, dim) — the PyTorch input before x.permute(0, 2, 1)."""
    stage_params = [params["pg"]] + list(params["rs"])
    S = len(stage_params)
    N, T, dim = x_ntc.shape
    C = stage_params[0]["w_in"].shape[0]
    O = stage_params[0]["w_out"].shape[0]
    stage_dilations = tuple(tuple(2 ** i for i in range(int(p["wd"].shape[0])))
                            for p in stage_params)
    n_layers_total = sum(len(ds) for ds in stage_dilations)

    TILE = _choose_tile_t(T, stage_params, emit_features, max_tile_t,
                          vmem_budget_bytes)
    Tp = _round_up(T, TILE)
    nT = Tp // TILE

    x = jnp.transpose(x_ntc, (0, 2, 1))                 # (N, dim, T) channel-first
    x = jnp.pad(x, ((0, 0), (0, 0), (0, Tp - T)))       # lane-dense T (causal => safe)

    # ---------------- specs -------------------------------------------------
    def const_spec(arr):
        r = arr.ndim
        return pl.BlockSpec(arr.shape, lambda n, tt, _r=r: (0,) * _r)

    in_specs = [pl.BlockSpec((1, dim, TILE), lambda n, tt: (n, 0, tt))]
    flat_w = []
    for p in stage_params:
        for name in ("w_in", "b_in", "wd", "bd", "w1", "b1", "w_out", "b_out"):
            arr = p[name]
            in_specs.append(const_spec(arr))            # fetched once, VMEM-resident
            flat_w.append(arr)

    out_shape = [jax.ShapeDtypeStruct((N, O, Tp), jnp.float32) for _ in range(S)]
    out_specs = [pl.BlockSpec((1, O, TILE), lambda n, tt: (n, 0, tt))
                 for _ in range(S)]
    if emit_features:
        out_shape += [jax.ShapeDtypeStruct((N, C, Tp), jnp.float32)
                      for _ in range(S)]
        out_specs += [pl.BlockSpec((1, C, TILE), lambda n, tt: (n, 0, tt))
                      for _ in range(S)]

    kern = functools.partial(_fused_tcn_kernel, stage_dilations=stage_dilations,
                             C=C, TILE=TILE, emit_features=emit_features)

    outs = pl.pallas_call(
        kern,
        out_shape=tuple(out_shape),
        grid=(N, nT),
        in_specs=in_specs,
        out_specs=tuple(out_specs),
        scratch_shapes=[
            pltpu.VMEM((3 * C, TILE), jnp.float32),               # tap matrix
            pltpu.VMEM((n_layers_total, C, TILE), jnp.float32),   # carried halos
        ],
        compiler_params=pltpu.CompilerParams(
            # batch axis parallel (>=2 blocks keeps both v7x TensorCores busy),
            # T axis sequential: the carried-halo scratch needs in-order tiles.
            dimension_semantics=("parallel", "arbitrary"),
            # sized against v7x's 64 MiB physical VMEM (v5e/v6e have 128 MiB)
            vmem_limit_bytes=48 * 1024 * 1024,
        ),
    )(x, *flat_w)

    o_list = [o[:, :, :T] for o in outs[:S]]
    f_list = [f[:, :, :T] for f in outs[S:]] if emit_features else []

    # Module glue: args.fpn=False, output=True, feature=False, trans=False
    out_list = [o_list[0]]
    for s in range(1, S):
        out_list.append(o_list[s])      # `if use_output`
        out_list.append(o_list[s])      # `if not use_fpn` (PyTorch appends twice)
    return out_list, f_list, params["prototype"]
    # TODO(synk): FPN / transformer-decoder / prototype-refine branches are disabled
    # by the chosen args (fpn=trans=feature=False, hier=False) and not implemented.


# -----------------------------------------------------------------------------
# Deterministic parameter init (channel-first, packed dilated-weight layout)
# -----------------------------------------------------------------------------
def init_params(key, num_layers_PG, num_layers_R, num_R, num_f_maps, dim, num_classes):
    keys = iter(jax.random.split(key, 1024))

    def conv_p(cout, cin):
        w = jax.random.normal(next(keys), (cout, cin), jnp.float32) * 0.1
        b = jax.random.normal(next(keys), (cout, 1), jnp.float32) * 0.1
        return w, b

    def stack(n_layers, cin, c, cout):
        w_in, b_in = conv_p(c, cin)
        wd = jax.random.normal(next(keys), (n_layers, c, 3 * c), jnp.float32) * 0.1
        bd = jax.random.normal(next(keys), (n_layers, c, 1), jnp.float32) * 0.1
        w1 = jax.random.normal(next(keys), (n_layers, c, c), jnp.float32) * 0.1
        b1 = jax.random.normal(next(keys), (n_layers, c, 1), jnp.float32) * 0.1
        w_out, b_out = conv_p(cout, c)
        return {"w_in": w_in, "b_in": b_in, "wd": wd, "bd": bd,
                "w1": w1, "b1": b1, "w_out": w_out, "b_out": b_out}

    return {
        "pg": stack(num_layers_PG, dim, num_f_maps, num_classes),
        "rs": [stack(num_layers_R, num_classes, num_f_maps, num_classes)
               for _ in range(num_R)],
        "prototype": jnp.zeros((1, 64, num_classes), jnp.float32),  # nn.Parameter zeros
    }


# -----------------------------------------------------------------------------
# Pure-JAX reference (same math, no Pallas) for the correctness check
# -----------------------------------------------------------------------------
def _ref_conv(x, w, b):                         # x (N,C,T), w (O,C), b (O,1)
    return jnp.einsum("oc,nct->not", w, x) + b[None]


def _ref_dilres(x, wd3, bd, w1, b1, d):
    N, C, T = x.shape
    xp = jnp.pad(x, ((0, 0), (0, 0), (2 * d, 0)))
    x3 = jnp.concatenate([xp[:, :, 0:T], xp[:, :, d:d + T], xp[:, :, 2 * d:2 * d + T]],
                         axis=1)
    h = jnp.maximum(jnp.einsum("oc,nct->not", wd3, x3) + bd[None], 0.0)
    return x + _ref_conv(h, w1, b1)


def _ref_stack(x, p):
    out = _ref_conv(x, p["w_in"], p["b_in"])
    for i in range(p["wd"].shape[0]):
        out = _ref_dilres(out, p["wd"][i], p["bd"][i], p["w1"][i], p["b1"][i], 2 ** i)
    return out, _ref_conv(out, p["w_out"], p["b_out"])


def ref_forward(params, x_ntc):
    x = jnp.transpose(x_ntc, (0, 2, 1))
    f, out1 = _ref_stack(x, params["pg"])
    f_list, out_list = [f], [out1]
    for rp in params["rs"]:
        f, out1 = _ref_stack(out1, rp)
        out_list.append(out1)
        f_list.append(f)
        out_list.append(out1)
    return out_list, f_list


# -----------------------------------------------------------------------------
if __name__ == "__main__":
    num_layers_PG, num_layers_R, num_R = 3, 2, 2
    num_f_maps, dim, num_classes = 16, 12, 8
    N, T = 2, 160            # T > 128 so the carried-halo T tiling is exercised

    key = jax.random.PRNGKey(0)
    kp, kx = jax.random.split(key)
    params = init_params(kp, num_layers_PG, num_layers_R, num_R,
                         num_f_maps, dim, num_classes)
    x = jax.random.normal(kx, (N, T, dim), jnp.float32)  # torch-style pre-permute input

    # max_tile_t=128 forces 2 T tiles at this small T (exercises the halo carry).
    out_list, f_list, proto = hierarch_causal_tcn(params, x, max_tile_t=128)
    for o in out_list + f_list:
        jax.block_until_ready(o)
    jax.block_until_ready(proto)

    # Correctness check against the pure-JAX reference (logits and features)
    ref_out, ref_f = ref_forward(params, x)
    for got, want in zip(out_list, ref_out):
        assert got.shape == want.shape
        assert bool(jnp.allclose(got, want, atol=1e-4, rtol=1e-4)), "out_list mismatch"
    for got, want in zip(f_list, ref_f):
        assert got.shape == want.shape
        assert bool(jnp.allclose(got, want, atol=1e-4, rtol=1e-4)), "f_list mismatch"

    print("KERNEL_OK")
</pallas_src>

<mosaic_0001>
module attributes {stable_mosaic.version = 11 : i64} {
  func.func @_fused_tcn_kernel(%arg0: i32, %arg1: i32, %arg2: memref<1x12x128xf32, #tpu.memory_space<vmem>>, %arg3: memref<16x12xf32, #tpu.memory_space<vmem>>, %arg4: memref<16x1xf32, #tpu.memory_space<vmem>>, %arg5: memref<3x16x48xf32, #tpu.memory_space<vmem>>, %arg6: memref<3x16x1xf32, #tpu.memory_space<vmem>>, %arg7: memref<3x16x16xf32, #tpu.memory_space<vmem>>, %arg8: memref<3x16x1xf32, #tpu.memory_space<vmem>>, %arg9: memref<8x16xf32, #tpu.memory_space<vmem>>, %arg10: memref<8x1xf32, #tpu.memory_space<vmem>>, %arg11: memref<16x8xf32, #tpu.memory_space<vmem>>, %arg12: memref<16x1xf32, #tpu.memory_space<vmem>>, %arg13: memref<2x16x48xf32, #tpu.memory_space<vmem>>, %arg14: memref<2x16x1xf32, #tpu.memory_space<vmem>>, %arg15: memref<2x16x16xf32, #tpu.memory_space<vmem>>, %arg16: memref<2x16x1xf32, #tpu.memory_space<vmem>>, %arg17: memref<8x16xf32, #tpu.memory_space<vmem>>, %arg18: memref<8x1xf32, #tpu.memory_space<vmem>>, %arg19: memref<16x8xf32, #tpu.memory_space<vmem>>, %arg20: memref<16x1xf32, #tpu.memory_space<vmem>>, %arg21: memref<2x16x48xf32, #tpu.memory_space<vmem>>, %arg22: memref<2x16x1xf32, #tpu.memory_space<vmem>>, %arg23: memref<2x16x16xf32, #tpu.memory_space<vmem>>, %arg24: memref<2x16x1xf32, #tpu.memory_space<vmem>>, %arg25: memref<8x16xf32, #tpu.memory_space<vmem>>, %arg26: memref<8x1xf32, #tpu.memory_space<vmem>>, %arg27: memref<1x8x128xf32, #tpu.memory_space<vmem>>, %arg28: memref<1x8x128xf32, #tpu.memory_space<vmem>>, %arg29: memref<1x8x128xf32, #tpu.memory_space<vmem>>, %arg30: memref<1x16x128xf32, #tpu.memory_space<vmem>>, %arg31: memref<1x16x128xf32, #tpu.memory_space<vmem>>, %arg32: memref<1x16x128xf32, #tpu.memory_space<vmem>>, %arg33: memref<48x128xf32, #tpu.memory_space<vmem>>, %arg34: memref<7x16x128xf32, #tpu.memory_space<vmem>>) attributes {dimension_semantics = [#tpu.dimension_semantics<parallel>, #tpu.dimension_semantics<arbitrary>], iteration_bounds = array<i64: 2, 2>, scalar_prefetch = 0 : i64, scratch_operands = 2 : i64, tpu.core_type = #tpu.core_type<tc>, window_params = [{transform_indices = @transform_0, window_bounds = array<i64: 1, 12, 128>}, {pipeline_mode = #tpu.pipeline_mode<synchronous>, transform_indices = @transform_1, window_bounds = array<i64: 16, 12>}, {pipeline_mode = #tpu.pipeline_mode<synchronous>, transform_indices = @transform_2, window_bounds = array<i64: 16, 1>}, {pipeline_mode = #tpu.pipeline_mode<synchronous>, transform_indices = @transform_3, window_bounds = array<i64: 3, 16, 48>}, {pipeline_mode = #tpu.pipeline_mode<synchronous>, transform_indices = @transform_4, window_bounds = array<i64: 3, 16, 1>}, {pipeline_mode = #tpu.pipeline_mode<synchronous>, transform_indices = @transform_5, window_bounds = array<i64: 3, 16, 16>}, {pipeline_mode = #tpu.pipeline_mode<synchronous>, transform_indices = @transform_6, window_bounds = array<i64: 3, 16, 1>}, {pipeline_mode = #tpu.pipeline_mode<synchronous>, transform_indices = @transform_7, window_bounds = array<i64: 8, 16>}, {pipeline_mode = #tpu.pipeline_mode<synchronous>, transform_indices = @transform_8, window_bounds = array<i64: 8, 1>}, {pipeline_mode = #tpu.pipeline_mode<synchronous>, transform_indices = @transform_9, window_bounds = array<i64: 16, 8>}, {pipeline_mode = #tpu.pipeline_mode<synchronous>, transform_indices = @transform_10, window_bounds = array<i64: 16, 1>}, {pipeline_mode = #tpu.pipeline_mode<synchronous>, transform_indices = @transform_11, window_bounds = array<i64: 2, 16, 48>}, {pipeline_mode = #tpu.pipeline_mode<synchronous>, transform_indices = @transform_12, window_bounds = array<i64: 2, 16, 1>}, {pipeline_mode = #tpu.pipeline_mode<synchronous>, transform_indices = @transform_13, window_bounds = array<i64: 2, 16, 16>}, {pipeline_mode = #tpu.pipeline_mode<synchronous>, transform_indices = @transform_14, window_bounds = array<i64: 2, 16, 1>}, {pipeline_mode = #tpu.pipeline_mode<synchronous>, transform_indices = @transform_15, window_bounds = array<i64: 8, 16>}, {pipeline_mode = #tpu.pipeline_mode<synchronous>, transform_indices = @transform_16, window_bounds = array<i64: 8, 1>}, {pipeline_mode = #tpu.pipeline_mode<synchronous>, transform_indices = @transform_17, window_bounds = array<i64: 16, 8>}, {pipeline_mode = #tpu.pipeline_mode<synchronous>, transform_indices = @transform_18, window_bounds = array<i64: 16, 1>}, {pipeline_mode = #tpu.pipeline_mode<synchronous>, transform_indices = @transform_19, window_bounds = array<i64: 2, 16, 48>}, {pipeline_mode = #tpu.pipeline_mode<synchronous>, transform_indices = @transform_20, window_bounds = array<i64: 2, 16, 1>}, {pipeline_mode = #tpu.pipeline_mode<synchronous>, transform_indices = @transform_21, window_bounds = array<i64: 2, 16, 16>}, {pipeline_mode = #tpu.pipeline_mode<synchronous>, transform_indices = @transform_22, window_bounds = array<i64: 2, 16, 1>}, {pipeline_mode = #tpu.pipeline_mode<synchronous>, transform_indices = @transform_23, window_bounds = array<i64: 8, 16>}, {pipeline_mode = #tpu.pipeline_mode<synchronous>, transform_indices = @transform_24, window_bounds = array<i64: 8, 1>}, {transform_indices = @transform_25, window_bounds = array<i64: 1, 8, 128>}, {transform_indices = @transform_26, window_bounds = array<i64: 1, 8, 128>}, {transform_indices = @transform_27, window_bounds = array<i64: 1, 8, 128>}, {transform_indices = @transform_28, window_bounds = array<i64: 1, 16, 128>}, {transform_indices = @transform_29, window_bounds = array<i64: 1, 16, 128>}, {transform_indices = @transform_30, window_bounds = array<i64: 1, 16, 128>}]} {
    %c0_i32 = arith.constant 0 : i32
    %0 = arith.cmpi eq, %arg1, %c0_i32 : i32
    %1 = arith.extui %0 : i1 to i32
    %c0_i32_0 = arith.constant 0 : i32
    %2 = arith.cmpi ne, %1, %c0_i32_0 : i32
    scf.if %2 {
      %cst_283 = arith.constant 0.000000e+00 : f32
      %306 = vector.broadcast %cst_283 : f32 to vector<7x16x128xf32>
      %c0_284 = arith.constant 0 : index
      %c0_285 = arith.constant 0 : index
      %c0_286 = arith.constant 0 : index
      %307 = vector.load %arg34[%c0_284, %c0_285, %c0_286] : memref<7x16x128xf32, #tpu.memory_space<vmem>>, vector<7x16x128xf32>
      tpu.vector_store %arg34[%c0_284, %c0_285, %c0_286], %306 {strides = array<i32>} : memref<7x16x128xf32, #tpu.memory_space<vmem>>, vector<7x16x128xf32>,
    } else {
    }
    %3 = tpu.iota {dimensions = array<i32: 1>} : vector<16x128xi32>
    %c0 = arith.constant 0 : index
    %c0_1 = arith.constant 0 : index
    %c0_2 = arith.constant 0 : index
    %4 = vector.load %arg2[%c0, %c0_1, %c0_2] : memref<1x12x128xf32, #tpu.memory_space<vmem>>, vector<1x12x128xf32>
    %5 = vector.shape_cast %4 : vector<1x12x128xf32> to vector<12x128xf32>
    %c0_3 = arith.constant 0 : index
    %c0_4 = arith.constant 0 : index
    %6 = vector.load %arg3[%c0_3, %c0_4] : memref<16x12xf32, #tpu.memory_space<vmem>>, vector<16x12xf32>
    %cst = arith.constant dense<0.000000e+00> : vector<16x128xf32>
    %7 = tpu.matmul %6, %5, %cst {dimension_numbers = #tpu.dot_dimension_numbers<[1], [0], [0], [1], [0, 0, 1, 1], [], []>} : vector<16x12xf32>, vector<12x128xf32>, vector<16x128xf32> -> vector<16x128xf32>
    %c0_5 = arith.constant 0 : index
    %c0_6 = arith.constant 0 : index
    %8 = vector.load %arg4[%c0_5, %c0_6] : memref<16x1xf32, #tpu.memory_space<vmem>>, vector<16x1xf32>
    %9 = vector.broadcast %8 : vector<16x1xf32> to vector<16x128xf32>
    %10 = arith.addf %7, %9 : vector<16x128xf32>
    %c0_7 = arith.constant 0 : index
    %c0_8 = arith.constant 0 : index
    %c0_9 = arith.constant 0 : index
    %11 = vector.load %arg34[%c0_7, %c0_8, %c0_9] : memref<7x16x128xf32, #tpu.memory_space<vmem>>, vector<1x16x128xf32>
    %12 = vector.shape_cast %11 : vector<1x16x128xf32> to vector<16x128xf32>
    %c2_i32 = arith.constant 2 : i32
    %13 = vector.broadcast %c2_i32 : i32 to vector<16x128xi32>
    %14 = arith.cmpi sge, %3, %13 : vector<16x128xi32>
    %c2_i32_10 = arith.constant 2 : i32
    %15 = tpu.dynamic_rotate %10 by %c2_i32_10 dim 1 : vector<16x128xf32>, i32 -> vector<16x128xf32>
    %c2_i32_11 = arith.constant 2 : i32
    %16 = tpu.dynamic_rotate %12 by %c2_i32_11 dim 1 : vector<16x128xf32>, i32 -> vector<16x128xf32>
    %17 = arith.select %14, %15, %16 : vector<16x128xi1>, vector<16x128xf32>
    %c0_12 = arith.constant 0 : index
    %c0_13 = arith.constant 0 : index
    %18 = vector.load %arg33[%c0_12, %c0_13] : memref<48x128xf32, #tpu.memory_space<vmem>>, vector<16x128xf32>
    tpu.vector_store %arg33[%c0_12, %c0_13], %17 {strides = array<i32>} : memref<48x128xf32, #tpu.memory_space<vmem>>, vector<16x128xf32>,
    %c1_i32 = arith.constant 1 : i32
    %19 = vector.broadcast %c1_i32 : i32 to vector<16x128xi32>
    %20 = arith.cmpi sge, %3, %19 : vector<16x128xi32>
    %c1_i32_14 = arith.constant 1 : i32
    %21 = tpu.dynamic_rotate %10 by %c1_i32_14 dim 1 : vector<16x128xf32>, i32 -> vector<16x128xf32>
    %c1_i32_15 = arith.constant 1 : i32
    %22 = tpu.dynamic_rotate %12 by %c1_i32_15 dim 1 : vector<16x128xf32>, i32 -> vector<16x128xf32>
    %23 = arith.select %20, %21, %22 : vector<16x128xi1>, vector<16x128xf32>
    %c16 = arith.constant 16 : index
    %c0_16 = arith.constant 0 : index
    %24 = vector.load %arg33[%c16, %c0_16] : memref<48x128xf32, #tpu.memory_space<vmem>>, vector<16x128xf32>
    tpu.vector_store %arg33[%c16, %c0_16], %23 {strides = array<i32>} : memref<48x128xf32, #tpu.memory_space<vmem>>, vector<16x128xf32>,
    %c32 = arith.constant 32 : index
    %c0_17 = arith.constant 0 : index
    %25 = vector.load %arg33[%c32, %c0_17] : memref<48x128xf32, #tpu.memory_space<vmem>>, vector<16x128xf32>
    tpu.vector_store %arg33[%c32, %c0_17], %10 {strides = array<i32>} : memref<48x128xf32, #tpu.memory_space<vmem>>, vector<16x128xf32>,
    %c0_18 = arith.constant 0 : index
    %c0_19 = arith.constant 0 : index
    %c0_20 = arith.constant 0 : index
    %26 = vector.load %arg34[%c0_18, %c0_19, %c0_20] : memref<7x16x128xf32, #tpu.memory_space<vmem>>, vector<1x16x128xf32>
    %27 = vector.shape_cast %26 : vector<1x16x128xf32> to vector<16x128xf32>
    %28 = vector.shape_cast %10 : vector<16x128xf32> to vector<1x16x128xf32>
    tpu.vector_store %arg34[%c0_18, %c0_19, %c0_20], %28 {strides = array<i32>} : memref<7x16x128xf32, #tpu.memory_space<vmem>>, vector<1x16x128xf32>,
    %c0_21 = arith.constant 0 : index
    %c0_22 = arith.constant 0 : index
    %c0_23 = arith.constant 0 : index
    %29 = vector.load %arg5[%c0_21, %c0_22, %c0_23] : memref<3x16x48xf32, #tpu.memory_space<vmem>>, vector<1x16x48xf32>
    %30 = vector.shape_cast %29 : vector<1x16x48xf32> to vector<16x48xf32>
    %c0_24 = arith.constant 0 : index
    %c0_25 = arith.constant 0 : index
    %31 = vector.load %arg33[%c0_24, %c0_25] : memref<48x128xf32, #tpu.memory_space<vmem>>, vector<48x128xf32>
    %cst_26 = arith.constant dense<0.000000e+00> : vector<16x128xf32>
    %32 = tpu.matmul %30, %31, %cst_26 {dimension_numbers = #tpu.dot_dimension_numbers<[1], [0], [0], [1], [0, 0, 1, 1], [], []>} : vector<16x48xf32>, vector<48x128xf32>, vector<16x128xf32> -> vector<16x128xf32>
    %c0_27 = arith.constant 0 : index
    %c0_28 = arith.constant 0 : index
    %c0_29 = arith.constant 0 : index
    %33 = vector.load %arg6[%c0_27, %c0_28, %c0_29] : memref<3x16x1xf32, #tpu.memory_space<vmem>>, vector<1x16x1xf32>
    %34 = vector.shape_cast %33 : vector<1x16x1xf32> to vector<16x1xf32>
    %35 = vector.broadcast %34 : vector<16x1xf32> to vector<16x128xf32>
    %36 = arith.addf %32, %35 : vector<16x128xf32>
    %cst_30 = arith.constant 0.000000e+00 : f32
    %37 = vector.broadcast %cst_30 : f32 to vector<16x128xf32>
    %38 = arith.maximumf %36, %37 : vector<16x128xf32>
    %c0_31 = arith.constant 0 : index
    %c0_32 = arith.constant 0 : index
    %c0_33 = arith.constant 0 : index
    %39 = vector.load %arg7[%c0_31, %c0_32, %c0_33] : memref<3x16x16xf32, #tpu.memory_space<vmem>>, vector<1x16x16xf32>
    %40 = vector.shape_cast %39 : vector<1x16x16xf32> to vector<16x16xf32>
    %cst_34 = arith.constant dense<0.000000e+00> : vector<16x128xf32>
    %41 = tpu.matmul %40, %38, %cst_34 {dimension_numbers = #tpu.dot_dimension_numbers<[1], [0], [0], [1], [0, 0, 1, 1], [], []>} : vector<16x16xf32>, vector<16x128xf32>, vector<16x128xf32> -> vector<16x128xf32>
    %42 = arith.addf %10, %41 : vector<16x128xf32>
    %c0_35 = arith.constant 0 : index
    %c0_36 = arith.constant 0 : index
    %c0_37 = arith.constant 0 : index
    %43 = vector.load %arg8[%c0_35, %c0_36, %c0_37] : memref<3x16x1xf32, #tpu.memory_space<vmem>>, vector<1x16x1xf32>
    %44 = vector.shape_cast %43 : vector<1x16x1xf32> to vector<16x1xf32>
    %45 = vector.broadcast %44 : vector<16x1xf32> to vector<16x128xf32>
    %46 = arith.addf %42, %45 : vector<16x128xf32>
    %c1 = arith.constant 1 : index
    %c0_38 = arith.constant 0 : index
    %c0_39 = arith.constant 0 : index
    %47 = vector.load %arg34[%c1, %c0_38, %c0_39] : memref<7x16x128xf32, #tpu.memory_space<vmem>>, vector<1x16x128xf32>
    %48 = vector.shape_cast %47 : vector<1x16x128xf32> to vector<16x128xf32>
    %c4_i32 = arith.constant 4 : i32
    %49 = vector.broadcast %c4_i32 : i32 to vector<16x128xi32>
    %50 = arith.cmpi sge, %3, %49 : vector<16x128xi32>
    %c4_i32_40 = arith.constant 4 : i32
    %51 = tpu.dynamic_rotate %46 by %c4_i32_40 dim 1 : vector<16x128xf32>, i32 -> vector<16x128xf32>
    %c4_i32_41 = arith.constant 4 : i32
    %52 = tpu.dynamic_rotate %48 by %c4_i32_41 dim 1 : vector<16x128xf32>, i32 -> vector<16x128xf32>
    %53 = arith.select %50, %51, %52 : vector<16x128xi1>, vector<16x128xf32>
    %c0_42 = arith.constant 0 : index
    %c0_43 = arith.constant 0 : index
    %54 = vector.load %arg33[%c0_42, %c0_43] : memref<48x128xf32, #tpu.memory_space<vmem>>, vector<16x128xf32>
    tpu.vector_store %arg33[%c0_42, %c0_43], %53 {strides = array<i32>} : memref<48x128xf32, #tpu.memory_space<vmem>>, vector<16x128xf32>,
    %c2_i32_44 = arith.constant 2 : i32
    %55 = vector.broadcast %c2_i32_44 : i32 to vector<16x128xi32>
    %56 = arith.cmpi sge, %3, %55 : vector<16x128xi32>
    %c2_i32_45 = arith.constant 2 : i32
    %57 = tpu.dynamic_rotate %46 by %c2_i32_45 dim 1 : vector<16x128xf32>, i32 -> vector<16x128xf32>
    %c2_i32_46 = arith.constant 2 : i32
    %58 = tpu.dynamic_rotate %48 by %c2_i32_46 dim 1 : vector<16x128xf32>, i32 -> vector<16x128xf32>
    %59 = arith.select %56, %57, %58 : vector<16x128xi1>, vector<16x128xf32>
    %c16_47 = arith.constant 16 : index
    %c0_48 = arith.constant 0 : index
    %60 = vector.load %arg33[%c16_47, %c0_48] : memref<48x128xf32, #tpu.memory_space<vmem>>, vector<16x128xf32>
    tpu.vector_store %arg33[%c16_47, %c0_48], %59 {strides = array<i32>} : memref<48x128xf32, #tpu.memory_space<vmem>>, vector<16x128xf32>,
    %c32_49 = arith.constant 32 : index
    %c0_50 = arith.constant 0 : index
    %61 = vector.load %arg33[%c32_49, %c0_50] : memref<48x128xf32, #tpu.memory_space<vmem>>, vector<16x128xf32>
    tpu.vector_store %arg33[%c32_49, %c0_50], %46 {strides = array<i32>} : memref<48x128xf32, #tpu.memory_space<vmem>>, vector<16x128xf32>,
    %c1_51 = arith.constant 1 : index
    %c0_52 = arith.constant 0 : index
    %c0_53 = arith.constant 0 : index
    %62 = vector.load %arg34[%c1_51, %c0_52, %c0_53] : memref<7x16x128xf32, #tpu.memory_space<vmem>>, vector<1x16x128xf32>
    %63 = vector.shape_cast %62 : vector<1x16x128xf32> to vector<16x128xf32>
    %64 = vector.shape_cast %46 : vector<16x128xf32> to vector<1x16x128xf32>
    tpu.vector_store %arg34[%c1_51, %c0_52, %c0_53], %64 {strides = array<i32>} : memref<7x16x128xf32, #tpu.memory_space<vmem>>, vector<1x16x128xf32>,
    %c1_54 = arith.constant 1 : index
    %c0_55 = arith.constant 0 : index
    %c0_56 = arith.constant 0 : index
    %65 = vector.load %arg5[%c1_54, %c0_55, %c0_56] : memref<3x16x48xf32, #tpu.memory_space<vmem>>, vector<1x16x48xf32>
    %66 = vector.shape_cast %65 : vector<1x16x48xf32> to vector<16x48xf32>
    %c0_57 = arith.constant 0 : index
    %c0_58 = arith.constant 0 : index
    %67 = vector.load %arg33[%c0_57, %c0_58] : memref<48x128xf32, #tpu.memory_space<vmem>>, vector<48x128xf32>
    %cst_59 = arith.constant dense<0.000000e+00> : vector<16x128xf32>
    %68 = tpu.matmul %66, %67, %cst_59 {dimension_numbers = #tpu.dot_dimension_numbers<[1], [0], [0], [1], [0, 0, 1, 1], [], []>} : vector<16x48xf32>, vector<48x128xf32>, vector<16x128xf32> -> vector<16x128xf32>
    %c1_60 = arith.constant 1 : index
    %c0_61 = arith.constant 0 : index
    %c0_62 = arith.constant 0 : index
    %69 = vector.load %arg6[%c1_60, %c0_61, %c0_62] : memref<3x16x1xf32, #tpu.memory_space<vmem>>, vector<1x16x1xf32>
    %70 = vector.shape_cast %69 : vector<1x16x1xf32> to vector<16x1xf32>
    %71 = vector.broadcast %70 : vector<16x1xf32> to vector<16x128xf32>
    %72 = arith.addf %68, %71 : vector<16x128xf32>
    %cst_63 = arith.constant 0.000000e+00 : f32
    %73 = vector.broadcast %cst_63 : f32 to vector<16x128xf32>
    %74 = arith.maximumf %72, %73 : vector<16x128xf32>
    %c1_64 = arith.constant 1 : index
    %c0_65 = arith.constant 0 : index
    %c0_66 = arith.constant 0 : index
    %75 = vector.load %arg7[%c1_64, %c0_65, %c0_66] : memref<3x16x16xf32, #tpu.memory_space<vmem>>, vector<1x16x16xf32>
    %76 = vector.shape_cast %75 : vector<1x16x16xf32> to vector<16x16xf32>
    %cst_67 = arith.constant dense<0.000000e+00> : vector<16x128xf32>
    %77 = tpu.matmul %76, %74, %cst_67 {dimension_numbers = #tpu.dot_dimension_numbers<[1], [0], [0], [1], [0, 0, 1, 1], [], []>} : vector<16x16xf32>, vector<16x128xf32>, vector<16x128xf32> -> vector<16x128xf32>
    %78 = arith.addf %46, %77 : vector<16x128xf32>
    %c1_68 = arith.constant 1 : index
    %c0_69 = arith.constant 0 : index
    %c0_70 = arith.constant 0 : index
    %79 = vector.load %arg8[%c1_68, %c0_69, %c0_70] : memref<3x16x1xf32, #tpu.memory_space<vmem>>, vector<1x16x1xf32>
    %80 = vector.shape_cast %79 : vector<1x16x1xf32> to vector<16x1xf32>
    %81 = vector.broadcast %80 : vector<16x1xf32> to vector<16x128xf32>
    %82 = arith.addf %78, %81 : vector<16x128xf32>
    %c2 = arith.constant 2 : index
    %c0_71 = arith.constant 0 : index
    %c0_72 = arith.constant 0 : index
    %83 = vector.load %arg34[%c2, %c0_71, %c0_72] : memref<7x16x128xf32, #tpu.memory_space<vmem>>, vector<1x16x128xf32>
    %84 = vector.shape_cast %83 : vector<1x16x128xf32> to vector<16x128xf32>
    %c8_i32 = arith.constant 8 : i32
    %85 = vector.broadcast %c8_i32 : i32 to vector<16x128xi32>
    %86 = arith.cmpi sge, %3, %85 : vector<16x128xi32>
    %c8_i32_73 = arith.constant 8 : i32
    %87 = tpu.dynamic_rotate %82 by %c8_i32_73 dim 1 : vector<16x128xf32>, i32 -> vector<16x128xf32>
    %c8_i32_74 = arith.constant 8 : i32
    %88 = tpu.dynamic_rotate %84 by %c8_i32_74 dim 1 : vector<16x128xf32>, i32 -> vector<16x128xf32>
    %89 = arith.select %86, %87, %88 : vector<16x128xi1>, vector<16x128xf32>
    %c0_75 = arith.constant 0 : index
    %c0_76 = arith.constant 0 : index
    %90 = vector.load %arg33[%c0_75, %c0_76] : memref<48x128xf32, #tpu.memory_space<vmem>>, vector<16x128xf32>
    tpu.vector_store %arg33[%c0_75, %c0_76], %89 {strides = array<i32>} : memref<48x128xf32, #tpu.memory_space<vmem>>, vector<16x128xf32>,
    %c4_i32_77 = arith.constant 4 : i32
    %91 = vector.broadcast %c4_i32_77 : i32 to vector<16x128xi32>
    %92 = arith.cmpi sge, %3, %91 : vector<16x128xi32>
    %c4_i32_78 = arith.constant 4 : i32
    %93 = tpu.dynamic_rotate %82 by %c4_i32_78 dim 1 : vector<16x128xf32>, i32 -> vector<16x128xf32>
    %c4_i32_79 = arith.constant 4 : i32
    %94 = tpu.dynamic_rotate %84 by %c4_i32_79 dim 1 : vector<16x128xf32>, i32 -> vector<16x128xf32>
    %95 = arith.select %92, %93, %94 : vector<16x128xi1>, vector<16x128xf32>
    %c16_80 = arith.constant 16 : index
    %c0_81 = arith.constant 0 : index
    %96 = vector.load %arg33[%c16_80, %c0_81] : memref<48x128xf32, #tpu.memory_space<vmem>>, vector<16x128xf32>
    tpu.vector_store %arg33[%c16_80, %c0_81], %95 {strides = array<i32>} : memref<48x128xf32, #tpu.memory_space<vmem>>, vector<16x128xf32>,
    %c32_82 = arith.constant 32 : index
    %c0_83 = arith.constant 0 : index
    %97 = vector.load %arg33[%c32_82, %c0_83] : memref<48x128xf32, #tpu.memory_space<vmem>>, vector<16x128xf32>
    tpu.vector_store %arg33[%c32_82, %c0_83], %82 {strides = array<i32>} : memref<48x128xf32, #tpu.memory_space<vmem>>, vector<16x128xf32>,
    %c2_84 = arith.constant 2 : index
    %c0_85 = arith.constant 0 : index
    %c0_86 = arith.constant 0 : index
    %98 = vector.load %arg34[%c2_84, %c0_85, %c0_86] : memref<7x16x128xf32, #tpu.memory_space<vmem>>, vector<1x16x128xf32>
    %99 = vector.shape_cast %98 : vector<1x16x128xf32> to vector<16x128xf32>
    %100 = vector.shape_cast %82 : vector<16x128xf32> to vector<1x16x128xf32>
    tpu.vector_store %arg34[%c2_84, %c0_85, %c0_86], %100 {strides = array<i32>} : memref<7x16x128xf32, #tpu.memory_space<vmem>>, vector<1x16x128xf32>,
    %c2_87 = arith.constant 2 : index
    %c0_88 = arith.constant 0 : index
    %c0_89 = arith.constant 0 : index
    %101 = vector.load %arg5[%c2_87, %c0_88, %c0_89] : memref<3x16x48xf32, #tpu.memory_space<vmem>>, vector<1x16x48xf32>
    %102 = vector.shape_cast %101 : vector<1x16x48xf32> to vector<16x48xf32>
    %c0_90 = arith.constant 0 : index
    %c0_91 = arith.constant 0 : index
    %103 = vector.load %arg33[%c0_90, %c0_91] : memref<48x128xf32, #tpu.memory_space<vmem>>, vector<48x128xf32>
    %cst_92 = arith.constant dense<0.000000e+00> : vector<16x128xf32>
    %104 = tpu.matmul %102, %103, %cst_92 {dimension_numbers = #tpu.dot_dimension_numbers<[1], [0], [0], [1], [0, 0, 1, 1], [], []>} : vector<16x48xf32>, vector<48x128xf32>, vector<16x128xf32> -> vector<16x128xf32>
    %c2_93 = arith.constant 2 : index
    %c0_94 = arith.constant 0 : index
    %c0_95 = arith.constant 0 : index
    %105 = vector.load %arg6[%c2_93, %c0_94, %c0_95] : memref<3x16x1xf32, #tpu.memory_space<vmem>>, vector<1x16x1xf32>
    %106 = vector.shape_cast %105 : vector<1x16x1xf32> to vector<16x1xf32>
    %107 = vector.broadcast %106 : vector<16x1xf32> to vector<16x128xf32>
    %108 = arith.addf %104, %107 : vector<16x128xf32>
    %cst_96 = arith.constant 0.000000e+00 : f32
    %109 = vector.broadcast %cst_96 : f32 to vector<16x128xf32>
    %110 = arith.maximumf %108, %109 : vector<16x128xf32>
    %c2_97 = arith.constant 2 : index
    %c0_98 = arith.constant 0 : index
    %c0_99 = arith.constant 0 : index
    %111 = vector.load %arg7[%c2_97, %c0_98, %c0_99] : memref<3x16x16xf32, #tpu.memory_space<vmem>>, vector<1x16x16xf32>
    %112 = vector.shape_cast %111 : vector<1x16x16xf32> to vector<16x16xf32>
    %cst_100 = arith.constant dense<0.000000e+00> : vector<16x128xf32>
    %113 = tpu.matmul %112, %110, %cst_100 {dimension_numbers = #tpu.dot_dimension_numbers<[1], [0], [0], [1], [0, 0, 1, 1], [], []>} : vector<16x16xf32>, vector<16x128xf32>, vector<16x128xf32> -> vector<16x128xf32>
    %114 = arith.addf %82, %113 : vector<16x128xf32>
    %c2_101 = arith.constant 2 : index
    %c0_102 = arith.constant 0 : index
    %c0_103 = arith.constant 0 : index
    %115 = vector.load %arg8[%c2_101, %c0_102, %c0_103] : memref<3x16x1xf32, #tpu.memory_space<vmem>>, vector<1x16x1xf32>
    %116 = vector.shape_cast %115 : vector<1x16x1xf32> to vector<16x1xf32>
    %117 = vector.broadcast %116 : vector<16x1xf32> to vector<16x128xf32>
    %118 = arith.addf %114, %117 : vector<16x128xf32>
    %c0_104 = arith.constant 0 : index
    %c0_105 = arith.constant 0 : index
    %119 = vector.load %arg9[%c0_104, %c0_105] : memref<8x16xf32, #tpu.memory_space<vmem>>, vector<8x16xf32>
    %cst_106 = arith.constant dense<0.000000e+00> : vector<8x128xf32>
    %120 = tpu.matmul %119, %118, %cst_106 {dimension_numbers = #tpu.dot_dimension_numbers<[1], [0], [0], [1], [0, 0, 1, 1], [], []>} : vector<8x16xf32>, vector<16x128xf32>, vector<8x128xf32> -> vector<8x128xf32>
    %c0_107 = arith.constant 0 : index
    %c0_108 = arith.constant 0 : index
    %121 = vector.load %arg10[%c0_107, %c0_108] : memref<8x1xf32, #tpu.memory_space<vmem>>, vector<8x1xf32>
    %122 = vector.broadcast %121 : vector<8x1xf32> to vector<8x128xf32>
    %123 = arith.addf %120, %122 : vector<8x128xf32>
    %c0_109 = arith.constant 0 : index
    %c0_110 = arith.constant 0 : index
    %c0_111 = arith.constant 0 : index
    %124 = vector.load %arg27[%c0_109, %c0_110, %c0_111] : memref<1x8x128xf32, #tpu.memory_space<vmem>>, vector<1x8x128xf32>
    %125 = vector.shape_cast %124 : vector<1x8x128xf32> to vector<8x128xf32>
    %126 = vector.shape_cast %123 : vector<8x128xf32> to vector<1x8x128xf32>
    tpu.vector_store %arg27[%c0_109, %c0_110, %c0_111], %126 {strides = array<i32>} : memref<1x8x128xf32, #tpu.memory_space<vmem>>, vector<1x8x128xf32>,
    %c0_112 = arith.constant 0 : index
    %c0_113 = arith.constant 0 : index
    %c0_114 = arith.constant 0 : index
    %127 = vector.load %arg30[%c0_112, %c0_113, %c0_114] : memref<1x16x128xf32, #tpu.memory_space<vmem>>, vector<1x16x128xf32>
    %128 = vector.shape_cast %127 : vector<1x16x128xf32> to vector<16x128xf32>
    %129 = vector.shape_cast %118 : vector<16x128xf32> to vector<1x16x128xf32>
    tpu.vector_store %arg30[%c0_112, %c0_113, %c0_114], %129 {strides = array<i32>} : memref<1x16x128xf32, #tpu.memory_space<vmem>>, vector<1x16x128xf32>,
    %c0_115 = arith.constant 0 : index
    %c0_116 = arith.constant 0 : index
    %130 = vector.load %arg11[%c0_115, %c0_116] : memref<16x8xf32, #tpu.memory_space<vmem>>, vector<16x8xf32>
    %cst_117 = arith.constant dense<0.000000e+00> : vector<16x128xf32>
    %131 = tpu.matmul %130, %123, %cst_117 {dimension_numbers = #tpu.dot_dimension_numbers<[1], [0], [0], [1], [0, 0, 1, 1], [], []>} : vector<16x8xf32>, vector<8x128xf32>, vector<16x128xf32> -> vector<16x128xf32>
    %c0_118 = arith.constant 0 : index
    %c0_119 = arith.constant 0 : index
    %132 = vector.load %arg12[%c0_118, %c0_119] : memref<16x1xf32, #tpu.memory_space<vmem>>, vector<16x1xf32>
    %133 = vector.broadcast %132 : vector<16x1xf32> to vector<16x128xf32>
    %134 = arith.addf %131, %133 : vector<16x128xf32>
    %c3 = arith.constant 3 : index
    %c0_120 = arith.constant 0 : index
    %c0_121 = arith.constant 0 : index
    %135 = vector.load %arg34[%c3, %c0_120, %c0_121] : memref<7x16x128xf32, #tpu.memory_space<vmem>>, vector<1x16x128xf32>
    %136 = vector.shape_cast %135 : vector<1x16x128xf32> to vector<16x128xf32>
    %c2_i32_122 = arith.constant 2 : i32
    %137 = vector.broadcast %c2_i32_122 : i32 to vector<16x128xi32>
    %138 = arith.cmpi sge, %3, %137 : vector<16x128xi32>
    %c2_i32_123 = arith.constant 2 : i32
    %139 = tpu.dynamic_rotate %134 by %c2_i32_123 dim 1 : vector<16x128xf32>, i32 -> vector<16x128xf32>
    %c2_i32_124 = arith.constant 2 : i32
    %140 = tpu.dynamic_rotate %136 by %c2_i32_124 dim 1 : vector<16x128xf32>, i32 -> vector<16x128xf32>
    %141 = arith.select %138, %139, %140 : vector<16x128xi1>, vector<16x128xf32>
    %c0_125 = arith.constant 0 : index
    %c0_126 = arith.constant 0 : index
    %142 = vector.load %arg33[%c0_125, %c0_126] : memref<48x128xf32, #tpu.memory_space<vmem>>, vector<16x128xf32>
    tpu.vector_store %arg33[%c0_125, %c0_126], %141 {strides = array<i32>} : memref<48x128xf32, #tpu.memory_space<vmem>>, vector<16x128xf32>,
    %c1_i32_127 = arith.constant 1 : i32
    %143 = vector.broadcast %c1_i32_127 : i32 to vector<16x128xi32>
    %144 = arith.cmpi sge, %3, %143 : vector<16x128xi32>
    %c1_i32_128 = arith.constant 1 : i32
    %145 = tpu.dynamic_rotate %134 by %c1_i32_128 dim 1 : vector<16x128xf32>, i32 -> vector<16x128xf32>
    %c1_i32_129 = arith.constant 1 : i32
    %146 = tpu.dynamic_rotate %136 by %c1_i32_129 dim 1 : vector<16x128xf32>, i32 -> vector<16x128xf32>
    %147 = arith.select %144, %145, %146 : vector<16x128xi1>, vector<16x128xf32>
    %c16_130 = arith.constant 16 : index
    %c0_131 = arith.constant 0 : index
    %148 = vector.load %arg33[%c16_130, %c0_131] : memref<48x128xf32, #tpu.memory_space<vmem>>, vector<16x128xf32>
    tpu.vector_store %arg33[%c16_130, %c0_131], %147 {strides = array<i32>} : memref<48x128xf32, #tpu.memory_space<vmem>>, vector<16x128xf32>,
    %c32_132 = arith.constant 32 : index
    %c0_133 = arith.constant 0 : index
    %149 = vector.load %arg33[%c32_132, %c0_133] : memref<48x128xf32, #tpu.memory_space<vmem>>, vector<16x128xf32>
    tpu.vector_store %arg33[%c32_132, %c0_133], %134 {strides = array<i32>} : memref<48x128xf32, #tpu.memory_space<vmem>>, vector<16x128xf32>,
    %c3_134 = arith.constant 3 : index
    %c0_135 = arith.constant 0 : index
    %c0_136 = arith.constant 0 : index
    %150 = vector.load %arg34[%c3_134, %c0_135, %c0_136] : memref<7x16x128xf32, #tpu.memory_space<vmem>>, vector<1x16x128xf32>
    %151 = vector.shape_cast %150 : vector<1x16x128xf32> to vector<16x128xf32>
    %152 = vector.shape_cast %134 : vector<16x128xf32> to vector<1x16x128xf32>
    tpu.vector_store %arg34[%c3_134, %c0_135, %c0_136], %152 {strides = array<i32>} : memref<7x16x128xf32, #tpu.memory_space<vmem>>, vector<1x16x128xf32>,
    %c0_137 = arith.constant 0 : index
    %c0_138 = arith.constant 0 : index
    %c0_139 = arith.constant 0 : index
    %153 = vector.load %arg13[%c0_137, %c0_138, %c0_139] : memref<2x16x48xf32, #tpu.memory_space<vmem>>, vector<1x16x48xf32>
    %154 = vector.shape_cast %153 : vector<1x16x48xf32> to vector<16x48xf32>
    %c0_140 = arith.constant 0 : index
    %c0_141 = arith.constant 0 : index
    %155 = vector.load %arg33[%c0_140, %c0_141] : memref<48x128xf32, #tpu.memory_space<vmem>>, vector<48x128xf32>
    %cst_142 = arith.constant dense<0.000000e+00> : vector<16x128xf32>
    %156 = tpu.matmul %154, %155, %cst_142 {dimension_numbers = #tpu.dot_dimension_numbers<[1], [0], [0], [1], [0, 0, 1, 1], [], []>} : vector<16x48xf32>, vector<48x128xf32>, vector<16x128xf32> -> vector<16x128xf32>
    %c0_143 = arith.constant 0 : index
    %c0_144 = arith.constant 0 : index
    %c0_145 = arith.constant 0 : index
    %157 = vector.load %arg14[%c0_143, %c0_144, %c0_145] : memref<2x16x1xf32, #tpu.memory_space<vmem>>, vector<1x16x1xf32>
    %158 = vector.shape_cast %157 : vector<1x16x1xf32> to vector<16x1xf32>
    %159 = vector.broadcast %158 : vector<16x1xf32> to vector<16x128xf32>
    %160 = arith.addf %156, %159 : vector<16x128xf32>
    %cst_146 = arith.constant 0.000000e+00 : f32
    %161 = vector.broadcast %cst_146 : f32 to vector<16x128xf32>
    %162 = arith.maximumf %160, %161 : vector<16x128xf32>
    %c0_147 = arith.constant 0 : index
    %c0_148 = arith.constant 0 : index
    %c0_149 = arith.constant 0 : index
    %163 = vector.load %arg15[%c0_147, %c0_148, %c0_149] : memref<2x16x16xf32, #tpu.memory_space<vmem>>, vector<1x16x16xf32>
    %164 = vector.shape_cast %163 : vector<1x16x16xf32> to vector<16x16xf32>
    %cst_150 = arith.constant dense<0.000000e+00> : vector<16x128xf32>
    %165 = tpu.matmul %164, %162, %cst_150 {dimension_numbers = #tpu.dot_dimension_numbers<[1], [0], [0], [1], [0, 0, 1, 1], [], []>} : vector<16x16xf32>, vector<16x128xf32>, vector<16x128xf32> -> vector<16x128xf32>
    %166 = arith.addf %134, %165 : vector<16x128xf32>
    %c0_151 = arith.constant 0 : index
    %c0_152 = arith.constant 0 : index
    %c0_153 = arith.constant 0 : index
    %167 = vector.load %arg16[%c0_151, %c0_152, %c0_153] : memref<2x16x1xf32, #tpu.memory_space<vmem>>, vector<1x16x1xf32>
    %168 = vector.shape_cast %167 : vector<1x16x1xf32> to vector<16x1xf32>
    %169 = vector.broadcast %168 : vector<16x1xf32> to vector<16x128xf32>
    %170 = arith.addf %166, %169 : vector<16x128xf32>
    %c4 = arith.constant 4 : index
    %c0_154 = arith.constant 0 : index
    %c0_155 = arith.constant 0 : index
    %171 = vector.load %arg34[%c4, %c0_154, %c0_155] : memref<7x16x128xf32, #tpu.memory_space<vmem>>, vector<1x16x128xf32>
    %172 = vector.shape_cast %171 : vector<1x16x128xf32> to vector<16x128xf32>
    %c4_i32_156 = arith.constant 4 : i32
    %173 = vector.broadcast %c4_i32_156 : i32 to vector<16x128xi32>
    %174 = arith.cmpi sge, %3, %173 : vector<16x128xi32>
    %c4_i32_157 = arith.constant 4 : i32
    %175 = tpu.dynamic_rotate %170 by %c4_i32_157 dim 1 : vector<16x128xf32>, i32 -> vector<16x128xf32>
    %c4_i32_158 = arith.constant 4 : i32
    %176 = tpu.dynamic_rotate %172 by %c4_i32_158 dim 1 : vector<16x128xf32>, i32 -> vector<16x128xf32>
    %177 = arith.select %174, %175, %176 : vector<16x128xi1>, vector<16x128xf32>
    %c0_159 = arith.constant 0 : index
    %c0_160 = arith.constant 0 : index
    %178 = vector.load %arg33[%c0_159, %c0_160] : memref<48x128xf32, #tpu.memory_space<vmem>>, vector<16x128xf32>
    tpu.vector_store %arg33[%c0_159, %c0_160], %177 {strides = array<i32>} : memref<48x128xf32, #tpu.memory_space<vmem>>, vector<16x128xf32>,
    %c2_i32_161 = arith.constant 2 : i32
    %179 = vector.broadcast %c2_i32_161 : i32 to vector<16x128xi32>
    %180 = arith.cmpi sge, %3, %179 : vector<16x128xi32>
    %c2_i32_162 = arith.constant 2 : i32
    %181 = tpu.dynamic_rotate %170 by %c2_i32_162 dim 1 : vector<16x128xf32>, i32 -> vector<16x128xf32>
    %c2_i32_163 = arith.constant 2 : i32
    %182 = tpu.dynamic_rotate %172 by %c2_i32_163 dim 1 : vector<16x128xf32>, i32 -> vector<16x128xf32>
    %183 = arith.select %180, %181, %182 : vector<16x128xi1>, vector<16x128xf32>
    %c16_164 = arith.constant 16 : index
    %c0_165 = arith.constant 0 : index
    %184 = vector.load %arg33[%c16_164, %c0_165] : memref<48x128xf32, #tpu.memory_space<vmem>>, vector<16x128xf32>
    tpu.vector_store %arg33[%c16_164, %c0_165], %183 {strides = array<i32>} : memref<48x128xf32, #tpu.memory_space<vmem>>, vector<16x128xf32>,
    %c32_166 = arith.constant 32 : index
    %c0_167 = arith.constant 0 : index
    %185 = vector.load %arg33[%c32_166, %c0_167] : memref<48x128xf32, #tpu.memory_space<vmem>>, vector<16x128xf32>
    tpu.vector_store %arg33[%c32_166, %c0_167], %170 {strides = array<i32>} : memref<48x128xf32, #tpu.memory_space<vmem>>, vector<16x128xf32>,
    %c4_168 = arith.constant 4 : index
    %c0_169 = arith.constant 0 : index
    %c0_170 = arith.constant 0 : index
    %186 = vector.load %arg34[%c4_168, %c0_169, %c0_170] : memref<7x16x128xf32, #tpu.memory_space<vmem>>, vector<1x16x128xf32>
    %187 = vector.shape_cast %186 : vector<1x16x128xf32> to vector<16x128xf32>
    %188 = vector.shape_cast %170 : vector<16x128xf32> to vector<1x16x128xf32>
    tpu.vector_store %arg34[%c4_168, %c0_169, %c0_170], %188 {strides = array<i32>} : memref<7x16x128xf32, #tpu.memory_space<vmem>>, vector<1x16x128xf32>,
    %c1_171 = arith.constant 1 : index
    %c0_172 = arith.constant 0 : index
    %c0_173 = arith.constant 0 : index
    %189 = vector.load %arg13[%c1_171, %c0_172, %c0_173] : memref<2x16x48xf32, #tpu.memory_space<vmem>>, vector<1x16x48xf32>
    %190 = vector.shape_cast %189 : vector<1x16x48xf32> to vector<16x48xf32>
    %c0_174 = arith.constant 0 : index
    %c0_175 = arith.constant 0 : index
    %191 = vector.load %arg33[%c0_174, %c0_175] : memref<48x128xf32, #tpu.memory_space<vmem>>, vector<48x128xf32>
    %cst_176 = arith.constant dense<0.000000e+00> : vector<16x128xf32>
    %192 = tpu.matmul %190, %191, %cst_176 {dimension_numbers = #tpu.dot_dimension_numbers<[1], [0], [0], [1], [0, 0, 1, 1], [], []>} : vector<16x48xf32>, vector<48x128xf32>, vector<16x128xf32> -> vector<16x128xf32>
    %c1_177 = arith.constant 1 : index
    %c0_178 = arith.constant 0 : index
    %c0_179 = arith.constant 0 : index
    %193 = vector.load %arg14[%c1_177, %c0_178, %c0_179] : memref<2x16x1xf32, #tpu.memory_space<vmem>>, vector<1x16x1xf32>
    %194 = vector.shape_cast %193 : vector<1x16x1xf32> to vector<16x1xf32>
    %195 = vector.broadcast %194 : vector<16x1xf32> to vector<16x128xf32>
    %196 = arith.addf %192, %195 : vector<16x128xf32>
    %cst_180 = arith.constant 0.000000e+00 : f32
    %197 = vector.broadcast %cst_180 : f32 to vector<16x128xf32>
    %198 = arith.maximumf %196, %197 : vector<16x128xf32>
    %c1_181 = arith.constant 1 : index
    %c0_182 = arith.constant 0 : index
    %c0_183 = arith.constant 0 : index
    %199 = vector.load %arg15[%c1_181, %c0_182, %c0_183] : memref<2x16x16xf32, #tpu.memory_space<vmem>>, vector<1x16x16xf32>
    %200 = vector.shape_cast %199 : vector<1x16x16xf32> to vector<16x16xf32>
    %cst_184 = arith.constant dense<0.000000e+00> : vector<16x128xf32>
    %201 = tpu.matmul %200, %198, %cst_184 {dimension_numbers = #tpu.dot_dimension_numbers<[1], [0], [0], [1], [0, 0, 1, 1], [], []>} : vector<16x16xf32>, vector<16x128xf32>, vector<16x128xf32> -> vector<16x128xf32>
    %202 = arith.addf %170, %201 : vector<16x128xf32>
    %c1_185 = arith.constant 1 : index
    %c0_186 = arith.constant 0 : index
    %c0_187 = arith.constant 0 : index
    %203 = vector.load %arg16[%c1_185, %c0_186, %c0_187] : memref<2x16x1xf32, #tpu.memory_space<vmem>>, vector<1x16x1xf32>
    %204 = vector.shape_cast %203 : vector<1x16x1xf32> to vector<16x1xf32>
    %205 = vector.broadcast %204 : vector<16x1xf32> to vector<16x128xf32>
    %206 = arith.addf %202, %205 : vector<16x128xf32>
    %c0_188 = arith.constant 0 : index
    %c0_189 = arith.constant 0 : index
    %207 = vector.load %arg17[%c0_188, %c0_189] : memref<8x16xf32, #tpu.memory_space<vmem>>, vector<8x16xf32>
    %cst_190 = arith.constant dense<0.000000e+00> : vector<8x128xf32>
    %208 = tpu.matmul %207, %206, %cst_190 {dimension_numbers = #tpu.dot_dimension_numbers<[1], [0], [0], [1], [0, 0, 1, 1], [], []>} : vector<8x16xf32>, vector<16x128xf32>, vector<8x128xf32> -> vector<8x128xf32>
    %c0_191 = arith.constant 0 : index
    %c0_192 = arith.constant 0 : index
    %209 = vector.load %arg18[%c0_191, %c0_192] : memref<8x1xf32, #tpu.memory_space<vmem>>, vector<8x1xf32>
    %210 = vector.broadcast %209 : vector<8x1xf32> to vector<8x128xf32>
    %211 = arith.addf %208, %210 : vector<8x128xf32>
    %c0_193 = arith.constant 0 : index
    %c0_194 = arith.constant 0 : index
    %c0_195 = arith.constant 0 : index
    %212 = vector.load %arg28[%c0_193, %c0_194, %c0_195] : memref<1x8x128xf32, #tpu.memory_space<vmem>>, vector<1x8x128xf32>
    %213 = vector.shape_cast %212 : vector<1x8x128xf32> to vector<8x128xf32>
    %214 = vector.shape_cast %211 : vector<8x128xf32> to vector<1x8x128xf32>
    tpu.vector_store %arg28[%c0_193, %c0_194, %c0_195], %214 {strides = array<i32>} : memref<1x8x128xf32, #tpu.memory_space<vmem>>, vector<1x8x128xf32>,
    %c0_196 = arith.constant 0 : index
    %c0_197 = arith.constant 0 : index
    %c0_198 = arith.constant 0 : index
    %215 = vector.load %arg31[%c0_196, %c0_197, %c0_198] : memref<1x16x128xf32, #tpu.memory_space<vmem>>, vector<1x16x128xf32>
    %216 = vector.shape_cast %215 : vector<1x16x128xf32> to vector<16x128xf32>
    %217 = vector.shape_cast %206 : vector<16x128xf32> to vector<1x16x128xf32>
    tpu.vector_store %arg31[%c0_196, %c0_197, %c0_198], %217 {strides = array<i32>} : memref<1x16x128xf32, #tpu.memory_space<vmem>>, vector<1x16x128xf32>,
    %c0_199 = arith.constant 0 : index
    %c0_200 = arith.constant 0 : index
    %218 = vector.load %arg19[%c0_199, %c0_200] : memref<16x8xf32, #tpu.memory_space<vmem>>, vector<16x8xf32>
    %cst_201 = arith.constant dense<0.000000e+00> : vector<16x128xf32>
    %219 = tpu.matmul %218, %211, %cst_201 {dimension_numbers = #tpu.dot_dimension_numbers<[1], [0], [0], [1], [0, 0, 1, 1], [], []>} : vector<16x8xf32>, vector<8x128xf32>, vector<16x128xf32> -> vector<16x128xf32>
    %c0_202 = arith.constant 0 : index
    %c0_203 = arith.constant 0 : index
    %220 = vector.load %arg20[%c0_202, %c0_203] : memref<16x1xf32, #tpu.memory_space<vmem>>, vector<16x1xf32>
    %221 = vector.broadcast %220 : vector<16x1xf32> to vector<16x128xf32>
    %222 = arith.addf %219, %221 : vector<16x128xf32>
    %c5 = arith.constant 5 : index
    %c0_204 = arith.constant 0 : index
    %c0_205 = arith.constant 0 : index
    %223 = vector.load %arg34[%c5, %c0_204, %c0_205] : memref<7x16x128xf32, #tpu.memory_space<vmem>>, vector<1x16x128xf32>
    %224 = vector.shape_cast %223 : vector<1x16x128xf32> to vector<16x128xf32>
    %c2_i32_206 = arith.constant 2 : i32
    %225 = vector.broadcast %c2_i32_206 : i32 to vector<16x128xi32>
    %226 = arith.cmpi sge, %3, %225 : vector<16x128xi32>
    %c2_i32_207 = arith.constant 2 : i32
    %227 = tpu.dynamic_rotate %222 by %c2_i32_207 dim 1 : vector<16x128xf32>, i32 -> vector<16x128xf32>
    %c2_i32_208 = arith.constant 2 : i32
    %228 = tpu.dynamic_rotate %224 by %c2_i32_208 dim 1 : vector<16x128xf32>, i32 -> vector<16x128xf32>
    %229 = arith.select %226, %227, %228 : vector<16x128xi1>, vector<16x128xf32>
    %c0_209 = arith.constant 0 : index
    %c0_210 = arith.constant 0 : index
    %230 = vector.load %arg33[%c0_209, %c0_210] : memref<48x128xf32, #tpu.memory_space<vmem>>, vector<16x128xf32>
    tpu.vector_store %arg33[%c0_209, %c0_210], %229 {strides = array<i32>} : memref<48x128xf32, #tpu.memory_space<vmem>>, vector<16x128xf32>,
    %c1_i32_211 = arith.constant 1 : i32
    %231 = vector.broadcast %c1_i32_211 : i32 to vector<16x128xi32>
    %232 = arith.cmpi sge, %3, %231 : vector<16x128xi32>
    %c1_i32_212 = arith.constant 1 : i32
    %233 = tpu.dynamic_rotate %222 by %c1_i32_212 dim 1 : vector<16x128xf32>, i32 -> vector<16x128xf32>
    %c1_i32_213 = arith.constant 1 : i32
    %234 = tpu.dynamic_rotate %224 by %c1_i32_213 dim 1 : vector<16x128xf32>, i32 -> vector<16x128xf32>
    %235 = arith.select %232, %233, %234 : vector<16x128xi1>, vector<16x128xf32>
    %c16_214 = arith.constant 16 : index
    %c0_215 = arith.constant 0 : index
    %236 = vector.load %arg33[%c16_214, %c0_215] : memref<48x128xf32, #tpu.memory_space<vmem>>, vector<16x128xf32>
    tpu.vector_store %arg33[%c16_214, %c0_215], %235 {strides = array<i32>} : memref<48x128xf32, #tpu.memory_space<vmem>>, vector<16x128xf32>,
    %c32_216 = arith.constant 32 : index
    %c0_217 = arith.constant 0 : index
    %237 = vector.load %arg33[%c32_216, %c0_217] : memref<48x128xf32, #tpu.memory_space<vmem>>, vector<16x128xf32>
    tpu.vector_store %arg33[%c32_216, %c0_217], %222 {strides = array<i32>} : memref<48x128xf32, #tpu.memory_space<vmem>>, vector<16x128xf32>,
    %c5_218 = arith.constant 5 : index
    %c0_219 = arith.constant 0 : index
    %c0_220 = arith.constant 0 : index
    %238 = vector.load %arg34[%c5_218, %c0_219, %c0_220] : memref<7x16x128xf32, #tpu.memory_space<vmem>>, vector<1x16x128xf32>
    %239 = vector.shape_cast %238 : vector<1x16x128xf32> to vector<16x128xf32>
    %240 = vector.shape_cast %222 : vector<16x128xf32> to vector<1x16x128xf32>
    tpu.vector_store %arg34[%c5_218, %c0_219, %c0_220], %240 {strides = array<i32>} : memref<7x16x128xf32, #tpu.memory_space<vmem>>, vector<1x16x128xf32>,
    %c0_221 = arith.constant 0 : index
    %c0_222 = arith.constant 0 : index
    %c0_223 = arith.constant 0 : index
    %241 = vector.load %arg21[%c0_221, %c0_222, %c0_223] : memref<2x16x48xf32, #tpu.memory_space<vmem>>, vector<1x16x48xf32>
    %242 = vector.shape_cast %241 : vector<1x16x48xf32> to vector<16x48xf32>
    %c0_224 = arith.constant 0 : index
    %c0_225 = arith.constant 0 : index
    %243 = vector.load %arg33[%c0_224, %c0_225] : memref<48x128xf32, #tpu.memory_space<vmem>>, vector<48x128xf32>
    %cst_226 = arith.constant dense<0.000000e+00> : vector<16x128xf32>
    %244 = tpu.matmul %242, %243, %cst_226 {dimension_numbers = #tpu.dot_dimension_numbers<[1], [0], [0], [1], [0, 0, 1, 1], [], []>} : vector<16x48xf32>, vector<48x128xf32>, vector<16x128xf32> -> vector<16x128xf32>
    %c0_227 = arith.constant 0 : index
    %c0_228 = arith.constant 0 : index
    %c0_229 = arith.constant 0 : index
    %245 = vector.load %arg22[%c0_227, %c0_228, %c0_229] : memref<2x16x1xf32, #tpu.memory_space<vmem>>, vector<1x16x1xf32>
    %246 = vector.shape_cast %245 : vector<1x16x1xf32> to vector<16x1xf32>
    %247 = vector.broadcast %246 : vector<16x1xf32> to vector<16x128xf32>
    %248 = arith.addf %244, %247 : vector<16x128xf32>
    %cst_230 = arith.constant 0.000000e+00 : f32
    %249 = vector.broadcast %cst_230 : f32 to vector<16x128xf32>
    %250 = arith.maximumf %248, %249 : vector<16x128xf32>
    %c0_231 = arith.constant 0 : index
    %c0_232 = arith.constant 0 : index
    %c0_233 = arith.constant 0 : index
    %251 = vector.load %arg23[%c0_231, %c0_232, %c0_233] : memref<2x16x16xf32, #tpu.memory_space<vmem>>, vector<1x16x16xf32>
    %252 = vector.shape_cast %251 : vector<1x16x16xf32> to vector<16x16xf32>
    %cst_234 = arith.constant dense<0.000000e+00> : vector<16x128xf32>
    %253 = tpu.matmul %252, %250, %cst_234 {dimension_numbers = #tpu.dot_dimension_numbers<[1], [0], [0], [1], [0, 0, 1, 1], [], []>} : vector<16x16xf32>, vector<16x128xf32>, vector<16x128xf32> -> vector<16x128xf32>
    %254 = arith.addf %222, %253 : vector<16x128xf32>
    %c0_235 = arith.constant 0 : index
    %c0_236 = arith.constant 0 : index
    %c0_237 = arith.constant 0 : index
    %255 = vector.load %arg24[%c0_235, %c0_236, %c0_237] : memref<2x16x1xf32, #tpu.memory_space<vmem>>, vector<1x16x1xf32>
    %256 = vector.shape_cast %255 : vector<1x16x1xf32> to vector<16x1xf32>
    %257 = vector.broadcast %256 : vector<16x1xf32> to vector<16x128xf32>
    %258 = arith.addf %254, %257 : vector<16x128xf32>
    %c6 = arith.constant 6 : index
    %c0_238 = arith.constant 0 : index
    %c0_239 = arith.constant 0 : index
    %259 = vector.load %arg34[%c6, %c0_238, %c0_239] : memref<7x16x128xf32, #tpu.memory_space<vmem>>, vector<1x16x128xf32>
    %260 = vector.shape_cast %259 : vector<1x16x128xf32> to vector<16x128xf32>
    %c4_i32_240 = arith.constant 4 : i32
    %261 = vector.broadcast %c4_i32_240 : i32 to vector<16x128xi32>
    %262 = arith.cmpi sge, %3, %261 : vector<16x128xi32>
    %c4_i32_241 = arith.constant 4 : i32
    %263 = tpu.dynamic_rotate %258 by %c4_i32_241 dim 1 : vector<16x128xf32>, i32 -> vector<16x128xf32>
    %c4_i32_242 = arith.constant 4 : i32
    %264 = tpu.dynamic_rotate %260 by %c4_i32_242 dim 1 : vector<16x128xf32>, i32 -> vector<16x128xf32>
    %265 = arith.select %262, %263, %264 : vector<16x128xi1>, vector<16x128xf32>
    %c0_243 = arith.constant 0 : index
    %c0_244 = arith.constant 0 : index
    %266 = vector.load %arg33[%c0_243, %c0_244] : memref<48x128xf32, #tpu.memory_space<vmem>>, vector<16x128xf32>
    tpu.vector_store %arg33[%c0_243, %c0_244], %265 {strides = array<i32>} : memref<48x128xf32, #tpu.memory_space<vmem>>, vector<16x128xf32>,
    %c2_i32_245 = arith.constant 2 : i32
    %267 = vector.broadcast %c2_i32_245 : i32 to vector<16x128xi32>
    %268 = arith.cmpi sge, %3, %267 : vector<16x128xi32>
    %c2_i32_246 = arith.constant 2 : i32
    %269 = tpu.dynamic_rotate %258 by %c2_i32_246 dim 1 : vector<16x128xf32>, i32 -> vector<16x128xf32>
    %c2_i32_247 = arith.constant 2 : i32
    %270 = tpu.dynamic_rotate %260 by %c2_i32_247 dim 1 : vector<16x128xf32>, i32 -> vector<16x128xf32>
    %271 = arith.select %268, %269, %270 : vector<16x128xi1>, vector<16x128xf32>
    %c16_248 = arith.constant 16 : index
    %c0_249 = arith.constant 0 : index
    %272 = vector.load %arg33[%c16_248, %c0_249] : memref<48x128xf32, #tpu.memory_space<vmem>>, vector<16x128xf32>
    tpu.vector_store %arg33[%c16_248, %c0_249], %271 {strides = array<i32>} : memref<48x128xf32, #tpu.memory_space<vmem>>, vector<16x128xf32>,
    %c32_250 = arith.constant 32 : index
    %c0_251 = arith.constant 0 : index
    %273 = vector.load %arg33[%c32_250, %c0_251] : memref<48x128xf32, #tpu.memory_space<vmem>>, vector<16x128xf32>
    tpu.vector_store %arg33[%c32_250, %c0_251], %258 {strides = array<i32>} : memref<48x128xf32, #tpu.memory_space<vmem>>, vector<16x128xf32>,
    %c6_252 = arith.constant 6 : index
    %c0_253 = arith.constant 0 : index
    %c0_254 = arith.constant 0 : index
    %274 = vector.load %arg34[%c6_252, %c0_253, %c0_254] : memref<7x16x128xf32, #tpu.memory_space<vmem>>, vector<1x16x128xf32>
    %275 = vector.shape_cast %274 : vector<1x16x128xf32> to vector<16x128xf32>
    %276 = vector.shape_cast %258 : vector<16x128xf32> to vector<1x16x128xf32>
    tpu.vector_store %arg34[%c6_252, %c0_253, %c0_254], %276 {strides = array<i32>} : memref<7x16x128xf32, #tpu.memory_space<vmem>>, vector<1x16x128xf32>,
    %c1_255 = arith.constant 1 : index
    %c0_256 = arith.constant 0 : index
    %c0_257 = arith.constant 0 : index
    %277 = vector.load %arg21[%c1_255, %c0_256, %c0_257] : memref<2x16x48xf32, #tpu.memory_space<vmem>>, vector<1x16x48xf32>
    %278 = vector.shape_cast %277 : vector<1x16x48xf32> to vector<16x48xf32>
    %c0_258 = arith.constant 0 : index
    %c0_259 = arith.constant 0 : index
    %279 = vector.load %arg33[%c0_258, %c0_259] : memref<48x128xf32, #tpu.memory_space<vmem>>, vector<48x128xf32>
    %cst_260 = arith.constant dense<0.000000e+00> : vector<16x128xf32>
    %280 = tpu.matmul %278, %279, %cst_260 {dimension_numbers = #tpu.dot_dimension_numbers<[1], [0], [0], [1], [0, 0, 1, 1], [], []>} : vector<16x48xf32>, vector<48x128xf32>, vector<16x128xf32> -> vector<16x128xf32>
    %c1_261 = arith.constant 1 : index
    %c0_262 = arith.constant 0 : index
    %c0_263 = arith.constant 0 : index
    %281 = vector.load %arg22[%c1_261, %c0_262, %c0_263] : memref<2x16x1xf32, #tpu.memory_space<vmem>>, vector<1x16x1xf32>
    %282 = vector.shape_cast %281 : vector<1x16x1xf32> to vector<16x1xf32>
    %283 = vector.broadcast %282 : vector<16x1xf32> to vector<16x128xf32>
    %284 = arith.addf %280, %283 : vector<16x128xf32>
    %cst_264 = arith.constant 0.000000e+00 : f32
    %285 = vector.broadcast %cst_264 : f32 to vector<16x128xf32>
    %286 = arith.maximumf %284, %285 : vector<16x128xf32>
    %c1_265 = arith.constant 1 : index
    %c0_266 = arith.constant 0 : index
    %c0_267 = arith.constant 0 : index
    %287 = vector.load %arg23[%c1_265, %c0_266, %c0_267] : memref<2x16x16xf32, #tpu.memory_space<vmem>>, vector<1x16x16xf32>
    %288 = vector.shape_cast %287 : vector<1x16x16xf32> to vector<16x16xf32>
    %cst_268 = arith.constant dense<0.000000e+00> : vector<16x128xf32>
    %289 = tpu.matmul %288, %286, %cst_268 {dimension_numbers = #tpu.dot_dimension_numbers<[1], [0], [0], [1], [0, 0, 1, 1], [], []>} : vector<16x16xf32>, vector<16x128xf32>, vector<16x128xf32> -> vector<16x128xf32>
    %290 = arith.addf %258, %289 : vector<16x128xf32>
    %c1_269 = arith.constant 1 : index
    %c0_270 = arith.constant 0 : index
    %c0_271 = arith.constant 0 : index
    %291 = vector.load %arg24[%c1_269, %c0_270, %c0_271] : memref<2x16x1xf32, #tpu.memory_space<vmem>>, vector<1x16x1xf32>
    %292 = vector.shape_cast %291 : vector<1x16x1xf32> to vector<16x1xf32>
    %293 = vector.broadcast %292 : vector<16x1xf32> to vector<16x128xf32>
    %294 = arith.addf %290, %293 : vector<16x128xf32>
    %c0_272 = arith.constant 0 : index
    %c0_273 = arith.constant 0 : index
    %295 = vector.load %arg25[%c0_272, %c0_273] : memref<8x16xf32, #tpu.memory_space<vmem>>, vector<8x16xf32>
    %cst_274 = arith.constant dense<0.000000e+00> : vector<8x128xf32>
    %296 = tpu.matmul %295, %294, %cst_274 {dimension_numbers = #tpu.dot_dimension_numbers<[1], [0], [0], [1], [0, 0, 1, 1], [], []>} : vector<8x16xf32>, vector<16x128xf32>, vector<8x128xf32> -> vector<8x128xf32>
    %c0_275 = arith.constant 0 : index
    %c0_276 = arith.constant 0 : index
    %297 = vector.load %arg26[%c0_275, %c0_276] : memref<8x1xf32, #tpu.memory_space<vmem>>, vector<8x1xf32>
    %298 = vector.broadcast %297 : vector<8x1xf32> to vector<8x128xf32>
    %299 = arith.addf %296, %298 : vector<8x128xf32>
    %c0_277 = arith.constant 0 : index
    %c0_278 = arith.constant 0 : index
    %c0_279 = arith.constant 0 : index
    %300 = vector.load %arg29[%c0_277, %c0_278, %c0_279] : memref<1x8x128xf32, #tpu.memory_space<vmem>>, vector<1x8x128xf32>
    %301 = vector.shape_cast %300 : vector<1x8x128xf32> to vector<8x128xf32>
    %302 = vector.shape_cast %299 : vector<8x128xf32> to vector<1x8x128xf32>
    tpu.vector_store %arg29[%c0_277, %c0_278, %c0_279], %302 {strides = array<i32>} : memref<1x8x128xf32, #tpu.memory_space<vmem>>, vector<1x8x128xf32>,
    %c0_280 = arith.constant 0 : index
    %c0_281 = arith.constant 0 : index
    %c0_282 = arith.constant 0 : index
    %303 = vector.load %arg32[%c0_280, %c0_281, %c0_282] : memref<1x16x128xf32, #tpu.memory_space<vmem>>, vector<1x16x128xf32>
    %304 = vector.shape_cast %303 : vector<1x16x128xf32> to vector<16x128xf32>
    %305 = vector.shape_cast %294 : vector<16x128xf32> to vector<1x16x128xf32>
    tpu.vector_store %arg32[%c0_280, %c0_281, %c0_282], %305 {strides = array<i32>} : memref<1x16x128xf32, #tpu.memory_space<vmem>>, vector<1x16x128xf32>,
    return
  }
  func.func @transform_0(%arg0: i32, %arg1: i32) -> (i32, i32, i32) {
    %c0_i32 = arith.constant 0 : i32
    %c0_i32_0 = arith.constant 0 : i32
    return %arg0, %c0_i32, %arg1 : i32, i32, i32
  }
  func.func @transform_1(%arg0: i32, %arg1: i32) -> (i32, i32) {
    %c0_i32 = arith.constant 0 : i32
    %c0_i32_0 = arith.constant 0 : i32
    %c0_i32_1 = arith.constant 0 : i32
    return %c0_i32, %c0_i32_0 : i32, i32
  }
  func.func @transform_2(%arg0: i32, %arg1: i32) -> (i32, i32) {
    %c0_i32 = arith.constant 0 : i32
    %c0_i32_0 = arith.constant 0 : i32
    %c0_i32_1 = arith.constant 0 : i32
    return %c0_i32, %c0_i32_0 : i32, i32
  }
  func.func @transform_3(%arg0: i32, %arg1: i32) -> (i32, i32, i32) {
    %c0_i32 = arith.constant 0 : i32
    %c0_i32_0 = arith.constant 0 : i32
    %c0_i32_1 = arith.constant 0 : i32
    %c0_i32_2 = arith.constant 0 : i32
    return %c0_i32, %c0_i32_0, %c0_i32_1 : i32, i32, i32
  }
  func.func @transform_4(%arg0: i32, %arg1: i32) -> (i32, i32, i32) {
    %c0_i32 = arith.constant 0 : i32
    %c0_i32_0 = arith.constant 0 : i32
    %c0_i32_1 = arith.constant 0 : i32
    %c0_i32_2 = arith.constant 0 : i32
    return %c0_i32, %c0_i32_0, %c0_i32_1 : i32, i32, i32
  }
  func.func @transform_5(%arg0: i32, %arg1: i32) -> (i32, i32, i32) {
    %c0_i32 = arith.constant 0 : i32
    %c0_i32_0 = arith.constant 0 : i32
    %c0_i32_1 = arith.constant 0 : i32
    %c0_i32_2 = arith.constant 0 : i32
    return %c0_i32, %c0_i32_0, %c0_i32_1 : i32, i32, i32
  }
  func.func @transform_6(%arg0: i32, %arg1: i32) -> (i32, i32, i32) {
    %c0_i32 = arith.constant 0 : i32
    %c0_i32_0 = arith.constant 0 : i32
    %c0_i32_1 = arith.constant 0 : i32
    %c0_i32_2 = arith.constant 0 : i32
    return %c0_i32, %c0_i32_0, %c0_i32_1 : i32, i32, i32
  }
  func.func @transform_7(%arg0: i32, %arg1: i32) -> (i32, i32) {
    %c0_i32 = arith.constant 0 : i32
    %c0_i32_0 = arith.constant 0 : i32
    %c0_i32_1 = arith.constant 0 : i32
    return %c0_i32, %c0_i32_0 : i32, i32
  }
  func.func @transform_8(%arg0: i32, %arg1: i32) -> (i32, i32) {
    %c0_i32 = arith.constant 0 : i32
    %c0_i32_0 = arith.constant 0 : i32
    %c0_i32_1 = arith.constant 0 : i32
    return %c0_i32, %c0_i32_0 : i32, i32
  }
  func.func @transform_9(%arg0: i32, %arg1: i32) -> (i32, i32) {
    %c0_i32 = arith.constant 0 : i32
    %c0_i32_0 = arith.constant 0 : i32
    %c0_i32_1 = arith.constant 0 : i32
    return %c0_i32, %c0_i32_0 : i32, i32
  }
  func.func @transform_10(%arg0: i32, %arg1: i32) -> (i32, i32) {
    %c0_i32 = arith.constant 0 : i32
    %c0_i32_0 = arith.constant 0 : i32
    %c0_i32_1 = arith.constant 0 : i32
    return %c0_i32, %c0_i32_0 : i32, i32
  }
  func.func @transform_11(%arg0: i32, %arg1: i32) -> (i32, i32, i32) {
    %c0_i32 = arith.constant 0 : i32
    %c0_i32_0 = arith.constant 0 : i32
    %c0_i32_1 = arith.constant 0 : i32
    %c0_i32_2 = arith.constant 0 : i32
    return %c0_i32, %c0_i32_0, %c0_i32_1 : i32, i32, i32
  }
  func.func @transform_12(%arg0: i32, %arg1: i32) -> (i32, i32, i32) {
    %c0_i32 = arith.constant 0 : i32
    %c0_i32_0 = arith.constant 0 : i32
    %c0_i32_1 = arith.constant 0 : i32
    %c0_i32_2 = arith.constant 0 : i32
    return %c0_i32, %c0_i32_0, %c0_i32_1 : i32, i32, i32
  }
  func.func @transform_13(%arg0: i32, %arg1: i32) -> (i32, i32, i32) {
    %c0_i32 = arith.constant 0 : i32
    %c0_i32_0 = arith.constant 0 : i32
    %c0_i32_1 = arith.constant 0 : i32
    %c0_i32_2 = arith.constant 0 : i32
    return %c0_i32, %c0_i32_0, %c0_i32_1 : i32, i32, i32
  }
  func.func @transform_14(%arg0: i32, %arg1: i32) -> (i32, i32, i32) {
    %c0_i32 = arith.constant 0 : i32
    %c0_i32_0 = arith.constant 0 : i32
    %c0_i32_1 = arith.constant 0 : i32
    %c0_i32_2 = arith.constant 0 : i32
    return %c0_i32, %c0_i32_0, %c0_i32_1 : i32, i32, i32
  }
  func.func @transform_15(%arg0: i32, %arg1: i32) -> (i32, i32) {
    %c0_i32 = arith.constant 0 : i32
    %c0_i32_0 = arith.constant 0 : i32
    %c0_i32_1 = arith.constant 0 : i32
    return %c0_i32, %c0_i32_0 : i32, i32
  }
  func.func @transform_16(%arg0: i32, %arg1: i32) -> (i32, i32) {
    %c0_i32 = arith.constant 0 : i32
    %c0_i32_0 = arith.constant 0 : i32
    %c0_i32_1 = arith.constant 0 : i32
    return %c0_i32, %c0_i32_0 : i32, i32
  }
  func.func @transform_17(%arg0: i32, %arg1: i32) -> (i32, i32) {
    %c0_i32 = arith.constant 0 : i32
    %c0_i32_0 = arith.constant 0 : i32
    %c0_i32_1 = arith.constant 0 : i32
    return %c0_i32, %c0_i32_0 : i32, i32
  }
  func.func @transform_18(%arg0: i32, %arg1: i32) -> (i32, i32) {
    %c0_i32 = arith.constant 0 : i32
    %c0_i32_0 = arith.constant 0 : i32
    %c0_i32_1 = arith.constant 0 : i32
    return %c0_i32, %c0_i32_0 : i32, i32
  }
  func.func @transform_19(%arg0: i32, %arg1: i32) -> (i32, i32, i32) {
    %c0_i32 = arith.constant 0 : i32
    %c0_i32_0 = arith.constant 0 : i32
    %c0_i32_1 = arith.constant 0 : i32
    %c0_i32_2 = arith.constant 0 : i32
    return %c0_i32, %c0_i32_0, %c0_i32_1 : i32, i32, i32
  }
  func.func @transform_20(%arg0: i32, %arg1: i32) -> (i32, i32, i32) {
    %c0_i32 = arith.constant 0 : i32
    %c0_i32_0 = arith.constant 0 : i32
    %c0_i32_1 = arith.constant 0 : i32
    %c0_i32_2 = arith.constant 0 : i32
    return %c0_i32, %c0_i32_0, %c0_i32_1 : i32, i32, i32
  }
  func.func @transform_21(%arg0: i32, %arg1: i32) -> (i32, i32, i32) {
    %c0_i32 = arith.constant 0 : i32
    %c0_i32_0 = arith.constant 0 : i32
    %c0_i32_1 = arith.constant 0 : i32
    %c0_i32_2 = arith.constant 0 : i32
    return %c0_i32, %c0_i32_0, %c0_i32_1 : i32, i32, i32
  }
  func.func @transform_22(%arg0: i32, %arg1: i32) -> (i32, i32, i32) {
    %c0_i32 = arith.constant 0 : i32
    %c0_i32_0 = arith.constant 0 : i32
    %c0_i32_1 = arith.constant 0 : i32
    %c0_i32_2 = arith.constant 0 : i32
    return %c0_i32, %c0_i32_0, %c0_i32_1 : i32, i32, i32
  }
  func.func @transform_23(%arg0: i32, %arg1: i32) -> (i32, i32) {
    %c0_i32 = arith.constant 0 : i32
    %c0_i32_0 = arith.constant 0 : i32
    %c0_i32_1 = arith.constant 0 : i32
    return %c0_i32, %c0_i32_0 : i32, i32
  }
  func.func @transform_24(%arg0: i32, %arg1: i32) -> (i32, i32) {
    %c0_i32 = arith.constant 0 : i32
    %c0_i32_0 = arith.constant 0 : i32
    %c0_i32_1 = arith.constant 0 : i32
    return %c0_i32, %c0_i32_0 : i32, i32
  }
  func.func @transform_25(%arg0: i32, %arg1: i32) -> (i32, i32, i32) {
    %c0_i32 = arith.constant 0 : i32
    %c0_i32_0 = arith.constant 0 : i32
    return %arg0, %c0_i32, %arg1 : i32, i32, i32
  }
  func.func @transform_26(%arg0: i32, %arg1: i32) -> (i32, i32, i32) {
    %c0_i32 = arith.constant 0 : i32
    %c0_i32_0 = arith.constant 0 : i32
    return %arg0, %c0_i32, %arg1 : i32, i32, i32
  }
  func.func @transform_27(%arg0: i32, %arg1: i32) -> (i32, i32, i32) {
    %c0_i32 = arith.constant 0 : i32
    %c0_i32_0 = arith.constant 0 : i32
    return %arg0, %c0_i32, %arg1 : i32, i32, i32
  }
  func.func @transform_28(%arg0: i32, %arg1: i32) -> (i32, i32, i32) {
    %c0_i32 = arith.constant 0 : i32
    %c0_i32_0 = arith.constant 0 : i32
    return %arg0, %c0_i32, %arg1 : i32, i32, i32
  }
  func.func @transform_29(%arg0: i32, %arg1: i32) -> (i32, i32, i32) {
    %c0_i32 = arith.constant 0 : i32
    %c0_i32_0 = arith.constant 0 : i32
    return %arg0, %c0_i32, %arg1 : i32, i32, i32
  }
  func.func @transform_30(%arg0: i32, %arg1: i32) -> (i32, i32, i32) {
    %c0_i32 = arith.constant 0 : i32
    %c0_i32_0 = arith.constant 0 : i32
    return %arg0, %c0_i32, %arg1 : i32, i32, i32
  }
}

</mosaic_0001>

<llo_original>
// kernel: tpu_custom_call.1
$region0: #{tpu_custom_call.1}
  #allocation0 [shape = 'u32[]', space=smem, size = 0x4, offset = 0x4, fixed_abs, tag = 'smem constant byte address 0x4 - core index']
  #allocation1 [shape = 'u32[72,128]{1,0:T(1,128)}', space=vmem, size = 0x9000, scoped, tag = 'internal scratch']
  #allocation2 [shape = 'f32[48,128]{1,0:T(8,128)}', space=vmem, size = 0x6000, scoped, tag = 'scratch operand']
  #allocation3 [shape = 'f32[7,16,128]{2,1,0:T(8,128)}', space=vmem, size = 0xe000, scoped, tag = 'scratch operand']
  %s0 = inlined_call_operand.smem [shape: u32[31], index: -1, kind: input, shape index: {}]
  %s1 = sld [smem:[%s0]]
  %s2 = scalar_lea.smem %s0, 1
  %s3 = sld [smem:[%s2]]
  %s4 = scalar_lea.smem %s0, 2
  %s5 = sld [smem:[%s4]]
  %s6 = scalar_lea.smem %s0, 3
  %s7 = sld [smem:[%s6]]
  %s8 = scalar_lea.smem %s0, 4
  %s9 = sld [smem:[%s8]]
  %s10 = scalar_lea.smem %s0, 5
  %s11 = sld [smem:[%s10]]
  %s12 = scalar_lea.smem %s0, 6
  %s13 = sld [smem:[%s12]]
  %s14 = scalar_lea.smem %s0, 7
  %s15 = sld [smem:[%s14]]
  %s16 = scalar_lea.smem %s0, 8
  %s17 = sld [smem:[%s16]]
  %s18 = scalar_lea.smem %s0, 9
  %s19 = sld [smem:[%s18]]
  %s20 = scalar_lea.smem %s0, 10
  %s21 = sld [smem:[%s20]]
  %s22 = scalar_lea.smem %s0, 11
  %s23 = sld [smem:[%s22]]
  %s24 = scalar_lea.smem %s0, 12
  %s25 = sld [smem:[%s24]]
  %s26 = scalar_lea.smem %s0, 13
  %s27 = sld [smem:[%s26]]
  %s28 = scalar_lea.smem %s0, 14
  %s29 = sld [smem:[%s28]]
  %s30 = scalar_lea.smem %s0, 15
  %s31 = sld [smem:[%s30]]
  %s32 = scalar_lea.smem %s0, 16
  %s33 = sld [smem:[%s32]]
  %s34 = scalar_lea.smem %s0, 17
  %s35 = sld [smem:[%s34]]
  %s36 = scalar_lea.smem %s0, 18
  %s37 = sld [smem:[%s36]]
  %s38 = scalar_lea.smem %s0, 19
  %s39 = sld [smem:[%s38]]
  %s40 = scalar_lea.smem %s0, 20
  %s41 = sld [smem:[%s40]]
  %s42 = scalar_lea.smem %s0, 21
  %s43 = sld [smem:[%s42]]
  %s44 = scalar_lea.smem %s0, 22
  %s45 = sld [smem:[%s44]]
  %s46 = scalar_lea.smem %s0, 23
  %s47 = sld [smem:[%s46]]
  %s48 = scalar_lea.smem %s0, 24
  %s49 = sld [smem:[%s48]]
  %s50 = scalar_lea.smem %s0, 25
  %s51 = sld [smem:[%s50]]
  %s52 = scalar_lea.smem %s0, 26
  %s53 = sld [smem:[%s52]]
  %s54 = scalar_lea.smem %s0, 27
  %s55 = sld [smem:[%s54]]
  %s56 = scalar_lea.smem %s0, 28
  %s57 = sld [smem:[%s56]]
  %s58 = scalar_lea.smem %s0, 29
  %s59 = sld [smem:[%s58]]
  %s60 = scalar_lea.smem %s0, 30
  %s61 = sld [smem:[%s60]]
  %62 = xla_tuple %s51, %s53, %s55, %s57, %s59, %s61
  %s63 = sld [smem:[#allocation0]]
  $region215: #{tpu_custom_call.1} parent=0
    _
  %s65 = ssub.s32 1, %s63
  %s66 = scalar_select 0, %s65, %s63
  $region1: #{tpu_custom_call.1} parent=0
    #allocation4 [shape = 'u8[16384]{0}', space=vmem, size = 0x4000, scoped, tag = 'input window, operand 0']
    #allocation5 [shape = 'u8[8192]{0}', space=vmem, size = 0x2000, scoped, tag = 'output window, operand 0']
    #allocation6 [shape = 's32[2]{0}', space=sflag, size = 0x8, scoped, tag = 'scoped memory for tpu_custom_call.1']
    #allocation7 [shape = 'u8[8192]{0}', space=vmem, size = 0x2000, scoped, tag = 'output window, operand 1']
    #allocation8 [shape = 's32[2]{0}', space=sflag, size = 0x8, scoped, tag = 'scoped memory for tpu_custom_call.1']
    #allocation9 [shape = 'u8[8192]{0}', space=vmem, size = 0x2000, scoped, tag = 'output window, operand 2']
    #allocation10 [shape = 'u8[16384]{0}', space=vmem, size = 0x4000, scoped, tag = 'output window, operand 3']
    #allocation11 [shape = 's32[2]{0}', space=sflag, size = 0x8, scoped, tag = 'scoped memory for tpu_custom_call.1']
    #allocation12 [shape = 'u8[16384]{0}', space=vmem, size = 0x4000, scoped, tag = 'output window, operand 4']
    #allocation13 [shape = 'u8[16384]{0}', space=vmem, size = 0x4000, scoped, tag = 'output window, operand 5']
    #allocation14 [shape = 's32[2]{0}', space=sflag, size = 0x8, scoped, tag = 'scoped memory for tpu_custom_call.1']
    %67 = vsyncpa [#allocation6], 0
    %s68 = scalar_lea.sflag [#allocation6], 1
    %69 = vsyncpa %s68, 0
    %70 = vsyncpa [#allocation8], 0
    %s71 = scalar_lea.sflag [#allocation8], 1
    %72 = vsyncpa %s71, 0
    %73 = vsyncpa [#allocation11], 0
    %s74 = scalar_lea.sflag [#allocation11], 1
    %75 = vsyncpa %s74, 0
    %76 = vsyncpa [#allocation14], 0
    %s77 = scalar_lea.sflag [#allocation14], 1
    %78 = vsyncpa %s77, 0
    loop: start=0, step=1, limit=6
    $region2: #{tpu_custom_call.1} parent=1 // loop_pre_header
      _
    $region3: #{tpu_custom_call.1} parent=1 // loop_header
      %s80 = sphi 0, %s84
      %p81 = scmp.ge.s32.totalorder %s80, 6
      %s87 = sphi 0, %s99
      %s88 = sphi 0, %s95
      %s89 = sphi 0, %s87
      %s90 = sphi 0, %s88
      %s91 = sphi 0, %s89
      %s92 = sphi 0, %s90
      %s104 = sphi 0, %s106
      %s107 = sphi 0, %s104
      %s108 = sphi 0, %s107
      %s124 = sphi 0, %s108
      %s128 = sphi 0, %s128
      %s130 = sphi 0, %s128
      %s131 = sphi 0, %s130
      %s145 = sphi 0, %s131
      %s149 = sphi 0, %s149
      %s151 = sphi 0, %s149
      %s152 = sphi 0, %s151
      %s166 = sphi 0, %s152
      %s170 = sphi 0, %s170
      %s172 = sphi 0, %s170
      %s173 = sphi 0, %s172
      %s187 = sphi 0, %s173
      %s191 = sphi 0, %s191
      %s193 = sphi 0, %s191
      %s194 = sphi 0, %s193
      %s208 = sphi 0, %s194
      %s212 = sphi 0, %s212
      %s214 = sphi 0, %s212
      %s215 = sphi 0, %s214
      %s229 = sphi 0, %s215
      %s233 = sphi 0, %s233
      %s235 = sphi 0, %s233
      %s236 = sphi 0, %s235
      %s250 = sphi 0, %s236
      %s254 = sphi 0, %s254
      %s256 = sphi 0, %s254
      %s257 = sphi 0, %s256
      %s271 = sphi 0, %s257
      %s275 = sphi 0, %s275
      %s277 = sphi 0, %s275
      %s278 = sphi 0, %s277
      %s292 = sphi 0, %s278
      %s296 = sphi 0, %s296
      %s298 = sphi 0, %s296
      %s299 = sphi 0, %s298
      %s313 = sphi 0, %s299
      %s317 = sphi 0, %s317
      %s319 = sphi 0, %s317
      %s320 = sphi 0, %s319
      %s334 = sphi 0, %s320
      %s338 = sphi 0, %s338
      %s340 = sphi 0, %s338
      %s341 = sphi 0, %s340
      %s355 = sphi 0, %s341
      %s359 = sphi 0, %s359
      %s361 = sphi 0, %s359
      %s362 = sphi 0, %s361
      %s376 = sphi 0, %s362
      %s380 = sphi 0, %s380
      %s382 = sphi 0, %s380
      %s383 = sphi 0, %s382
      %s397 = sphi 0, %s383
      %s401 = sphi 0, %s401
      %s403 = sphi 0, %s401
      %s404 = sphi 0, %s403
      %s418 = sphi 0, %s404
      %s422 = sphi 0, %s422
      %s424 = sphi 0, %s422
      %s425 = sphi 0, %s424
      %s439 = sphi 0, %s425
      %s443 = sphi 0, %s443
      %s445 = sphi 0, %s443
      %s446 = sphi 0, %s445
      %s460 = sphi 0, %s446
      %s464 = sphi 0, %s464
      %s466 = sphi 0, %s464
      %s467 = sphi 0, %s466
      %s481 = sphi 0, %s467
      %s485 = sphi 0, %s485
      %s487 = sphi 0, %s485
      %s488 = sphi 0, %s487
      %s502 = sphi 0, %s488
      %s506 = sphi 0, %s506
      %s508 = sphi 0, %s506
      %s509 = sphi 0, %s508
      %s523 = sphi 0, %s509
      %s527 = sphi 0, %s527
      %s529 = sphi 0, %s527
      %s530 = sphi 0, %s529
      %s544 = sphi 0, %s530
      %s548 = sphi 0, %s548
      %s550 = sphi 0, %s548
      %s551 = sphi 0, %s550
      %s565 = sphi 0, %s551
      %s569 = sphi 0, %s569
      %s571 = sphi 0, %s569
      %s572 = sphi 0, %s571
      %s586 = sphi 0, %s572
      %s590 = sphi 0, %s590
      %s592 = sphi 0, %s590
      %s593 = sphi 0, %s592
      %s607 = sphi 0, %s593
      %s611 = sphi 0, %s611
      %s613 = sphi 0, %s611
      %s614 = sphi 0, %s613
      %s628 = sphi 0, %s614
      %s636 = sphi 0, %s638
      %s639 = sphi 0, %s636
      %s640 = sphi 0, %s639
      %s656 = sphi 0, %s640
      %s664 = sphi 0, %s666
      %s667 = sphi 0, %s664
      %s668 = sphi 0, %s667
      %s684 = sphi 0, %s668
      %s692 = sphi 0, %s694
      %s695 = sphi 0, %s692
      %s696 = sphi 0, %s695
      %s712 = sphi 0, %s696
      %s720 = sphi 0, %s722
      %s723 = sphi 0, %s720
      %s724 = sphi 0, %s723
      %s740 = sphi 0, %s724
      %s748 = sphi 0, %s750
      %s751 = sphi 0, %s748
      %s752 = sphi 0, %s751
      %s768 = sphi 0, %s752
      %s776 = sphi 0, %s778
      %s779 = sphi 0, %s776
      %s780 = sphi 0, %s779
      %s796 = sphi 0, %s780
    $region4: #{tpu_custom_call.1} parent=1 // loop_header_branch
      %83 = sbr.rel (%p81) target = $region8
    $region5: #{tpu_custom_call.1} parent=1 // loop_body
      %s85 = ssub.s32 %s80, 1
      %s86 = ssub.s32 %s80, 2
      %s93 = sadd.s32 1, %s88
      %p94 = scmp.ge.s32.totalorder %s93, 2
      %s95 = scalar_select %p94, 0, %s93
      %s96 = sadd.s32 1, %s87
      %s97 = scalar_select %p94, %s96, %s87
      %p98 = scmp.ge.s32.totalorder %s97, 2
      %s99 = scalar_select %p98, 0, %s97
      %s100 = ssub.s32 %s87, %s99
      %s101 = ssub.s32 %s88, %s95
      %s102 = sor.u32 %s100, %s101
      %p103 = scmp.eq.s32.totalorder %s102, 0
      %s105 = sadd.s32 %s104, 1
      %s106 = scalar_select %p103, %s104, %s105
      %p109 = pneg %p103
      %p110 = scmp.eq.s32.totalorder %s80, 3
      %p111 = por %p109, %p110
      %p112 = scmp.ne.s32.totalorder %s104, %s107
      %p113 = scmp.eq.s32.totalorder %s80, 0
      %p114 = por %p112, %p113
      %p115 = scmp.ne.s32.totalorder %s104, %s107
      %p116 = scmp.eq.s32.totalorder %s85, 3
      %p117 = por %p115, %p116
      %p118 = scmp.ne.s32.totalorder %s107, %s108
      %p119 = scmp.eq.s32.totalorder %s85, 0
      %p120 = por %p118, %p119
      %p121 = scmp.ne.s32.totalorder %s107, %s108
      %p122 = scmp.eq.s32.totalorder %s86, 3
      %p123 = por %p121, %p122
      %p125 = scmp.ne.s32.totalorder %s108, %s124
      %p126 = scmp.eq.s32.totalorder %s86, 0
      %p127 = por %p125, %p126
      %s129 = sadd.s32 %s128, 1
      %p132 = scmp.eq.s32.totalorder %s80, 3
      %p133 = scmp.ne.s32.totalorder %s128, %s130
      %p134 = scmp.eq.s32.totalorder %s80, 0
      %p135 = por %p133, %p134
      %p136 = scmp.ne.s32.totalorder %s128, %s130
      %p137 = scmp.eq.s32.totalorder %s85, 3
      %p138 = por %p136, %p137
      %p139 = scmp.ne.s32.totalorder %s130, %s131
      %p140 = scmp.eq.s32.totalorder %s85, 0
      %p141 = por %p139, %p140
      %p142 = scmp.ne.s32.totalorder %s130, %s131
      %p143 = scmp.eq.s32.totalorder %s86, 3
      %p144 = por %p142, %p143
      %p146 = scmp.ne.s32.totalorder %s131, %s145
      %p147 = scmp.eq.s32.totalorder %s86, 0
      %p148 = por %p146, %p147
      %s150 = sadd.s32 %s149, 1
      %p153 = scmp.eq.s32.totalorder %s80, 3
      %p154 = scmp.ne.s32.totalorder %s149, %s151
      %p155 = scmp.eq.s32.totalorder %s80, 0
      %p156 = por %p154, %p155
      %p157 = scmp.ne.s32.totalorder %s149, %s151
      %p158 = scmp.eq.s32.totalorder %s85, 3
      %p159 = por %p157, %p158
      %p160 = scmp.ne.s32.totalorder %s151, %s152
      %p161 = scmp.eq.s32.totalorder %s85, 0
      %p162 = por %p160, %p161
      %p163 = scmp.ne.s32.totalorder %s151, %s152
      %p164 = scmp.eq.s32.totalorder %s86, 3
      %p165 = por %p163, %p164
      %p167 = scmp.ne.s32.totalorder %s152, %s166
      %p168 = scmp.eq.s32.totalorder %s86, 0
      %p169 = por %p167, %p168
      %s171 = sadd.s32 %s170, 1
      %p174 = scmp.eq.s32.totalorder %s80, 3
      %p175 = scmp.ne.s32.totalorder %s170, %s172
      %p176 = scmp.eq.s32.totalorder %s80, 0
      %p177 = por %p175, %p176
      %p178 = scmp.ne.s32.totalorder %s170, %s172
      %p179 = scmp.eq.s32.totalorder %s85, 3
      %p180 = por %p178, %p179
      %p181 = scmp.ne.s32.totalorder %s172, %s173
      %p182 = scmp.eq.s32.totalorder %s85, 0
      %p183 = por %p181, %p182
      %p184 = scmp.ne.s32.totalorder %s172, %s173
      %p185 = scmp.eq.s32.totalorder %s86, 3
      %p186 = por %p184, %p185
      %p188 = scmp.ne.s32.totalorder %s173, %s187
      %p189 = scmp.eq.s32.totalorder %s86, 0
      %p190 = por %p188, %p189
      %s192 = sadd.s32 %s191, 1
      %p195 = scmp.eq.s32.totalorder %s80, 3
      %p196 = scmp.ne.s32.totalorder %s191, %s193
      %p197 = scmp.eq.s32.totalorder %s80, 0
      %p198 = por %p196, %p197
      %p199 = scmp.ne.s32.totalorder %s191, %s193
      %p200 = scmp.eq.s32.totalorder %s85, 3
      %p201 = por %p199, %p200
      %p202 = scmp.ne.s32.totalorder %s193, %s194
      %p203 = scmp.eq.s32.totalorder %s85, 0
      %p204 = por %p202, %p203
      %p205 = scmp.ne.s32.totalorder %s193, %s194
      %p206 = scmp.eq.s32.totalorder %s86, 3
      %p207 = por %p205, %p206
      %p209 = scmp.ne.s32.totalorder %s194, %s208
      %p210 = scmp.eq.s32.totalorder %s86, 0
      %p211 = por %p209, %p210
      %s213 = sadd.s32 %s212, 1
      %p216 = scmp.eq.s32.totalorder %s80, 3
      %p217 = scmp.ne.s32.totalorder %s212, %s214
      %p218 = scmp.eq.s32.totalorder %s80, 0
      %p219 = por %p217, %p218
      %p220 = scmp.ne.s32.totalorder %s212, %s214
      %p221 = scmp.eq.s32.totalorder %s85, 3
      %p222 = por %p220, %p221
      %p223 = scmp.ne.s32.totalorder %s214, %s215
      %p224 = scmp.eq.s32.totalorder %s85, 0
      %p225 = por %p223, %p224
      %p226 = scmp.ne.s32.totalorder %s214, %s215
      %p227 = scmp.eq.s32.totalorder %s86, 3
      %p228 = por %p226, %p227
      %p230 = scmp.ne.s32.totalorder %s215, %s229
      %p231 = scmp.eq.s32.totalorder %s86, 0
      %p232 = por %p230, %p231
      %s234 = sadd.s32 %s233, 1
      %p237 = scmp.eq.s32.totalorder %s80, 3
      %p238 = scmp.ne.s32.totalorder %s233, %s235
      %p239 = scmp.eq.s32.totalorder %s80, 0
      %p240 = por %p238, %p239
      %p241 = scmp.ne.s32.totalorder %s233, %s235
      %p242 = scmp.eq.s32.totalorder %s85, 3
      %p243 = por %p241, %p242
      %p244 = scmp.ne.s32.totalorder %s235, %s236
      %p245 = scmp.eq.s32.totalorder %s85, 0
      %p246 = por %p244, %p245
      %p247 = scmp.ne.s32.totalorder %s235, %s236
      %p248 = scmp.eq.s32.totalorder %s86, 3
      %p249 = por %p247, %p248
      %p251 = scmp.ne.s32.totalorder %s236, %s250
      %p252 = scmp.eq.s32.totalorder %s86, 0
      %p253 = por %p251, %p252
      %s255 = sadd.s32 %s254, 1
      %p258 = scmp.eq.s32.totalorder %s80, 3
      %p259 = scmp.ne.s32.totalorder %s254, %s256
      %p260 = scmp.eq.s32.totalorder %s80, 0
      %p261 = por %p259, %p260
      %p262 = scmp.ne.s32.totalorder %s254, %s256
      %p263 = scmp.eq.s32.totalorder %s85, 3
      %p264 = por %p262, %p263
      %p265 = scmp.ne.s32.totalorder %s256, %s257
      %p266 = scmp.eq.s32.totalorder %s85, 0
      %p267 = por %p265, %p266
      %p268 = scmp.ne.s32.totalorder %s256, %s257
      %p269 = scmp.eq.s32.totalorder %s86, 3
      %p270 = por %p268, %p269
      %p272 = scmp.ne.s32.totalorder %s257, %s271
      %p273 = scmp.eq.s32.totalorder %s86, 0
      %p274 = por %p272, %p273
      %s276 = sadd.s32 %s275, 1
      %p279 = scmp.eq.s32.totalorder %s80, 3
      %p280 = scmp.ne.s32.totalorder %s275, %s277
      %p281 = scmp.eq.s32.totalorder %s80, 0
      %p282 = por %p280, %p281
      %p283 = scmp.ne.s32.totalorder %s275, %s277
      %p284 = scmp.eq.s32.totalorder %s85, 3
      %p285 = por %p283, %p284
      %p286 = scmp.ne.s32.totalorder %s277, %s278
      %p287 = scmp.eq.s32.totalorder %s85, 0
      %p288 = por %p286, %p287
      %p289 = scmp.ne.s32.totalorder %s277, %s278
      %p290 = scmp.eq.s32.totalorder %s86, 3
      %p291 = por %p289, %p290
      %p293 = scmp.ne.s32.totalorder %s278, %s292
      %p294 = scmp.eq.s32.totalorder %s86, 0
      %p295 = por %p293, %p294
      %s297 = sadd.s32 %s296, 1
      %p300 = scmp.eq.s32.totalorder %s80, 3
      %p301 = scmp.ne.s32.totalorder %s296, %s298
      %p302 = scmp.eq.s32.totalorder %s80, 0
      %p303 = por %p301, %p302
      %p304 = scmp.ne.s32.totalorder %s296, %s298
      %p305 = scmp.eq.s32.totalorder %s85, 3
      %p306 = por %p304, %p305
      %p307 = scmp.ne.s32.totalorder %s298, %s299
      %p308 = scmp.eq.s32.totalorder %s85, 0
      %p309 = por %p307, %p308
      %p310 = scmp.ne.s32.totalorder %s298, %s299
      %p311 = scmp.eq.s32.totalorder %s86, 3
      %p312 = por %p310, %p311
      %p314 = scmp.ne.s32.totalorder %s299, %s313
      %p315 = scmp.eq.s32.totalorder %s86, 0
      %p316 = por %p314, %p315
      %s318 = sadd.s32 %s317, 1
      %p321 = scmp.eq.s32.totalorder %s80, 3
      %p322 = scmp.ne.s32.totalorder %s317, %s319
      %p323 = scmp.eq.s32.totalorder %s80, 0
      %p324 = por %p322, %p323
      %p325 = scmp.ne.s32.totalorder %s317, %s319
      %p326 = scmp.eq.s32.totalorder %s85, 3
      %p327 = por %p325, %p326
      %p328 = scmp.ne.s32.totalorder %s319, %s320
      %p329 = scmp.eq.s32.totalorder %s85, 0
      %p330 = por %p328, %p329
      %p331 = scmp.ne.s32.totalorder %s319, %s320
      %p332 = scmp.eq.s32.totalorder %s86, 3
      %p333 = por %p331, %p332
      %p335 = scmp.ne.s32.totalorder %s320, %s334
      %p336 = scmp.eq.s32.totalorder %s86, 0
      %p337 = por %p335, %p336
      %s339 = sadd.s32 %s338, 1
      %p342 = scmp.eq.s32.totalorder %s80, 3
      %p343 = scmp.ne.s32.totalorder %s338, %s340
      %p344 = scmp.eq.s32.totalorder %s80, 0
      %p345 = por %p343, %p344
      %p346 = scmp.ne.s32.totalorder %s338, %s340
      %p347 = scmp.eq.s32.totalorder %s85, 3
      %p348 = por %p346, %p347
      %p349 = scmp.ne.s32.totalorder %s340, %s341
      %p350 = scmp.eq.s32.totalorder %s85, 0
      %p351 = por %p349, %p350
      %p352 = scmp.ne.s32.totalorder %s340, %s341
      %p353 = scmp.eq.s32.totalorder %s86, 3
      %p354 = por %p352, %p353
      %p356 = scmp.ne.s32.totalorder %s341, %s355
      %p357 = scmp.eq.s32.totalorder %s86, 0
      %p358 = por %p356, %p357
      %s360 = sadd.s32 %s359, 1
      %p363 = scmp.eq.s32.totalorder %s80, 3
      %p364 = scmp.ne.s32.totalorder %s359, %s361
      %p365 = scmp.eq.s32.totalorder %s80, 0
      %p366 = por %p364, %p365
      %p367 = scmp.ne.s32.totalorder %s359, %s361
      %p368 = scmp.eq.s32.totalorder %s85, 3
      %p369 = por %p367, %p368
      %p370 = scmp.ne.s32.totalorder %s361, %s362
      %p371 = scmp.eq.s32.totalorder %s85, 0
      %p372 = por %p370, %p371
      %p373 = scmp.ne.s32.totalorder %s361, %s362
      %p374 = scmp.eq.s32.totalorder %s86, 3
      %p375 = por %p373, %p374
      %p377 = scmp.ne.s32.totalorder %s362, %s376
      %p378 = scmp.eq.s32.totalorder %s86, 0
      %p379 = por %p377, %p378
      %s381 = sadd.s32 %s380, 1
      %p384 = scmp.eq.s32.totalorder %s80, 3
      %p385 = scmp.ne.s32.totalorder %s380, %s382
      %p386 = scmp.eq.s32.totalorder %s80, 0
      %p387 = por %p385, %p386
      %p388 = scmp.ne.s32.totalorder %s380, %s382
      %p389 = scmp.eq.s32.totalorder %s85, 3
      %p390 = por %p388, %p389
      %p391 = scmp.ne.s32.totalorder %s382, %s383
      %p392 = scmp.eq.s32.totalorder %s85, 0
      %p393 = por %p391, %p392
      %p394 = scmp.ne.s32.totalorder %s382, %s383
      %p395 = scmp.eq.s32.totalorder %s86, 3
      %p396 = por %p394, %p395
      %p398 = scmp.ne.s32.totalorder %s383, %s397
      %p399 = scmp.eq.s32.totalorder %s86, 0
      %p400 = por %p398, %p399
      %s402 = sadd.s32 %s401, 1
      %p405 = scmp.eq.s32.totalorder %s80, 3
      %p406 = scmp.ne.s32.totalorder %s401, %s403
      %p407 = scmp.eq.s32.totalorder %s80, 0
      %p408 = por %p406, %p407
      %p409 = scmp.ne.s32.totalorder %s401, %s403
      %p410 = scmp.eq.s32.totalorder %s85, 3
      %p411 = por %p409, %p410
      %p412 = scmp.ne.s32.totalorder %s403, %s404
      %p413 = scmp.eq.s32.totalorder %s85, 0
      %p414 = por %p412, %p413
      %p415 = scmp.ne.s32.totalorder %s403, %s404
      %p416 = scmp.eq.s32.totalorder %s86, 3
      %p417 = por %p415, %p416
      %p419 = scmp.ne.s32.totalorder %s404, %s418
      %p420 = scmp.eq.s32.totalorder %s86, 0
      %p421 = por %p419, %p420
      %s423 = sadd.s32 %s422, 1
      %p426 = scmp.eq.s32.totalorder %s80, 3
      %p427 = scmp.ne.s32.totalorder %s422, %s424
      %p428 = scmp.eq.s32.totalorder %s80, 0
      %p429 = por %p427, %p428
      %p430 = scmp.ne.s32.totalorder %s422, %s424
      %p431 = scmp.eq.s32.totalorder %s85, 3
      %p432 = por %p430, %p431
      %p433 = scmp.ne.s32.totalorder %s424, %s425
      %p434 = scmp.eq.s32.totalorder %s85, 0
      %p435 = por %p433, %p434
      %p436 = scmp.ne.s32.totalorder %s424, %s425
      %p437 = scmp.eq.s32.totalorder %s86, 3
      %p438 = por %p436, %p437
      %p440 = scmp.ne.s32.totalorder %s425, %s439
      %p441 = scmp.eq.s32.totalorder %s86, 0
      %p442 = por %p440, %p441
      %s444 = sadd.s32 %s443, 1
      %p447 = scmp.eq.s32.totalorder %s80, 3
      %p448 = scmp.ne.s32.totalorder %s443, %s445
      %p449 = scmp.eq.s32.totalorder %s80, 0
      %p450 = por %p448, %p449
      %p451 = scmp.ne.s32.totalorder %s443, %s445
      %p452 = scmp.eq.s32.totalorder %s85, 3
      %p453 = por %p451, %p452
      %p454 = scmp.ne.s32.totalorder %s445, %s446
      %p455 = scmp.eq.s32.totalorder %s85, 0
      %p456 = por %p454, %p455
      %p457 = scmp.ne.s32.totalorder %s445, %s446
      %p458 = scmp.eq.s32.totalorder %s86, 3
      %p459 = por %p457, %p458
      %p461 = scmp.ne.s32.totalorder %s446, %s460
      %p462 = scmp.eq.s32.totalorder %s86, 0
      %p463 = por %p461, %p462
      %s465 = sadd.s32 %s464, 1
      %p468 = scmp.eq.s32.totalorder %s80, 3
      %p469 = scmp.ne.s32.totalorder %s464, %s466
      %p470 = scmp.eq.s32.totalorder %s80, 0
      %p471 = por %p469, %p470
      %p472 = scmp.ne.s32.totalorder %s464, %s466
      %p473 = scmp.eq.s32.totalorder %s85, 3
      %p474 = por %p472, %p473
      %p475 = scmp.ne.s32.totalorder %s466, %s467
      %p476 = scmp.eq.s32.totalorder %s85, 0
      %p477 = por %p475, %p476
      %p478 = scmp.ne.s32.totalorder %s466, %s467
      %p479 = scmp.eq.s32.totalorder %s86, 3
      %p480 = por %p478, %p479
      %p482 = scmp.ne.s32.totalorder %s467, %s481
      %p483 = scmp.eq.s32.totalorder %s86, 0
      %p484 = por %p482, %p483
      %s486 = sadd.s32 %s485, 1
      %p489 = scmp.eq.s32.totalorder %s80, 3
      %p490 = scmp.ne.s32.totalorder %s485, %s487
      %p491 = scmp.eq.s32.totalorder %s80, 0
      %p492 = por %p490, %p491
      %p493 = scmp.ne.s32.totalorder %s485, %s487
      %p494 = scmp.eq.s32.totalorder %s85, 3
      %p495 = por %p493, %p494
      %p496 = scmp.ne.s32.totalorder %s487, %s488
      %p497 = scmp.eq.s32.totalorder %s85, 0
      %p498 = por %p496, %p497
      %p499 = scmp.ne.s32.totalorder %s487, %s488
      %p500 = scmp.eq.s32.totalorder %s86, 3
      %p501 = por %p499, %p500
      %p503 = scmp.ne.s32.totalorder %s488, %s502
      %p504 = scmp.eq.s32.totalorder %s86, 0
      %p505 = por %p503, %p504
      %s507 = sadd.s32 %s506, 1
      %p510 = scmp.eq.s32.totalorder %s80, 3
      %p511 = scmp.ne.s32.totalorder %s506, %s508
      %p512 = scmp.eq.s32.totalorder %s80, 0
      %p513 = por %p511, %p512
      %p514 = scmp.ne.s32.totalorder %s506, %s508
      %p515 = scmp.eq.s32.totalorder %s85, 3
      %p516 = por %p514, %p515
      %p517 = scmp.ne.s32.totalorder %s508, %s509
      %p518 = scmp.eq.s32.totalorder %s85, 0
      %p519 = por %p517, %p518
      %p520 = scmp.ne.s32.totalorder %s508, %s509
      %p521 = scmp.eq.s32.totalorder %s86, 3
      %p522 = por %p520, %p521
      %p524 = scmp.ne.s32.totalorder %s509, %s523
      %p525 = scmp.eq.s32.totalorder %s86, 0
      %p526 = por %p524, %p525
      %s528 = sadd.s32 %s527, 1
      %p531 = scmp.eq.s32.totalorder %s80, 3
      %p532 = scmp.ne.s32.totalorder %s527, %s529
      %p533 = scmp.eq.s32.totalorder %s80, 0
      %p534 = por %p532, %p533
      %p535 = scmp.ne.s32.totalorder %s527, %s529
      %p536 = scmp.eq.s32.totalorder %s85, 3
      %p537 = por %p535, %p536
      %p538 = scmp.ne.s32.totalorder %s529, %s530
      %p539 = scmp.eq.s32.totalorder %s85, 0
      %p540 = por %p538, %p539
      %p541 = scmp.ne.s32.totalorder %s529, %s530
      %p542 = scmp.eq.s32.totalorder %s86, 3
      %p543 = por %p541, %p542
      %p545 = scmp.ne.s32.totalorder %s530, %s544
      %p546 = scmp.eq.s32.totalorder %s86, 0
      %p547 = por %p545, %p546
      %s549 = sadd.s32 %s548, 1
      %p552 = scmp.eq.s32.totalorder %s80, 3
      %p553 = scmp.ne.s32.totalorder %s548, %s550
      %p554 = scmp.eq.s32.totalorder %s80, 0
      %p555 = por %p553, %p554
      %p556 = scmp.ne.s32.totalorder %s548, %s550
      %p557 = scmp.eq.s32.totalorder %s85, 3
      %p558 = por %p556, %p557
      %p559 = scmp.ne.s32.totalorder %s550, %s551
      %p560 = scmp.eq.s32.totalorder %s85, 0
      %p561 = por %p559, %p560
      %p562 = scmp.ne.s32.totalorder %s550, %s551
      %p563 = scmp.eq.s32.totalorder %s86, 3
      %p564 = por %p562, %p563
      %p566 = scmp.ne.s32.totalorder %s551, %s565
      %p567 = scmp.eq.s32.totalorder %s86, 0
      %p568 = por %p566, %p567
      %s570 = sadd.s32 %s569, 1
      %p573 = scmp.eq.s32.totalorder %s80, 3
      %p574 = scmp.ne.s32.totalorder %s569, %s571
      %p575 = scmp.eq.s32.totalorder %s80, 0
      %p576 = por %p574, %p575
      %p577 = scmp.ne.s32.totalorder %s569, %s571
      %p578 = scmp.eq.s32.totalorder %s85, 3
      %p579 = por %p577, %p578
      %p580 = scmp.ne.s32.totalorder %s571, %s572
      %p581 = scmp.eq.s32.totalorder %s85, 0
      %p582 = por %p580, %p581
      %p583 = scmp.ne.s32.totalorder %s571, %s572
      %p584 = scmp.eq.s32.totalorder %s86, 3
      %p585 = por %p583, %p584
      %p587 = scmp.ne.s32.totalorder %s572, %s586
      %p588 = scmp.eq.s32.totalorder %s86, 0
      %p589 = por %p587, %p588
      %s591 = sadd.s32 %s590, 1
      %p594 = scmp.eq.s32.totalorder %s80, 3
      %p595 = scmp.ne.s32.totalorder %s590, %s592
      %p596 = scmp.eq.s32.totalorder %s80, 0
      %p597 = por %p595, %p596
      %p598 = scmp.ne.s32.totalorder %s590, %s592
      %p599 = scmp.eq.s32.totalorder %s85, 3
      %p600 = por %p598, %p599
      %p601 = scmp.ne.s32.totalorder %s592, %s593
      %p602 = scmp.eq.s32.totalorder %s85, 0
      %p603 = por %p601, %p602
      %p604 = scmp.ne.s32.totalorder %s592, %s593
      %p605 = scmp.eq.s32.totalorder %s86, 3
      %p606 = por %p604, %p605
      %p608 = scmp.ne.s32.totalorder %s593, %s607
      %p609 = scmp.eq.s32.totalorder %s86, 0
      %p610 = por %p608, %p609
      %s612 = sadd.s32 %s611, 1
      %p615 = scmp.eq.s32.totalorder %s80, 3
      %p616 = scmp.ne.s32.totalorder %s611, %s613
      %p617 = scmp.eq.s32.totalorder %s80, 0
      %p618 = por %p616, %p617
      %p619 = scmp.ne.s32.totalorder %s611, %s613
      %p620 = scmp.eq.s32.totalorder %s85, 3
      %p621 = por %p619, %p620
      %p622 = scmp.ne.s32.totalorder %s613, %s614
      %p623 = scmp.eq.s32.totalorder %s85, 0
      %p624 = por %p622, %p623
      %p625 = scmp.ne.s32.totalorder %s613, %s614
      %p626 = scmp.eq.s32.totalorder %s86, 3
      %p627 = por %p625, %p626
      %p629 = scmp.ne.s32.totalorder %s614, %s628
      %p630 = scmp.eq.s32.totalorder %s86, 0
      %p631 = por %p629, %p630
      %s632 = ssub.s32 %s87, %s99
      %s633 = ssub.s32 %s88, %s95
      %s634 = sor.u32 %s632, %s633
      %p635 = scmp.eq.s32.totalorder %s634, 0
      %s637 = sadd.s32 %s636, 1
      %s638 = scalar_select %p635, %s636, %s637
      %p641 = pneg %p635
      %p642 = scmp.eq.s32.totalorder %s80, 3
      %p643 = por %p641, %p642
      %p644 = scmp.ne.s32.totalorder %s636, %s639
      %p645 = scmp.eq.s32.totalorder %s80, 0
      %p646 = por %p644, %p645
      %p647 = scmp.ne.s32.totalorder %s636, %s639
      %p648 = scmp.eq.s32.totalorder %s85, 3
      %p649 = por %p647, %p648
      %p650 = scmp.ne.s32.totalorder %s639, %s640
      %p651 = scmp.eq.s32.totalorder %s85, 0
      %p652 = por %p650, %p651
      %p653 = scmp.ne.s32.totalorder %s639, %s640
      %p654 = scmp.eq.s32.totalorder %s86, 3
      %p655 = por %p653, %p654
      %p657 = scmp.ne.s32.totalorder %s640, %s656
      %p658 = scmp.eq.s32.totalorder %s86, 0
      %p659 = por %p657, %p658
      %s660 = ssub.s32 %s87, %s99
      %s661 = ssub.s32 %s88, %s95
      %s662 = sor.u32 %s660, %s661
      %p663 = scmp.eq.s32.totalorder %s662, 0
      %s665 = sadd.s32 %s664, 1
      %s666 = scalar_select %p663, %s664, %s665
      %p669 = pneg %p663
      %p670 = scmp.eq.s32.totalorder %s80, 3
      %p671 = por %p669, %p670
      %p672 = scmp.ne.s32.totalorder %s664, %s667
      %p673 = scmp.eq.s32.totalorder %s80, 0
      %p674 = por %p672, %p673
      %p675 = scmp.ne.s32.totalorder %s664, %s667
      %p676 = scmp.eq.s32.totalorder %s85, 3
      %p677 = por %p675, %p676
      %p678 = scmp.ne.s32.totalorder %s667, %s668
      %p679 = scmp.eq.s32.totalorder %s85, 0
      %p680 = por %p678, %p679
      %p681 = scmp.ne.s32.totalorder %s667, %s668
      %p682 = scmp.eq.s32.totalorder %s86, 3
      %p683 = por %p681, %p682
      %p685 = scmp.ne.s32.totalorder %s668, %s684
      %p686 = scmp.eq.s32.totalorder %s86, 0
      %p687 = por %p685, %p686
      %s688 = ssub.s32 %s87, %s99
      %s689 = ssub.s32 %s88, %s95
      %s690 = sor.u32 %s688, %s689
      %p691 = scmp.eq.s32.totalorder %s690, 0
      %s693 = sadd.s32 %s692, 1
      %s694 = scalar_select %p691, %s692, %s693
      %p697 = pneg %p691
      %p698 = scmp.eq.s32.totalorder %s80, 3
      %p699 = por %p697, %p698
      %p700 = scmp.ne.s32.totalorder %s692, %s695
      %p701 = scmp.eq.s32.totalorder %s80, 0
      %p702 = por %p700, %p701
      %p703 = scmp.ne.s32.totalorder %s692, %s695
      %p704 = scmp.eq.s32.totalorder %s85, 3
      %p705 = por %p703, %p704
      %p706 = scmp.ne.s32.totalorder %s695, %s696
      %p707 = scmp.eq.s32.totalorder %s85, 0
      %p708 = por %p706, %p707
      %p709 = scmp.ne.s32.totalorder %s695, %s696
      %p710 = scmp.eq.s32.totalorder %s86, 3
      %p711 = por %p709, %p710
      %p713 = scmp.ne.s32.totalorder %s696, %s712
      %p714 = scmp.eq.s32.totalorder %s86, 0
      %p715 = por %p713, %p714
      %s716 = ssub.s32 %s87, %s99
      %s717 = ssub.s32 %s88, %s95
      %s718 = sor.u32 %s716, %s717
      %p719 = scmp.eq.s32.totalorder %s718, 0
      %s721 = sadd.s32 %s720, 1
      %s722 = scalar_select %p719, %s720, %s721
      %p725 = pneg %p719
      %p726 = scmp.eq.s32.totalorder %s80, 3
      %p727 = por %p725, %p726
      %p728 = scmp.ne.s32.totalorder %s720, %s723
      %p729 = scmp.eq.s32.totalorder %s80, 0
      %p730 = por %p728, %p729
      %p731 = scmp.ne.s32.totalorder %s720, %s723
      %p732 = scmp.eq.s32.totalorder %s85, 3
      %p733 = por %p731, %p732
      %p734 = scmp.ne.s32.totalorder %s723, %s724
      %p735 = scmp.eq.s32.totalorder %s85, 0
      %p736 = por %p734, %p735
      %p737 = scmp.ne.s32.totalorder %s723, %s724
      %p738 = scmp.eq.s32.totalorder %s86, 3
      %p739 = por %p737, %p738
      %p741 = scmp.ne.s32.totalorder %s724, %s740
      %p742 = scmp.eq.s32.totalorder %s86, 0
      %p743 = por %p741, %p742
      %s744 = ssub.s32 %s87, %s99
      %s745 = ssub.s32 %s88, %s95
      %s746 = sor.u32 %s744, %s745
      %p747 = scmp.eq.s32.totalorder %s746, 0
      %s749 = sadd.s32 %s748, 1
      %s750 = scalar_select %p747, %s748, %s749
      %p753 = pneg %p747
      %p754 = scmp.eq.s32.totalorder %s80, 3
      %p755 = por %p753, %p754
      %p756 = scmp.ne.s32.totalorder %s748, %s751
      %p757 = scmp.eq.s32.totalorder %s80, 0
      %p758 = por %p756, %p757
      %p759 = scmp.ne.s32.totalorder %s748, %s751
      %p760 = scmp.eq.s32.totalorder %s85, 3
      %p761 = por %p759, %p760
      %p762 = scmp.ne.s32.totalorder %s751, %s752
      %p763 = scmp.eq.s32.totalorder %s85, 0
      %p764 = por %p762, %p763
      %p765 = scmp.ne.s32.totalorder %s751, %s752
      %p766 = scmp.eq.s32.totalorder %s86, 3
      %p767 = por %p765, %p766
      %p769 = scmp.ne.s32.totalorder %s752, %s768
      %p770 = scmp.eq.s32.totalorder %s86, 0
      %p771 = por %p769, %p770
      %s772 = ssub.s32 %s87, %s99
      %s773 = ssub.s32 %s88, %s95
      %s774 = sor.u32 %s772, %s773
      %p775 = scmp.eq.s32.totalorder %s774, 0
      %s777 = sadd.s32 %s776, 1
      %s778 = scalar_select %p775, %s776, %s777
      %p781 = pneg %p775
      %p782 = scmp.eq.s32.totalorder %s80, 3
      %p783 = por %p781, %p782
      %p784 = scmp.ne.s32.totalorder %s776, %s779
      %p785 = scmp.eq.s32.totalorder %s80, 0
      %p786 = por %p784, %p785
      %p787 = scmp.ne.s32.totalorder %s776, %s779
      %p788 = scmp.eq.s32.totalorder %s85, 3
      %p789 = por %p787, %p788
      %p790 = scmp.ne.s32.totalorder %s779, %s780
      %p791 = scmp.eq.s32.totalorder %s85, 0
      %p792 = por %p790, %p791
      %p793 = scmp.ne.s32.totalorder %s779, %s780
      %p794 = scmp.eq.s32.totalorder %s86, 3
      %p795 = por %p793, %p794
      %p797 = scmp.ne.s32.totalorder %s780, %s796
      %p798 = scmp.eq.s32.totalorder %s86, 0
      %p799 = por %p797, %p798
      %p800 = scmp.le.s32.totalorder 1, %s80
      %p801 = scmp.lt.s32.totalorder %s80, 5
      %p802 = pnand %p800, %p801
      %p803 = pneg %p802
      // Predicated region
      $region9: #{tpu_custom_call.1} parent=5 // pred_check
        _
      $region10: #{tpu_custom_call.1} parent=5 // pred_check_branch
        %805 = sbr.rel (%p802) target = $region12
      $region11: #{tpu_custom_call.1} parent=5 // pred_region
        %s806 = ssub.s32 %s80, 1
        // Predicated region
        $region13: #{tpu_custom_call.1} parent=11 // pred_check
          %p807 = pneg %p141
        $region14: #{tpu_custom_call.1} parent=11 // pred_check_branch
          %809 = sbr.rel (%p807) target = $region16
        $region15: #{tpu_custom_call.1} parent=11 // pred_region
          _
        $region16: #{tpu_custom_call.1} parent=11 // pred_fallthru
          _
        // Predicated region
        $region17: #{tpu_custom_call.1} parent=11 // pred_check
          %p810 = pneg %p162
        $region18: #{tpu_custom_call.1} parent=11 // pred_check_branch
          %812 = sbr.rel (%p810) target = $region20
        $region19: #{tpu_custom_call.1} parent=11 // pred_region
          _
        $region20: #{tpu_custom_call.1} parent=11 // pred_fallthru
          _
        // Predicated region
        $region21: #{tpu_custom_call.1} parent=11 // pred_check
          %p813 = pneg %p183
        $region22: #{tpu_custom_call.1} parent=11 // pred_check_branch
          %815 = sbr.rel (%p813) target = $region24
        $region23: #{tpu_custom_call.1} parent=11 // pred_region
          _
        $region24: #{tpu_custom_call.1} parent=11 // pred_fallthru
          _
        // Predicated region
        $region25: #{tpu_custom_call.1} parent=11 // pred_check
          %p816 = pneg %p204
        $region26: #{tpu_custom_call.1} parent=11 // pred_check_branch
          %818 = sbr.rel (%p816) target = $region28
        $region27: #{tpu_custom_call.1} parent=11 // pred_region
          _
        $region28: #{tpu_custom_call.1} parent=11 // pred_fallthru
          _
        // Predicated region
        $region29: #{tpu_custom_call.1} parent=11 // pred_check
          %p819 = pneg %p225
        $region30: #{tpu_custom_call.1} parent=11 // pred_check_branch
          %821 = sbr.rel (%p819) target = $region32
        $region31: #{tpu_custom_call.1} parent=11 // pred_region
          _
        $region32: #{tpu_custom_call.1} parent=11 // pred_fallthru
          _
        // Predicated region
        $region33: #{tpu_custom_call.1} parent=11 // pred_check
          %p822 = pneg %p246
        $region34: #{tpu_custom_call.1} parent=11 // pred_check_branch
          %824 = sbr.rel (%p822) target = $region36
        $region35: #{tpu_custom_call.1} parent=11 // pred_region
          _
        $region36: #{tpu_custom_call.1} parent=11 // pred_fallthru
          _
        // Predicated region
        $region37: #{tpu_custom_call.1} parent=11 // pred_check
          %p825 = pneg %p267
        $region38: #{tpu_custom_call.1} parent=11 // pred_check_branch
          %827 = sbr.rel (%p825) target = $region40
        $region39: #{tpu_custom_call.1} parent=11 // pred_region
          _
        $region40: #{tpu_custom_call.1} parent=11 // pred_fallthru
          _
        // Predicated region
        $region41: #{tpu_custom_call.1} parent=11 // pred_check
          %p828 = pneg %p288
        $region42: #{tpu_custom_call.1} parent=11 // pred_check_branch
          %830 = sbr.rel (%p828) target = $region44
        $region43: #{tpu_custom_call.1} parent=11 // pred_region
          _
        $region44: #{tpu_custom_call.1} parent=11 // pred_fallthru
          _
        // Predicated region
        $region45: #{tpu_custom_call.1} parent=11 // pred_check
          %p831 = pneg %p309
        $region46: #{tpu_custom_call.1} parent=11 // pred_check_branch
          %833 = sbr.rel (%p831) target = $region48
        $region47: #{tpu_custom_call.1} parent=11 // pred_region
          _
        $region48: #{tpu_custom_call.1} parent=11 // pred_fallthru
          _
        // Predicated region
        $region49: #{tpu_custom_call.1} parent=11 // pred_check
          %p834 = pneg %p330
        $region50: #{tpu_custom_call.1} parent=11 // pred_check_branch
          %836 = sbr.rel (%p834) target = $region52
        $region51: #{tpu_custom_call.1} parent=11 // pred_region
          _
        $region52: #{tpu_custom_call.1} parent=11 // pred_fallthru
          _
        // Predicated region
        $region53: #{tpu_custom_call.1} parent=11 // pred_check
          %p837 = pneg %p351
        $region54: #{tpu_custom_call.1} parent=11 // pred_check_branch
          %839 = sbr.rel (%p837) target = $region56
        $region55: #{tpu_custom_call.1} parent=11 // pred_region
          _
        $region56: #{tpu_custom_call.1} parent=11 // pred_fallthru
          _
        // Predicated region
        $region57: #{tpu_custom_call.1} parent=11 // pred_check
          %p840 = pneg %p372
        $region58: #{tpu_custom_call.1} parent=11 // pred_check_branch
          %842 = sbr.rel (%p840) target = $region60
        $region59: #{tpu_custom_call.1} parent=11 // pred_region
          _
        $region60: #{tpu_custom_call.1} parent=11 // pred_fallthru
          _
        // Predicated region
        $region61: #{tpu_custom_call.1} parent=11 // pred_check
          %p843 = pneg %p393
        $region62: #{tpu_custom_call.1} parent=11 // pred_check_branch
          %845 = sbr.rel (%p843) target = $region64
        $region63: #{tpu_custom_call.1} parent=11 // pred_region
          _
        $region64: #{tpu_custom_call.1} parent=11 // pred_fallthru
          _
        // Predicated region
        $region65: #{tpu_custom_call.1} parent=11 // pred_check
          %p846 = pneg %p414
        $region66: #{tpu_custom_call.1} parent=11 // pred_check_branch
          %848 = sbr.rel (%p846) target = $region68
        $region67: #{tpu_custom_call.1} parent=11 // pred_region
          _
        $region68: #{tpu_custom_call.1} parent=11 // pred_fallthru
          _
        // Predicated region
        $region69: #{tpu_custom_call.1} parent=11 // pred_check
          %p849 = pneg %p435
        $region70: #{tpu_custom_call.1} parent=11 // pred_check_branch
          %851 = sbr.rel (%p849) target = $region72
        $region71: #{tpu_custom_call.1} parent=11 // pred_region
          _
        $region72: #{tpu_custom_call.1} parent=11 // pred_fallthru
          _
        // Predicated region
        $region73: #{tpu_custom_call.1} parent=11 // pred_check
          %p852 = pneg %p456
        $region74: #{tpu_custom_call.1} parent=11 // pred_check_branch
          %854 = sbr.rel (%p852) target = $region76
        $region75: #{tpu_custom_call.1} parent=11 // pred_region
          _
        $region76: #{tpu_custom_call.1} parent=11 // pred_fallthru
          _
        // Predicated region
        $region77: #{tpu_custom_call.1} parent=11 // pred_check
          %p855 = pneg %p477
        $region78: #{tpu_custom_call.1} parent=11 // pred_check_branch
          %857 = sbr.rel (%p855) target = $region80
        $region79: #{tpu_custom_call.1} parent=11 // pred_region
          _
        $region80: #{tpu_custom_call.1} parent=11 // pred_fallthru
          _
        // Predicated region
        $region81: #{tpu_custom_call.1} parent=11 // pred_check
          %p858 = pneg %p498
        $region82: #{tpu_custom_call.1} parent=11 // pred_check_branch
          %860 = sbr.rel (%p858) target = $region84
        $region83: #{tpu_custom_call.1} parent=11 // pred_region
          _
        $region84: #{tpu_custom_call.1} parent=11 // pred_fallthru
          _
        // Predicated region
        $region85: #{tpu_custom_call.1} parent=11 // pred_check
          %p861 = pneg %p519
        $region86: #{tpu_custom_call.1} parent=11 // pred_check_branch
          %863 = sbr.rel (%p861) target = $region88
        $region87: #{tpu_custom_call.1} parent=11 // pred_region
          _
        $region88: #{tpu_custom_call.1} parent=11 // pred_fallthru
          _
        // Predicated region
        $region89: #{tpu_custom_call.1} parent=11 // pred_check
          %p864 = pneg %p540
        $region90: #{tpu_custom_call.1} parent=11 // pred_check_branch
          %866 = sbr.rel (%p864) target = $region92
        $region91: #{tpu_custom_call.1} parent=11 // pred_region
          _
        $region92: #{tpu_custom_call.1} parent=11 // pred_fallthru
          _
        // Predicated region
        $region93: #{tpu_custom_call.1} parent=11 // pred_check
          %p867 = pneg %p561
        $region94: #{tpu_custom_call.1} parent=11 // pred_check_branch
          %869 = sbr.rel (%p867) target = $region96
        $region95: #{tpu_custom_call.1} parent=11 // pred_region
          _
        $region96: #{tpu_custom_call.1} parent=11 // pred_fallthru
          _
        // Predicated region
        $region97: #{tpu_custom_call.1} parent=11 // pred_check
          %p870 = pneg %p582
        $region98: #{tpu_custom_call.1} parent=11 // pred_check_branch
          %872 = sbr.rel (%p870) target = $region100
        $region99: #{tpu_custom_call.1} parent=11 // pred_region
          _
        $region100: #{tpu_custom_call.1} parent=11 // pred_fallthru
          _
        // Predicated region
        $region101: #{tpu_custom_call.1} parent=11 // pred_check
          %p873 = pneg %p603
        $region102: #{tpu_custom_call.1} parent=11 // pred_check_branch
          %875 = sbr.rel (%p873) target = $region104
        $region103: #{tpu_custom_call.1} parent=11 // pred_region
          _
        $region104: #{tpu_custom_call.1} parent=11 // pred_fallthru
          _
        // Predicated region
        $region105: #{tpu_custom_call.1} parent=11 // pred_check
          %p876 = pneg %p624
        $region106: #{tpu_custom_call.1} parent=11 // pred_check_branch
          %878 = sbr.rel (%p876) target = $region108
        $region107: #{tpu_custom_call.1} parent=11 // pred_region
          _
        $region108: #{tpu_custom_call.1} parent=11 // pred_fallthru
          _
      $region12: #{tpu_custom_call.1} parent=5 // pred_fallthru
        _
      %p879 = scmp.lt.s32.totalorder %s80, 4
      // Predicated region
      $region109: #{tpu_custom_call.1} parent=5 // pred_check
        %p880 = pneg %p879
      $region110: #{tpu_custom_call.1} parent=5 // pred_check_branch
        %882 = sbr.rel (%p880) target = $region112
      $region111: #{tpu_custom_call.1} parent=5 // pred_region
        // Predicated region
        $region113: #{tpu_custom_call.1} parent=111 // pred_check
          %p883 = pneg %p114
        $region114: #{tpu_custom_call.1} parent=111 // pred_check_branch
          %885 = sbr.rel (%p883) target = $region116
        $region115: #{tpu_custom_call.1} parent=111 // pred_region
          %s886 = sand.u32 %s104, 1
          %s887 = sand.u32 %s104, 1
          %s888 = smul.addr %s887, 16
          %s889 = scalar_lea.vmem [#allocation4], %s888
          %s890 = smul.addr %s87, 4
          %s891 = sadd.s32 %s88, %s890
          %s892 = smul.addr %s891, 8
          %s893 = scalar_lea.vmem %s1, %s892
          // Predicated region
          $region117: #{tpu_custom_call.1} parent=115 // pred_check
            _
          $region118: #{tpu_custom_call.1} parent=115 // pred_check_branch
            %895 = sbr.rel (0) target = $region120
          $region119: #{tpu_custom_call.1} parent=115 // pred_region
            // Predicated region
            $region121: #{tpu_custom_call.1} parent=119 // pred_check
              _
            $region122: #{tpu_custom_call.1} parent=119 // pred_check_branch
              %897 = sbr.rel (0) target = $region124
            $region123: #{tpu_custom_call.1} parent=119 // pred_region
              // Predicated region
              $region136: #{tpu_custom_call.1} parent=123 // pred_check
                _
              $region137: #{tpu_custom_call.1} parent=123 // pred_check_branch
                %915 = sbr.rel (0) target = $region139
              $region138: #{tpu_custom_call.1} parent=123 // pred_region
                loop: start=0, step=1, limit=1
                $region140: #{tpu_custom_call.1} parent=138 // loop_pre_header
                  _
                $region141: #{tpu_custom_call.1} parent=138 // loop_header
                  %s917 = sphi 0, %s921
                  %p918 = scmp.ge.s32.totalorder %s917, 1
                  %s922 = sphi %s893, %s893
                  %s923 = sphi %s889, %s889
                $region142: #{tpu_custom_call.1} parent=138 // loop_header_branch
                  %920 = sbr.rel (%p918) target = $region146
                $region143: #{tpu_custom_call.1} parent=138 // loop_body
                  %v924 = vld [vmem:[%s922] sm:$0xff]
                  %925 = vst [vmem:[%s923] sm:$0xff] %v924
                  %v926 = vld [vmem:[%s922 + $0x10] sm:$0xff]
                  %927 = vst [vmem:[%s923 + $0x8] sm:$0xff] %v926
                $region144: #{tpu_custom_call.1} parent=138 // loop_footer
                  %s921 = sadd.s32 1, %s917
                $region145: #{tpu_custom_call.1} parent=138 // loop_footer_branch
                  %916 = sbr.rel target = $region141
                $region146: #{tpu_custom_call.1} parent=138 // loop_exit
                  _
              $region139: #{tpu_custom_call.1} parent=123 // pred_fallthru
                _
              // Predicated region
              $region147: #{tpu_custom_call.1} parent=123 // pred_check
                _
              $region148: #{tpu_custom_call.1} parent=123 // pred_check_branch
                %929 = sbr.rel target = $region150
              $region149: #{tpu_custom_call.1} parent=123 // pred_region
                _
              $region150: #{tpu_custom_call.1} parent=123 // pred_fallthru
                _
            $region124: #{tpu_custom_call.1} parent=119 // pred_fallthru
              _
            // Predicated region
            $region125: #{tpu_custom_call.1} parent=119 // pred_check
              _
            $region126: #{tpu_custom_call.1} parent=119 // pred_check_branch
              %899 = sbr.rel target = $region128
            $region127: #{tpu_custom_call.1} parent=119 // pred_region
              %s901 = ssub.s32 256, 1
              loop: start=0, step=1, limit=1
              $region129: #{tpu_custom_call.1} parent=127 // loop_pre_header
                _
              $region130: #{tpu_custom_call.1} parent=127 // loop_header
                %s903 = sphi 0, %s907
                %p904 = scmp.ge.s32.totalorder %s903, 1
                %s908 = sphi %s893, %s893
                %s909 = sphi %s889, %s889
              $region131: #{tpu_custom_call.1} parent=127 // loop_header_branch
                %906 = sbr.rel (%p904) target = $region135
              $region132: #{tpu_custom_call.1} parent=127 // loop_body
                %v910 = vld [vmem:[%s908] sm:%s901]
                %911 = vst [vmem:[%s909] sm:%s901] %v910
                %v912 = vld [vmem:[%s908 + $0x10] sm:%s901]
                %913 = vst [vmem:[%s909 + $0x8] sm:%s901] %v912
              $region133: #{tpu_custom_call.1} parent=127 // loop_footer
                %s907 = sadd.s32 1, %s903
              $region134: #{tpu_custom_call.1} parent=127 // loop_footer_branch
                %902 = sbr.rel target = $region130
              $region135: #{tpu_custom_call.1} parent=127 // loop_exit
                _
            $region128: #{tpu_custom_call.1} parent=119 // pred_fallthru
              _
          $region120: #{tpu_custom_call.1} parent=115 // pred_fallthru
            _
          %930 = vnop
        $region116: #{tpu_custom_call.1} parent=111 // pred_fallthru
          _
      $region112: #{tpu_custom_call.1} parent=5 // pred_fallthru
        _
      %p931 = scmp.le.s32.totalorder 1, %s80
      %p932 = scmp.lt.s32.totalorder %s80, 5
      %p933 = pnand %p931, %p932
      %p934 = pneg %p933
      // Predicated region
      $region151: #{tpu_custom_call.1} parent=5 // pred_check
        _
      $region152: #{tpu_custom_call.1} parent=5 // pred_check_branch
        %936 = sbr.rel (%p933) target = $region154
      $region153: #{tpu_custom_call.1} parent=5 // pred_region
        %s937 = ssub.s32 %s80, 1
        %s938 = sand.u32 %s107, 1
        %s939 = sand.u32 %s107, 1
        %s940 = smul.addr %s939, 16
        %s941 = scalar_lea.vmem [#allocation4], %s940
        // Predicated region
        $region155: #{tpu_custom_call.1} parent=153 // pred_check
          %p942 = pneg %p120
        $region156: #{tpu_custom_call.1} parent=153 // pred_check_branch
          %944 = sbr.rel (%p942) target = $region158
        $region157: #{tpu_custom_call.1} parent=153 // pred_region
          _
        $region158: #{tpu_custom_call.1} parent=153 // pred_fallthru
          _
        %s945 = sand.u32 %s107, 1
        %s946 = sand.u32 %s107, 1
        %s947 = smul.addr %s946, 16
        %s948 = scalar_lea.vmem [#allocation4], %s947
        %p949 = pneg %p120
        %p950 = pneg %p117
        %p951 = pneg %p141
        %p952 = pneg %p138
        %p953 = pneg %p162
        %p954 = pneg %p159
        %p955 = pneg %p183
        %p956 = pneg %p180
        %p957 = pneg %p204
        %p958 = pneg %p201
        %p959 = pneg %p225
        %p960 = pneg %p222
        %p961 = pneg %p246
        %p962 = pneg %p243
        %p963 = pneg %p267
        %p964 = pneg %p264
        %p965 = pneg %p288
        %p966 = pneg %p285
        %p967 = pneg %p309
        %p968 = pneg %p306
        %p969 = pneg %p330
        %p970 = pneg %p327
        %p971 = pneg %p351
        %p972 = pneg %p348
        %p973 = pneg %p372
        %p974 = pneg %p369
        %p975 = pneg %p393
        %p976 = pneg %p390
        %p977 = pneg %p414
        %p978 = pneg %p411
        %p979 = pneg %p435
        %p980 = pneg %p432
        %p981 = pneg %p456
        %p982 = pneg %p453
        %p983 = pneg %p477
        %p984 = pneg %p474
        %p985 = pneg %p498
        %p986 = pneg %p495
        %p987 = pneg %p519
        %p988 = pneg %p516
        %p989 = pneg %p540
        %p990 = pneg %p537
        %p991 = pneg %p561
        %p992 = pneg %p558
        %p993 = pneg %p582
        %p994 = pneg %p579
        %p995 = pneg %p603
        %p996 = pneg %p600
        %p997 = pneg %p624
        %p998 = pneg %p621
        %p999 = pneg %p652
        %p1000 = pneg %p649
        %s1001 = sand.u32 %s639, 1
        %s1002 = scalar_lea.sflag [#allocation6], %s1001
        %s1003 = sand.u32 %s639, 1
        %s1004 = smul.addr %s1003, 8
        %s1005 = scalar_lea.vmem [#allocation5], %s1004
        %p1006 = pneg %p680
        %p1007 = pneg %p677
        %s1008 = sand.u32 %s85, 1
        %s1009 = scalar_lea.sflag [#allocation8], %s1008
        %s1010 = sand.u32 %s667, 1
        %s1011 = smul.addr %s1010, 8
        %s1012 = scalar_lea.vmem [#allocation7], %s1011
        %p1013 = pneg %p708
        %p1014 = pneg %p705
        %s1015 = sand.u32 %s85, 1
        %s1016 = scalar_lea.sflag [#allocation8], %s1015
        %s1017 = sand.u32 %s695, 1
        %s1018 = smul.addr %s1017, 8
        %s1019 = scalar_lea.vmem [#allocation9], %s1018
        %p1020 = pneg %p736
        %p1021 = pneg %p733
        %s1022 = sand.u32 %s85, 1
        %s1023 = scalar_lea.sflag [#allocation11], %s1022
        %s1024 = sand.u32 %s723, 1
        %s1025 = smul.addr %s1024, 16
        %s1026 = scalar_lea.vmem [#allocation10], %s1025
        %p1027 = pneg %p764
        %p1028 = pneg %p761
        %s1029 = sand.u32 %s85, 1
        %s1030 = scalar_lea.sflag [#allocation11], %s1029
        %s1031 = sand.u32 %s751, 1
        %s1032 = smul.addr %s1031, 16
        %s1033 = scalar_lea.vmem [#allocation12], %s1032
        %p1034 = pneg %p792
        %p1035 = pneg %p789
        %s1036 = sand.u32 %s779, 1
        %s1037 = scalar_lea.sflag [#allocation14], %s1036
        %s1038 = sand.u32 %s779, 1
        %s1039 = smul.addr %s1038, 16
        %s1040 = scalar_lea.vmem [#allocation13], %s1039
        %p1041 = scmp.eq.s32.totalorder %s90, 0
        // Predicated region
        $region159: #{tpu_custom_call.1} parent=153 // pred_check
          %p1042 = pneg %p1041
        $region160: #{tpu_custom_call.1} parent=153 // pred_check_branch
          %1044 = sbr.rel (%p1042) target = $region162
        $region161: #{tpu_custom_call.1} parent=153 // pred_region
          %1045 = vst [vmem:[#allocation3] sm:$0xff] 0.0
          %1046 = vst [vmem:[#allocation3 + $0x8] sm:$0xff] 0.0
          %1047 = vst [vmem:[#allocation3 + $0x10] sm:$0xff] 0.0
          %1048 = vst [vmem:[#allocation3 + $0x18] sm:$0xff] 0.0
          %1049 = vst [vmem:[#allocation3 + $0x20] sm:$0xff] 0.0
          %1050 = vst [vmem:[#allocation3 + $0x28] sm:$0xff] 0.0
          %1051 = vst [vmem:[#allocation3 + $0x30] sm:$0xff] 0.0
          %1052 = vst [vmem:[#allocation3 + $0x38] sm:$0xff] 0.0
          %1053 = vst [vmem:[#allocation3 + $0x40] sm:$0xff] 0.0
          %1054 = vst [vmem:[#allocation3 + $0x48] sm:$0xff] 0.0
          %1055 = vst [vmem:[#allocation3 + $0x50] sm:$0xff] 0.0
          %1056 = vst [vmem:[#allocation3 + $0x58] sm:$0xff] 0.0
          %1057 = vst [vmem:[#allocation3 + $0x60] sm:$0xff] 0.0
          %1058 = vst [vmem:[#allocation3 + $0x68] sm:$0xff] 0.0
        $region162: #{tpu_custom_call.1} parent=153 // pred_fallthru
          _
        %v1059 = vlaneseq
        %v1060 = vand.u32 %v1059, 127
        %v1061 = vld [vmem:[%s941] sm:$0xff]
        %v1062 = vld [vmem:[%s941 + $0x8] sm:$0xf]
        %v1063 = vld [vmem:[%s3] sm:$0xff]
        %v1064 = vld [vmem:[%s3 + $0x8] sm:$0xff]
        %v1065 = vld [vmem:[%s5] sm:$0xff]
        %v1066 = vld [vmem:[%s5 + $0x8] sm:$0xff]
        %1068 = vset.pattern.permute.xlu0 0
        %1069 = vperm.xlu0 %1068, %v1065
        %v1070 = vpop.permute.xlu0 %1069
        %1073 = vset.pattern.permute.xlu0 0
        %1074 = vperm.xlu0 %1073, %v1066
        %v1075 = vpop.permute.xlu0 %1074
        %vm1077 = vcmask 97280
        %v1079 = vsel %vm1077, %v1063, 0
        %v1082 = vsel %vm1077, %v1064, 0
        %vm1084 = vcmask 1043456
        %v1086 = vsel %vm1084, %v1062, 0
        %1088 = vmatpush.msra.mxu0 0.0
        %1089 = vmatpush.msra.mxu0 0.0
        %1090 = vmatpush.msra.mxu0 0.0
        %1091 = vmatpush.msra.mxu0 0.0
        %1092 = vmatpush.msra.mxu0 0.0
        %1093 = vmatpush.msra.mxu0 0.0
        %1094 = vmatpush.msra.mxu0 0.0
        %1095 = vmatpush.msra.mxu0 0.0
        %1096 = vmatpush.msra.mxu0 0.0
        %1097 = vmatpush.msra.mxu0 0.0
        %1098 = vmatpush.msra.mxu0 0.0
        %1099 = vmatpush.msra.mxu0 0.0
        %1100 = vmatpush.msra.mxu0 0.0
        %1101 = vmatpush.msra.mxu0 0.0
        %1102 = vmatpush.msra.mxu0 %v1086
        %1103 = vmatpush.msra.mxu0 %v1061
        %1104 = vmatmul.f32.gmra.mxu0 %v1079
        %v1105 = vpop.f32.mrf.mxu0
        %v1106 = vadd.f32 %v1070, %v1105
        %1107 = vmatmul.f32.gmra.mxu0 %v1082
        %v1108 = vpop.f32.mrf.mxu0
        %v1109 = vadd.f32 %v1075, %v1108
        %1110 = vdwg.mxu0
        %v1111 = vld [vmem:[#allocation3] sm:$0xff]
        %v1112 = vld [vmem:[#allocation3 + $0x8] sm:$0xff]
        %vm1113 = vcmp.ge.s32.totalorder %v1060, 2
        %1114 = vrot.lane.b32.xlu0 %v1106, 2
        %v1115 = vpop.permute.xlu0 %1114
        %1116 = vrot.lane.b32.xlu0 %v1109, 2
        %v1117 = vpop.permute.xlu0 %1116
        %1118 = vrot.lane.b32.xlu0 %v1111, 2
        %v1119 = vpop.permute.xlu0 %1118
        %1120 = vrot.lane.b32.xlu0 %v1112, 2
        %v1121 = vpop.permute.xlu0 %1120
        %v1122 = vsel %vm1113, %v1115, %v1119
        %v1123 = vsel %vm1113, %v1117, %v1121
        %1124 = vst [vmem:[#allocation2] sm:$0xff] %v1122
        %1125 = vst [vmem:[#allocation2 + $0x8] sm:$0xff] %v1123
        %vm1126 = vcmp.ge.s32.totalorder %v1060, 1
        %1127 = vrot.lane.b32.xlu0 %v1106, 1
        %v1128 = vpop.permute.xlu0 %1127
        %1129 = vrot.lane.b32.xlu0 %v1109, 1
        %v1130 = vpop.permute.xlu0 %1129
        %1131 = vrot.lane.b32.xlu0 %v1111, 1
        %v1132 = vpop.permute.xlu0 %1131
        %1133 = vrot.lane.b32.xlu0 %v1112, 1
        %v1134 = vpop.permute.xlu0 %1133
        %v1135 = vsel %vm1126, %v1128, %v1132
        %v1136 = vsel %vm1126, %v1130, %v1134
        %1137 = vst [vmem:[#allocation2 + $0x10] sm:$0xff] %v1135
        %1138 = vst [vmem:[#allocation2 + $0x18] sm:$0xff] %v1136
        %1139 = vst [vmem:[#allocation2 + $0x20] sm:$0xff] %v1106
        %1140 = vst [vmem:[#allocation2 + $0x28] sm:$0xff] %v1109
        %1141 = vst [vmem:[#allocation3] sm:$0xff] %v1106
        %1142 = vst [vmem:[#allocation3 + $0x8] sm:$0xff] %v1109
        %v1143 = vld [vmem:[%s7] sm:$0xff]
        %v1144 = vld [vmem:[%s7 + $0x8] sm:$0xff]
        %v1145 = vld [vmem:[#allocation2] sm:$0xff]
        %v1146 = vld [vmem:[#allocation2 + $0x8] sm:$0xff]
        %v1147 = vld [vmem:[#allocation2 + $0x10] sm:$0xff]
        %v1148 = vld [vmem:[#allocation2 + $0x18] sm:$0xff]
        %v1149 = vld [vmem:[#allocation2 + $0x20] sm:$0xff]
        %v1150 = vld [vmem:[#allocation2 + $0x28] sm:$0xff]
        %v1151 = vld [vmem:[%s9] sm:$0xff]
        %v1152 = vld [vmem:[%s9 + $0x8] sm:$0xff]
        %1154 = vset.pattern.permute.xlu0 0
        %1155 = vperm.xlu0 %1154, %v1151
        %v1156 = vpop.permute.xlu0 %1155
        %1159 = vset.pattern.permute.xlu0 0
        %1160 = vperm.xlu0 %1159, %v1152
        %v1161 = vpop.permute.xlu0 %1160
        %vm1163 = vcmask 392192
        %v1165 = vsel %vm1163, %v1143, 0
        %v1168 = vsel %vm1163, %v1144, 0
        %1170 = vmatpush.msra.mxu0 0.0
        %1171 = vmatpush.msra.mxu0 0.0
        %1172 = vmatpush.msra.mxu0 0.0
        %1173 = vmatpush.msra.mxu0 0.0
        %1174 = vmatpush.msra.mxu0 0.0
        %1175 = vmatpush.msra.mxu0 0.0
        %1176 = vmatpush.msra.mxu0 0.0
        %1177 = vmatpush.msra.mxu0 0.0
        %1178 = vmatpush.msra.mxu0 0.0
        %1179 = vmatpush.msra.mxu0 0.0
        %1180 = vmatpush.msra.mxu0 %v1150
        %1181 = vmatpush.msra.mxu0 %v1149
        %1182 = vmatpush.msra.mxu0 %v1148
        %1183 = vmatpush.msra.mxu0 %v1147
        %1184 = vmatpush.msra.mxu0 %v1146
        %1185 = vmatpush.msra.mxu0 %v1145
        %1186 = vmatmul.f32.gmra.mxu0 %v1165
        %v1187 = vpop.f32.mrf.mxu0
        %v1188 = vadd.f32 %v1156, %v1187
        %1189 = vmatmul.f32.gmra.mxu0 %v1168
        %v1190 = vpop.f32.mrf.mxu0
        %v1191 = vadd.f32 %v1161, %v1190
        %1192 = vdwg.mxu0
        %v1193 = vmax.f32 %v1188, 0.0
        %v1194 = vmax.f32 %v1191, 0.0
        %v1195 = vld [vmem:[%s11] sm:$0xff]
        %v1196 = vld [vmem:[%s11 + $0x8] sm:$0xff]
        %vm1197 = vcmask 130048
        %v1199 = vsel %vm1197, %v1195, 0
        %v1202 = vsel %vm1197, %v1196, 0
        %1204 = vmatpush.msra.mxu0 0.0
        %1205 = vmatpush.msra.mxu0 0.0
        %1206 = vmatpush.msra.mxu0 0.0
        %1207 = vmatpush.msra.mxu0 0.0
        %1208 = vmatpush.msra.mxu0 0.0
        %1209 = vmatpush.msra.mxu0 0.0
        %1210 = vmatpush.msra.mxu0 0.0
        %1211 = vmatpush.msra.mxu0 0.0
        %1212 = vmatpush.msra.mxu0 0.0
        %1213 = vmatpush.msra.mxu0 0.0
        %1214 = vmatpush.msra.mxu0 0.0
        %1215 = vmatpush.msra.mxu0 0.0
        %1216 = vmatpush.msra.mxu0 0.0
        %1217 = vmatpush.msra.mxu0 0.0
        %1218 = vmatpush.msra.mxu0 %v1194
        %1219 = vmatpush.msra.mxu0 %v1193
        %1220 = vmatmul.f32.gmra.mxu0 %v1199
        %v1221 = vpop.f32.mrf.mxu0
        %v1222 = vadd.f32 0.0, %v1221
        %1223 = vmatmul.f32.gmra.mxu0 %v1202
        %v1224 = vpop.f32.mrf.mxu0
        %v1225 = vadd.f32 0.0, %v1224
        %1226 = vdwg.mxu0
        %v1227 = vadd.f32 %v1106, %v1222
        %v1228 = vadd.f32 %v1109, %v1225
        %v1229 = vld [vmem:[%s13] sm:$0xff]
        %v1230 = vld [vmem:[%s13 + $0x8] sm:$0xff]
        %1232 = vset.pattern.permute.xlu0 0
        %1233 = vperm.xlu0 %1232, %v1229
        %v1234 = vpop.permute.xlu0 %1233
        %1237 = vset.pattern.permute.xlu0 0
        %1238 = vperm.xlu0 %1237, %v1230
        %v1239 = vpop.permute.xlu0 %1238
        %v1241 = vadd.f32 %v1227, %v1234
        %v1242 = vadd.f32 %v1228, %v1239
        %s1243 = scalar_lea.vmem [#allocation3], 16
        %v1244 = vld [vmem:[%s1243] sm:$0xff]
        %v1245 = vld [vmem:[%s1243 + $0x8] sm:$0xff]
        %vm1246 = vcmp.ge.s32.totalorder %v1060, 4
        %1247 = vrot.lane.b32.xlu0 %v1241, 4
        %v1248 = vpop.permute.xlu0 %1247
        %1249 = vrot.lane.b32.xlu0 %v1242, 4
        %v1250 = vpop.permute.xlu0 %1249
        %1251 = vrot.lane.b32.xlu0 %v1244, 4
        %v1252 = vpop.permute.xlu0 %1251
        %1253 = vrot.lane.b32.xlu0 %v1245, 4
        %v1254 = vpop.permute.xlu0 %1253
        %v1255 = vsel %vm1246, %v1248, %v1252
        %v1256 = vsel %vm1246, %v1250, %v1254
        %1257 = vst [vmem:[#allocation2] sm:$0xff] %v1255
        %1258 = vst [vmem:[#allocation2 + $0x8] sm:$0xff] %v1256
        %1259 = vrot.lane.b32.xlu0 %v1241, 2
        %v1260 = vpop.permute.xlu0 %1259
        %1261 = vrot.lane.b32.xlu0 %v1242, 2
        %v1262 = vpop.permute.xlu0 %1261
        %1263 = vrot.lane.b32.xlu0 %v1244, 2
        %v1264 = vpop.permute.xlu0 %1263
        %1265 = vrot.lane.b32.xlu0 %v1245, 2
        %v1266 = vpop.permute.xlu0 %1265
        %v1267 = vsel %vm1113, %v1260, %v1264
        %v1268 = vsel %vm1113, %v1262, %v1266
        %1269 = vst [vmem:[#allocation2 + $0x10] sm:$0xff] %v1267
        %1270 = vst [vmem:[#allocation2 + $0x18] sm:$0xff] %v1268
        %1271 = vst [vmem:[#allocation2 + $0x20] sm:$0xff] %v1241
        %1272 = vst [vmem:[#allocation2 + $0x28] sm:$0xff] %v1242
        %1273 = vst [vmem:[%s1243] sm:$0xff] %v1241
        %1274 = vst [vmem:[%s1243 + $0x8] sm:$0xff] %v1242
        %s1275 = scalar_lea.vmem %s7, 16
        %v1276 = vld [vmem:[%s1275] sm:$0xff]
        %v1277 = vld [vmem:[%s1275 + $0x8] sm:$0xff]
        %v1278 = vld [vmem:[#allocation2] sm:$0xff]
        %v1279 = vld [vmem:[#allocation2 + $0x8] sm:$0xff]
        %v1280 = vld [vmem:[#allocation2 + $0x10] sm:$0xff]
        %v1281 = vld [vmem:[#allocation2 + $0x18] sm:$0xff]
        %v1282 = vld [vmem:[#allocation2 + $0x20] sm:$0xff]
        %v1283 = vld [vmem:[#allocation2 + $0x28] sm:$0xff]
        %s1284 = scalar_lea.vmem %s9, 16
        %v1285 = vld [vmem:[%s1284] sm:$0xff]
        %v1286 = vld [vmem:[%s1284 + $0x8] sm:$0xff]
        %1288 = vset.pattern.permute.xlu0 0
        %1289 = vperm.xlu0 %1288, %v1285
        %v1290 = vpop.permute.xlu0 %1289
        %1293 = vset.pattern.permute.xlu0 0
        %1294 = vperm.xlu0 %1293, %v1286
        %v1295 = vpop.permute.xlu0 %1294
        %v1298 = vsel %vm1163, %v1276, 0
        %v1301 = vsel %vm1163, %v1277, 0
        %1303 = vmatpush.msra.mxu0 0.0
        %1304 = vmatpush.msra.mxu0 0.0
        %1305 = vmatpush.msra.mxu0 0.0
        %1306 = vmatpush.msra.mxu0 0.0
        %1307 = vmatpush.msra.mxu0 0.0
        %1308 = vmatpush.msra.mxu0 0.0
        %1309 = vmatpush.msra.mxu0 0.0
        %1310 = vmatpush.msra.mxu0 0.0
        %1311 = vmatpush.msra.mxu0 0.0
        %1312 = vmatpush.msra.mxu0 0.0
        %1313 = vmatpush.msra.mxu0 %v1283
        %1314 = vmatpush.msra.mxu0 %v1282
        %1315 = vmatpush.msra.mxu0 %v1281
        %1316 = vmatpush.msra.mxu0 %v1280
        %1317 = vmatpush.msra.mxu0 %v1279
        %1318 = vmatpush.msra.mxu0 %v1278
        %1319 = vmatmul.f32.gmra.mxu0 %v1298
        %v1320 = vpop.f32.mrf.mxu0
        %v1321 = vadd.f32 %v1290, %v1320
        %1322 = vmatmul.f32.gmra.mxu0 %v1301
        %v1323 = vpop.f32.mrf.mxu0
        %v1324 = vadd.f32 %v1295, %v1323
        %1325 = vdwg.mxu0
        %v1326 = vmax.f32 %v1321, 0.0
        %v1327 = vmax.f32 %v1324, 0.0
        %s1328 = scalar_lea.vmem %s11, 16
        %v1329 = vld [vmem:[%s1328] sm:$0xff]
        %v1330 = vld [vmem:[%s1328 + $0x8] sm:$0xff]
        %v1332 = vsel %vm1197, %v1329, 0
        %v1335 = vsel %vm1197, %v1330, 0
        %1337 = vmatpush.msra.mxu0 0.0
        %1338 = vmatpush.msra.mxu0 0.0
        %1339 = vmatpush.msra.mxu0 0.0
        %1340 = vmatpush.msra.mxu0 0.0
        %1341 = vmatpush.msra.mxu0 0.0
        %1342 = vmatpush.msra.mxu0 0.0
        %1343 = vmatpush.msra.mxu0 0.0
        %1344 = vmatpush.msra.mxu0 0.0
        %1345 = vmatpush.msra.mxu0 0.0
        %1346 = vmatpush.msra.mxu0 0.0
        %1347 = vmatpush.msra.mxu0 0.0
        %1348 = vmatpush.msra.mxu0 0.0
        %1349 = vmatpush.msra.mxu0 0.0
        %1350 = vmatpush.msra.mxu0 0.0
        %1351 = vmatpush.msra.mxu0 %v1327
        %1352 = vmatpush.msra.mxu0 %v1326
        %1353 = vmatmul.f32.gmra.mxu0 %v1332
        %v1354 = vpop.f32.mrf.mxu0
        %v1355 = vadd.f32 0.0, %v1354
        %1356 = vmatmul.f32.gmra.mxu0 %v1335
        %v1357 = vpop.f32.mrf.mxu0
        %v1358 = vadd.f32 0.0, %v1357
        %1359 = vdwg.mxu0
        %v1360 = vadd.f32 %v1241, %v1355
        %v1361 = vadd.f32 %v1242, %v1358
        %s1362 = scalar_lea.vmem %s13, 16
        %v1363 = vld [vmem:[%s1362] sm:$0xff]
        %v1364 = vld [vmem:[%s1362 + $0x8] sm:$0xff]
        %1366 = vset.pattern.permute.xlu0 0
        %1367 = vperm.xlu0 %1366, %v1363
        %v1368 = vpop.permute.xlu0 %1367
        %1371 = vset.pattern.permute.xlu0 0
        %1372 = vperm.xlu0 %1371, %v1364
        %v1373 = vpop.permute.xlu0 %1372
        %v1375 = vadd.f32 %v1360, %v1368
        %v1376 = vadd.f32 %v1361, %v1373
        %s1377 = scalar_lea.vmem [#allocation3], 32
        %v1378 = vld [vmem:[%s1377] sm:$0xff]
        %v1379 = vld [vmem:[%s1377 + $0x8] sm:$0xff]
        %vm1380 = vcmp.ge.s32.totalorder %v1060, 8
        %1381 = vrot.lane.b32.xlu0 %v1375, 8
        %v1382 = vpop.permute.xlu0 %1381
        %1383 = vrot.lane.b32.xlu0 %v1376, 8
        %v1384 = vpop.permute.xlu0 %1383
        %1385 = vrot.lane.b32.xlu0 %v1378, 8
        %v1386 = vpop.permute.xlu0 %1385
        %1387 = vrot.lane.b32.xlu0 %v1379, 8
        %v1388 = vpop.permute.xlu0 %1387
        %v1389 = vsel %vm1380, %v1382, %v1386
        %v1390 = vsel %vm1380, %v1384, %v1388
        %1391 = vst [vmem:[#allocation2] sm:$0xff] %v1389
        %1392 = vst [vmem:[#allocation2 + $0x8] sm:$0xff] %v1390
        %1393 = vrot.lane.b32.xlu0 %v1375, 4
        %v1394 = vpop.permute.xlu0 %1393
        %1395 = vrot.lane.b32.xlu0 %v1376, 4
        %v1396 = vpop.permute.xlu0 %1395
        %1397 = vrot.lane.b32.xlu0 %v1378, 4
        %v1398 = vpop.permute.xlu0 %1397
        %1399 = vrot.lane.b32.xlu0 %v1379, 4
        %v1400 = vpop.permute.xlu0 %1399
        %v1401 = vsel %vm1246, %v1394, %v1398
        %v1402 = vsel %vm1246, %v1396, %v1400
        %1403 = vst [vmem:[#allocation2 + $0x10] sm:$0xff] %v1401
        %1404 = vst [vmem:[#allocation2 + $0x18] sm:$0xff] %v1402
        %1405 = vst [vmem:[#allocation2 + $0x20] sm:$0xff] %v1375
        %1406 = vst [vmem:[#allocation2 + $0x28] sm:$0xff] %v1376
        %1407 = vst [vmem:[%s1377] sm:$0xff] %v1375
        %1408 = vst [vmem:[%s1377 + $0x8] sm:$0xff] %v1376
        %s1409 = scalar_lea.vmem %s7, 32
        %v1410 = vld [vmem:[%s1409] sm:$0xff]
        %v1411 = vld [vmem:[%s1409 + $0x8] sm:$0xff]
        %v1412 = vld [vmem:[#allocation2] sm:$0xff]
        %v1413 = vld [vmem:[#allocation2 + $0x8] sm:$0xff]
        %v1414 = vld [vmem:[#allocation2 + $0x10] sm:$0xff]
        %v1415 = vld [vmem:[#allocation2 + $0x18] sm:$0xff]
        %v1416 = vld [vmem:[#allocation2 + $0x20] sm:$0xff]
        %v1417 = vld [vmem:[#allocation2 + $0x28] sm:$0xff]
        %s1418 = scalar_lea.vmem %s9, 32
        %v1419 = vld [vmem:[%s1418] sm:$0xff]
        %v1420 = vld [vmem:[%s1418 + $0x8] sm:$0xff]
        %1422 = vset.pattern.permute.xlu0 0
        %1423 = vperm.xlu0 %1422, %v1419
        %v1424 = vpop.permute.xlu0 %1423
        %1427 = vset.pattern.permute.xlu0 0
        %1428 = vperm.xlu0 %1427, %v1420
        %v1429 = vpop.permute.xlu0 %1428
        %v1432 = vsel %vm1163, %v1410, 0
        %v1435 = vsel %vm1163, %v1411, 0
        %1437 = vmatpush.msra.mxu0 0.0
        %1438 = vmatpush.msra.mxu0 0.0
        %1439 = vmatpush.msra.mxu0 0.0
        %1440 = vmatpush.msra.mxu0 0.0
        %1441 = vmatpush.msra.mxu0 0.0
        %1442 = vmatpush.msra.mxu0 0.0
        %1443 = vmatpush.msra.mxu0 0.0
        %1444 = vmatpush.msra.mxu0 0.0
        %1445 = vmatpush.msra.mxu0 0.0
        %1446 = vmatpush.msra.mxu0 0.0
        %1447 = vmatpush.msra.mxu0 %v1417
        %1448 = vmatpush.msra.mxu0 %v1416
        %1449 = vmatpush.msra.mxu0 %v1415
        %1450 = vmatpush.msra.mxu0 %v1414
        %1451 = vmatpush.msra.mxu0 %v1413
        %1452 = vmatpush.msra.mxu0 %v1412
        %1453 = vmatmul.f32.gmra.mxu0 %v1432
        %v1454 = vpop.f32.mrf.mxu0
        %v1455 = vadd.f32 %v1424, %v1454
        %1456 = vmatmul.f32.gmra.mxu0 %v1435
        %v1457 = vpop.f32.mrf.mxu0
        %v1458 = vadd.f32 %v1429, %v1457
        %1459 = vdwg.mxu0
        %v1460 = vmax.f32 %v1455, 0.0
        %v1461 = vmax.f32 %v1458, 0.0
        %s1462 = scalar_lea.vmem %s11, 32
        %v1463 = vld [vmem:[%s1462] sm:$0xff]
        %v1464 = vld [vmem:[%s1462 + $0x8] sm:$0xff]
        %v1466 = vsel %vm1197, %v1463, 0
        %v1469 = vsel %vm1197, %v1464, 0
        %1471 = vmatpush.msra.mxu0 0.0
        %1472 = vmatpush.msra.mxu0 0.0
        %1473 = vmatpush.msra.mxu0 0.0
        %1474 = vmatpush.msra.mxu0 0.0
        %1475 = vmatpush.msra.mxu0 0.0
        %1476 = vmatpush.msra.mxu0 0.0
        %1477 = vmatpush.msra.mxu0 0.0
        %1478 = vmatpush.msra.mxu0 0.0
        %1479 = vmatpush.msra.mxu0 0.0
        %1480 = vmatpush.msra.mxu0 0.0
        %1481 = vmatpush.msra.mxu0 0.0
        %1482 = vmatpush.msra.mxu0 0.0
        %1483 = vmatpush.msra.mxu0 0.0
        %1484 = vmatpush.msra.mxu0 0.0
        %1485 = vmatpush.msra.mxu0 %v1461
        %1486 = vmatpush.msra.mxu0 %v1460
        %1487 = vmatmul.f32.gmra.mxu0 %v1466
        %v1488 = vpop.f32.mrf.mxu0
        %v1489 = vadd.f32 0.0, %v1488
        %1490 = vmatmul.f32.gmra.mxu0 %v1469
        %v1491 = vpop.f32.mrf.mxu0
        %v1492 = vadd.f32 0.0, %v1491
        %1493 = vdwg.mxu0
        %v1494 = vadd.f32 %v1375, %v1489
        %v1495 = vadd.f32 %v1376, %v1492
        %s1496 = scalar_lea.vmem %s13, 32
        %v1497 = vld [vmem:[%s1496] sm:$0xff]
        %v1498 = vld [vmem:[%s1496 + $0x8] sm:$0xff]
        %1500 = vset.pattern.permute.xlu0 0
        %1501 = vperm.xlu0 %1500, %v1497
        %v1502 = vpop.permute.xlu0 %1501
        %1505 = vset.pattern.permute.xlu0 0
        %1506 = vperm.xlu0 %1505, %v1498
        %v1507 = vpop.permute.xlu0 %1506
        %v1509 = vadd.f32 %v1494, %v1502
        %v1510 = vadd.f32 %v1495, %v1507
        %v1511 = vld [vmem:[%s15] sm:$0xff]
        %v1512 = vld [vmem:[%s17] sm:$0xff]
        %1514 = vset.pattern.permute.xlu0 0
        %1515 = vperm.xlu0 %1514, %v1512
        %v1516 = vpop.permute.xlu0 %1515
        %v1519 = vsel %vm1197, %v1511, 0
        %1521 = vmatpush.msra.mxu0 0.0
        %1522 = vmatpush.msra.mxu0 0.0
        %1523 = vmatpush.msra.mxu0 0.0
        %1524 = vmatpush.msra.mxu0 0.0
        %1525 = vmatpush.msra.mxu0 0.0
        %1526 = vmatpush.msra.mxu0 0.0
        %1527 = vmatpush.msra.mxu0 0.0
        %1528 = vmatpush.msra.mxu0 0.0
        %1529 = vmatpush.msra.mxu0 0.0
        %1530 = vmatpush.msra.mxu0 0.0
        %1531 = vmatpush.msra.mxu0 0.0
        %1532 = vmatpush.msra.mxu0 0.0
        %1533 = vmatpush.msra.mxu0 0.0
        %1534 = vmatpush.msra.mxu0 0.0
        %1535 = vmatpush.msra.mxu0 %v1510
        %1536 = vmatpush.msra.mxu0 %v1509
        %1537 = vmatmul.f32.gmra.mxu0 %v1519
        %v1538 = vpop.f32.mrf.mxu0
        %v1539 = vadd.f32 %v1516, %v1538
        %1540 = vdwg.mxu0
        %1541 = vst [vmem:[%s1005] sm:$0xff] %v1539
        %1542 = vst [vmem:[%s1026] sm:$0xff] %v1509
        %1543 = vst [vmem:[%s1026 + $0x8] sm:$0xff] %v1510
        %v1544 = vld [vmem:[%s19] sm:$0xff]
        %v1545 = vld [vmem:[%s19 + $0x8] sm:$0xff]
        %v1546 = vld [vmem:[%s21] sm:$0xff]
        %v1547 = vld [vmem:[%s21 + $0x8] sm:$0xff]
        %1549 = vset.pattern.permute.xlu0 0
        %1550 = vperm.xlu0 %1549, %v1546
        %v1551 = vpop.permute.xlu0 %1550
        %1554 = vset.pattern.permute.xlu0 0
        %1555 = vperm.xlu0 %1554, %v1547
        %v1556 = vpop.permute.xlu0 %1555
        %vm1558 = vcmask 64512
        %v1560 = vsel %vm1558, %v1544, 0
        %v1563 = vsel %vm1558, %v1545, 0
        %1565 = vmatpush.msra.mxu0 0.0
        %1566 = vmatpush.msra.mxu0 0.0
        %1567 = vmatpush.msra.mxu0 0.0
        %1568 = vmatpush.msra.mxu0 0.0
        %1569 = vmatpush.msra.mxu0 0.0
        %1570 = vmatpush.msra.mxu0 0.0
        %1571 = vmatpush.msra.mxu0 0.0
        %1572 = vmatpush.msra.mxu0 0.0
        %1573 = vmatpush.msra.mxu0 0.0
        %1574 = vmatpush.msra.mxu0 0.0
        %1575 = vmatpush.msra.mxu0 0.0
        %1576 = vmatpush.msra.mxu0 0.0
        %1577 = vmatpush.msra.mxu0 0.0
        %1578 = vmatpush.msra.mxu0 0.0
        %1579 = vmatpush.msra.mxu0 0.0
        %1580 = vmatpush.msra.mxu0 %v1539
        %1581 = vmatmul.f32.gmra.mxu0 %v1560
        %v1582 = vpop.f32.mrf.mxu0
        %v1583 = vadd.f32 %v1551, %v1582
        %1584 = vmatmul.f32.gmra.mxu0 %v1563
        %v1585 = vpop.f32.mrf.mxu0
        %v1586 = vadd.f32 %v1556, %v1585
        %1587 = vdwg.mxu0
        %s1588 = scalar_lea.vmem [#allocation3], 48
        %v1589 = vld [vmem:[%s1588] sm:$0xff]
        %v1590 = vld [vmem:[%s1588 + $0x8] sm:$0xff]
        %1591 = vrot.lane.b32.xlu0 %v1583, 2
        %v1592 = vpop.permute.xlu0 %1591
        %1593 = vrot.lane.b32.xlu0 %v1586, 2
        %v1594 = vpop.permute.xlu0 %1593
        %1595 = vrot.lane.b32.xlu0 %v1589, 2
        %v1596 = vpop.permute.xlu0 %1595
        %1597 = vrot.lane.b32.xlu0 %v1590, 2
        %v1598 = vpop.permute.xlu0 %1597
        %v1599 = vsel %vm1113, %v1592, %v1596
        %v1600 = vsel %vm1113, %v1594, %v1598
        %1601 = vst [vmem:[#allocation2] sm:$0xff] %v1599
        %1602 = vst [vmem:[#allocation2 + $0x8] sm:$0xff] %v1600
        %1603 = vrot.lane.b32.xlu0 %v1583, 1
        %v1604 = vpop.permute.xlu0 %1603
        %1605 = vrot.lane.b32.xlu0 %v1586, 1
        %v1606 = vpop.permute.xlu0 %1605
        %1607 = vrot.lane.b32.xlu0 %v1589, 1
        %v1608 = vpop.permute.xlu0 %1607
        %1609 = vrot.lane.b32.xlu0 %v1590, 1
        %v1610 = vpop.permute.xlu0 %1609
        %v1611 = vsel %vm1126, %v1604, %v1608
        %v1612 = vsel %vm1126, %v1606, %v1610
        %1613 = vst [vmem:[#allocation2 + $0x10] sm:$0xff] %v1611
        %1614 = vst [vmem:[#allocation2 + $0x18] sm:$0xff] %v1612
        %1615 = vst [vmem:[#allocation2 + $0x20] sm:$0xff] %v1583
        %1616 = vst [vmem:[#allocation2 + $0x28] sm:$0xff] %v1586
        %1617 = vst [vmem:[%s1588] sm:$0xff] %v1583
        %1618 = vst [vmem:[%s1588 + $0x8] sm:$0xff] %v1586
        %v1619 = vld [vmem:[%s23] sm:$0xff]
        %v1620 = vld [vmem:[%s23 + $0x8] sm:$0xff]
        %v1621 = vld [vmem:[#allocation2] sm:$0xff]
        %v1622 = vld [vmem:[#allocation2 + $0x8] sm:$0xff]
        %v1623 = vld [vmem:[#allocation2 + $0x10] sm:$0xff]
        %v1624 = vld [vmem:[#allocation2 + $0x18] sm:$0xff]
        %v1625 = vld [vmem:[#allocation2 + $0x20] sm:$0xff]
        %v1626 = vld [vmem:[#allocation2 + $0x28] sm:$0xff]
        %v1627 = vld [vmem:[%s25] sm:$0xff]
        %v1628 = vld [vmem:[%s25 + $0x8] sm:$0xff]
        %1630 = vset.pattern.permute.xlu0 0
        %1631 = vperm.xlu0 %1630, %v1627
        %v1632 = vpop.permute.xlu0 %1631
        %1635 = vset.pattern.permute.xlu0 0
        %1636 = vperm.xlu0 %1635, %v1628
        %v1637 = vpop.permute.xlu0 %1636
        %v1640 = vsel %vm1163, %v1619, 0
        %v1643 = vsel %vm1163, %v1620, 0
        %1645 = vmatpush.msra.mxu0 0.0
        %1646 = vmatpush.msra.mxu0 0.0
        %1647 = vmatpush.msra.mxu0 0.0
        %1648 = vmatpush.msra.mxu0 0.0
        %1649 = vmatpush.msra.mxu0 0.0
        %1650 = vmatpush.msra.mxu0 0.0
        %1651 = vmatpush.msra.mxu0 0.0
        %1652 = vmatpush.msra.mxu0 0.0
        %1653 = vmatpush.msra.mxu0 0.0
        %1654 = vmatpush.msra.mxu0 0.0
        %1655 = vmatpush.msra.mxu0 %v1626
        %1656 = vmatpush.msra.mxu0 %v1625
        %1657 = vmatpush.msra.mxu0 %v1624
        %1658 = vmatpush.msra.mxu0 %v1623
        %1659 = vmatpush.msra.mxu0 %v1622
        %1660 = vmatpush.msra.mxu0 %v1621
        %1661 = vmatmul.f32.gmra.mxu0 %v1640
        %v1662 = vpop.f32.mrf.mxu0
        %v1663 = vadd.f32 %v1632, %v1662
        %1664 = vmatmul.f32.gmra.mxu0 %v1643
        %v1665 = vpop.f32.mrf.mxu0
        %v1666 = vadd.f32 %v1637, %v1665
        %1667 = vdwg.mxu0
        %v1668 = vmax.f32 %v1663, 0.0
        %v1669 = vmax.f32 %v1666, 0.0
        %v1670 = vld [vmem:[%s27] sm:$0xff]
        %v1671 = vld [vmem:[%s27 + $0x8] sm:$0xff]
        %v1673 = vsel %vm1197, %v1670, 0
        %v1676 = vsel %vm1197, %v1671, 0
        %1678 = vmatpush.msra.mxu0 0.0
        %1679 = vmatpush.msra.mxu0 0.0
        %1680 = vmatpush.msra.mxu0 0.0
        %1681 = vmatpush.msra.mxu0 0.0
        %1682 = vmatpush.msra.mxu0 0.0
        %1683 = vmatpush.msra.mxu0 0.0
        %1684 = vmatpush.msra.mxu0 0.0
        %1685 = vmatpush.msra.mxu0 0.0
        %1686 = vmatpush.msra.mxu0 0.0
        %1687 = vmatpush.msra.mxu0 0.0
        %1688 = vmatpush.msra.mxu0 0.0
        %1689 = vmatpush.msra.mxu0 0.0
        %1690 = vmatpush.msra.mxu0 0.0
        %1691 = vmatpush.msra.mxu0 0.0
        %1692 = vmatpush.msra.mxu0 %v1669
        %1693 = vmatpush.msra.mxu0 %v1668
        %1694 = vmatmul.f32.gmra.mxu0 %v1673
        %v1695 = vpop.f32.mrf.mxu0
        %v1696 = vadd.f32 0.0, %v1695
        %1697 = vmatmul.f32.gmra.mxu0 %v1676
        %v1698 = vpop.f32.mrf.mxu0
        %v1699 = vadd.f32 0.0, %v1698
        %1700 = vdwg.mxu0
        %v1701 = vadd.f32 %v1583, %v1696
        %v1702 = vadd.f32 %v1586, %v1699
        %v1703 = vld [vmem:[%s29] sm:$0xff]
        %v1704 = vld [vmem:[%s29 + $0x8] sm:$0xff]
        %1706 = vset.pattern.permute.xlu0 0
        %1707 = vperm.xlu0 %1706, %v1703
        %v1708 = vpop.permute.xlu0 %1707
        %1711 = vset.pattern.permute.xlu0 0
        %1712 = vperm.xlu0 %1711, %v1704
        %v1713 = vpop.permute.xlu0 %1712
        %v1715 = vadd.f32 %v1701, %v1708
        %v1716 = vadd.f32 %v1702, %v1713
        %s1717 = scalar_lea.vmem [#allocation3], 64
        %v1718 = vld [vmem:[%s1717] sm:$0xff]
        %v1719 = vld [vmem:[%s1717 + $0x8] sm:$0xff]
        %1720 = vrot.lane.b32.xlu0 %v1715, 4
        %v1721 = vpop.permute.xlu0 %1720
        %1722 = vrot.lane.b32.xlu0 %v1716, 4
        %v1723 = vpop.permute.xlu0 %1722
        %1724 = vrot.lane.b32.xlu0 %v1718, 4
        %v1725 = vpop.permute.xlu0 %1724
        %1726 = vrot.lane.b32.xlu0 %v1719, 4
        %v1727 = vpop.permute.xlu0 %1726
        %v1728 = vsel %vm1246, %v1721, %v1725
        %v1729 = vsel %vm1246, %v1723, %v1727
        %1730 = vst [vmem:[#allocation2] sm:$0xff] %v1728
        %1731 = vst [vmem:[#allocation2 + $0x8] sm:$0xff] %v1729
        %1732 = vrot.lane.b32.xlu0 %v1715, 2
        %v1733 = vpop.permute.xlu0 %1732
        %1734 = vrot.lane.b32.xlu0 %v1716, 2
        %v1735 = vpop.permute.xlu0 %1734
        %1736 = vrot.lane.b32.xlu0 %v1718, 2
        %v1737 = vpop.permute.xlu0 %1736
        %1738 = vrot.lane.b32.xlu0 %v1719, 2
        %v1739 = vpop.permute.xlu0 %1738
        %v1740 = vsel %vm1113, %v1733, %v1737
        %v1741 = vsel %vm1113, %v1735, %v1739
        %1742 = vst [vmem:[#allocation2 + $0x10] sm:$0xff] %v1740
        %1743 = vst [vmem:[#allocation2 + $0x18] sm:$0xff] %v1741
        %1744 = vst [vmem:[#allocation2 + $0x20] sm:$0xff] %v1715
        %1745 = vst [vmem:[#allocation2 + $0x28] sm:$0xff] %v1716
        %1746 = vst [vmem:[%s1717] sm:$0xff] %v1715
        %1747 = vst [vmem:[%s1717 + $0x8] sm:$0xff] %v1716
        %s1748 = scalar_lea.vmem %s23, 16
        %v1749 = vld [vmem:[%s1748] sm:$0xff]
        %v1750 = vld [vmem:[%s1748 + $0x8] sm:$0xff]
        %v1751 = vld [vmem:[#allocation2] sm:$0xff]
        %v1752 = vld [vmem:[#allocation2 + $0x8] sm:$0xff]
        %v1753 = vld [vmem:[#allocation2 + $0x10] sm:$0xff]
        %v1754 = vld [vmem:[#allocation2 + $0x18] sm:$0xff]
        %v1755 = vld [vmem:[#allocation2 + $0x20] sm:$0xff]
        %v1756 = vld [vmem:[#allocation2 + $0x28] sm:$0xff]
        %s1757 = scalar_lea.vmem %s25, 16
        %v1758 = vld [vmem:[%s1757] sm:$0xff]
        %v1759 = vld [vmem:[%s1757 + $0x8] sm:$0xff]
        %1761 = vset.pattern.permute.xlu0 0
        %1762 = vperm.xlu0 %1761, %v1758
        %v1763 = vpop.permute.xlu0 %1762
        %1766 = vset.pattern.permute.xlu0 0
        %1767 = vperm.xlu0 %1766, %v1759
        %v1768 = vpop.permute.xlu0 %1767
        %v1771 = vsel %vm1163, %v1749, 0
        %v1774 = vsel %vm1163, %v1750, 0
        %1776 = vmatpush.msra.mxu0 0.0
        %1777 = vmatpush.msra.mxu0 0.0
        %1778 = vmatpush.msra.mxu0 0.0
        %1779 = vmatpush.msra.mxu0 0.0
        %1780 = vmatpush.msra.mxu0 0.0
        %1781 = vmatpush.msra.mxu0 0.0
        %1782 = vmatpush.msra.mxu0 0.0
        %1783 = vmatpush.msra.mxu0 0.0
        %1784 = vmatpush.msra.mxu0 0.0
        %1785 = vmatpush.msra.mxu0 0.0
        %1786 = vmatpush.msra.mxu0 %v1756
        %1787 = vmatpush.msra.mxu0 %v1755
        %1788 = vmatpush.msra.mxu0 %v1754
        %1789 = vmatpush.msra.mxu0 %v1753
        %1790 = vmatpush.msra.mxu0 %v1752
        %1791 = vmatpush.msra.mxu0 %v1751
        %1792 = vmatmul.f32.gmra.mxu0 %v1771
        %v1793 = vpop.f32.mrf.mxu0
        %v1794 = vadd.f32 %v1763, %v1793
        %1795 = vmatmul.f32.gmra.mxu0 %v1774
        %v1796 = vpop.f32.mrf.mxu0
        %v1797 = vadd.f32 %v1768, %v1796
        %1798 = vdwg.mxu0
        %v1799 = vmax.f32 %v1794, 0.0
        %v1800 = vmax.f32 %v1797, 0.0
        %s1801 = scalar_lea.vmem %s27, 16
        %v1802 = vld [vmem:[%s1801] sm:$0xff]
        %v1803 = vld [vmem:[%s1801 + $0x8] sm:$0xff]
        %v1805 = vsel %vm1197, %v1802, 0
        %v1808 = vsel %vm1197, %v1803, 0
        %1810 = vmatpush.msra.mxu0 0.0
        %1811 = vmatpush.msra.mxu0 0.0
        %1812 = vmatpush.msra.mxu0 0.0
        %1813 = vmatpush.msra.mxu0 0.0
        %1814 = vmatpush.msra.mxu0 0.0
        %1815 = vmatpush.msra.mxu0 0.0
        %1816 = vmatpush.msra.mxu0 0.0
        %1817 = vmatpush.msra.mxu0 0.0
        %1818 = vmatpush.msra.mxu0 0.0
        %1819 = vmatpush.msra.mxu0 0.0
        %1820 = vmatpush.msra.mxu0 0.0
        %1821 = vmatpush.msra.mxu0 0.0
        %1822 = vmatpush.msra.mxu0 0.0
        %1823 = vmatpush.msra.mxu0 0.0
        %1824 = vmatpush.msra.mxu0 %v1800
        %1825 = vmatpush.msra.mxu0 %v1799
        %1826 = vmatmul.f32.gmra.mxu0 %v1805
        %v1827 = vpop.f32.mrf.mxu0
        %v1828 = vadd.f32 0.0, %v1827
        %1829 = vmatmul.f32.gmra.mxu0 %v1808
        %v1830 = vpop.f32.mrf.mxu0
        %v1831 = vadd.f32 0.0, %v1830
        %1832 = vdwg.mxu0
        %v1833 = vadd.f32 %v1715, %v1828
        %v1834 = vadd.f32 %v1716, %v1831
        %s1835 = scalar_lea.vmem %s29, 16
        %v1836 = vld [vmem:[%s1835] sm:$0xff]
        %v1837 = vld [vmem:[%s1835 + $0x8] sm:$0xff]
        %1839 = vset.pattern.permute.xlu0 0
        %1840 = vperm.xlu0 %1839, %v1836
        %v1841 = vpop.permute.xlu0 %1840
        %1844 = vset.pattern.permute.xlu0 0
        %1845 = vperm.xlu0 %1844, %v1837
        %v1846 = vpop.permute.xlu0 %1845
        %v1848 = vadd.f32 %v1833, %v1841
        %v1849 = vadd.f32 %v1834, %v1846
        %v1850 = vld [vmem:[%s31] sm:$0xff]
        %v1851 = vld [vmem:[%s33] sm:$0xff]
        %1853 = vset.pattern.permute.xlu0 0
        %1854 = vperm.xlu0 %1853, %v1851
        %v1855 = vpop.permute.xlu0 %1854
        %v1858 = vsel %vm1197, %v1850, 0
        %1860 = vmatpush.msra.mxu0 0.0
        %1861 = vmatpush.msra.mxu0 0.0
        %1862 = vmatpush.msra.mxu0 0.0
        %1863 = vmatpush.msra.mxu0 0.0
        %1864 = vmatpush.msra.mxu0 0.0
        %1865 = vmatpush.msra.mxu0 0.0
        %1866 = vmatpush.msra.mxu0 0.0
        %1867 = vmatpush.msra.mxu0 0.0
        %1868 = vmatpush.msra.mxu0 0.0
        %1869 = vmatpush.msra.mxu0 0.0
        %1870 = vmatpush.msra.mxu0 0.0
        %1871 = vmatpush.msra.mxu0 0.0
        %1872 = vmatpush.msra.mxu0 0.0
        %1873 = vmatpush.msra.mxu0 0.0
        %1874 = vmatpush.msra.mxu0 %v1849
        %1875 = vmatpush.msra.mxu0 %v1848
        %1876 = vmatmul.f32.gmra.mxu0 %v1858
        %v1877 = vpop.f32.mrf.mxu0
        %v1878 = vadd.f32 %v1855, %v1877
        %1879 = vdwg.mxu0
        %1880 = vst [vmem:[%s1012] sm:$0xff] %v1878
        %1881 = vst [vmem:[%s1033] sm:$0xff] %v1848
        %1882 = vst [vmem:[%s1033 + $0x8] sm:$0xff] %v1849
        %v1883 = vld [vmem:[%s35] sm:$0xff]
        %v1884 = vld [vmem:[%s35 + $0x8] sm:$0xff]
        %v1885 = vld [vmem:[%s37] sm:$0xff]
        %v1886 = vld [vmem:[%s37 + $0x8] sm:$0xff]
        %1888 = vset.pattern.permute.xlu0 0
        %1889 = vperm.xlu0 %1888, %v1885
        %v1890 = vpop.permute.xlu0 %1889
        %1893 = vset.pattern.permute.xlu0 0
        %1894 = vperm.xlu0 %1893, %v1886
        %v1895 = vpop.permute.xlu0 %1894
        %v1898 = vsel %vm1558, %v1883, 0
        %v1901 = vsel %vm1558, %v1884, 0
        %1903 = vmatpush.msra.mxu0 0.0
        %1904 = vmatpush.msra.mxu0 0.0
        %1905 = vmatpush.msra.mxu0 0.0
        %1906 = vmatpush.msra.mxu0 0.0
        %1907 = vmatpush.msra.mxu0 0.0
        %1908 = vmatpush.msra.mxu0 0.0
        %1909 = vmatpush.msra.mxu0 0.0
        %1910 = vmatpush.msra.mxu0 0.0
        %1911 = vmatpush.msra.mxu0 0.0
        %1912 = vmatpush.msra.mxu0 0.0
        %1913 = vmatpush.msra.mxu0 0.0
        %1914 = vmatpush.msra.mxu0 0.0
        %1915 = vmatpush.msra.mxu0 0.0
        %1916 = vmatpush.msra.mxu0 0.0
        %1917 = vmatpush.msra.mxu0 0.0
        %1918 = vmatpush.msra.mxu0 %v1878
        %1919 = vmatmul.f32.gmra.mxu0 %v1898
        %v1920 = vpop.f32.mrf.mxu0
        %v1921 = vadd.f32 %v1890, %v1920
        %1922 = vmatmul.f32.gmra.mxu0 %v1901
        %v1923 = vpop.f32.mrf.mxu0
        %v1924 = vadd.f32 %v1895, %v1923
        %1925 = vdwg.mxu0
        %s1926 = scalar_lea.vmem [#allocation3], 80
        %v1927 = vld [vmem:[%s1926] sm:$0xff]
        %v1928 = vld [vmem:[%s1926 + $0x8] sm:$0xff]
        %1929 = vrot.lane.b32.xlu0 %v1921, 2
        %v1930 = vpop.permute.xlu0 %1929
        %1931 = vrot.lane.b32.xlu0 %v1924, 2
        %v1932 = vpop.permute.xlu0 %1931
        %1933 = vrot.lane.b32.xlu0 %v1927, 2
        %v1934 = vpop.permute.xlu0 %1933
        %1935 = vrot.lane.b32.xlu0 %v1928, 2
        %v1936 = vpop.permute.xlu0 %1935
        %v1937 = vsel %vm1113, %v1930, %v1934
        %v1938 = vsel %vm1113, %v1932, %v1936
        %1939 = vst [vmem:[#allocation2] sm:$0xff] %v1937
        %1940 = vst [vmem:[#allocation2 + $0x8] sm:$0xff] %v1938
        %1941 = vrot.lane.b32.xlu0 %v1921, 1
        %v1942 = vpop.permute.xlu0 %1941
        %1943 = vrot.lane.b32.xlu0 %v1924, 1
        %v1944 = vpop.permute.xlu0 %1943
        %1945 = vrot.lane.b32.xlu0 %v1927, 1
        %v1946 = vpop.permute.xlu0 %1945
        %1947 = vrot.lane.b32.xlu0 %v1928, 1
        %v1948 = vpop.permute.xlu0 %1947
        %v1949 = vsel %vm1126, %v1942, %v1946
        %v1950 = vsel %vm1126, %v1944, %v1948
        %1951 = vst [vmem:[#allocation2 + $0x10] sm:$0xff] %v1949
        %1952 = vst [vmem:[#allocation2 + $0x18] sm:$0xff] %v1950
        %1953 = vst [vmem:[#allocation2 + $0x20] sm:$0xff] %v1921
        %1954 = vst [vmem:[#allocation2 + $0x28] sm:$0xff] %v1924
        %1955 = vst [vmem:[%s1926] sm:$0xff] %v1921
        %1956 = vst [vmem:[%s1926 + $0x8] sm:$0xff] %v1924
        %v1957 = vld [vmem:[%s39] sm:$0xff]
        %v1958 = vld [vmem:[%s39 + $0x8] sm:$0xff]
        %v1959 = vld [vmem:[#allocation2] sm:$0xff]
        %v1960 = vld [vmem:[#allocation2 + $0x8] sm:$0xff]
        %v1961 = vld [vmem:[#allocation2 + $0x10] sm:$0xff]
        %v1962 = vld [vmem:[#allocation2 + $0x18] sm:$0xff]
        %v1963 = vld [vmem:[#allocation2 + $0x20] sm:$0xff]
        %v1964 = vld [vmem:[#allocation2 + $0x28] sm:$0xff]
        %v1965 = vld [vmem:[%s41] sm:$0xff]
        %v1966 = vld [vmem:[%s41 + $0x8] sm:$0xff]
        %1968 = vset.pattern.permute.xlu0 0
        %1969 = vperm.xlu0 %1968, %v1965
        %v1970 = vpop.permute.xlu0 %1969
        %1973 = vset.pattern.permute.xlu0 0
        %1974 = vperm.xlu0 %1973, %v1966
        %v1975 = vpop.permute.xlu0 %1974
        %v1978 = vsel %vm1163, %v1957, 0
        %v1981 = vsel %vm1163, %v1958, 0
        %1983 = vmatpush.msra.mxu0 0.0
        %1984 = vmatpush.msra.mxu0 0.0
        %1985 = vmatpush.msra.mxu0 0.0
        %1986 = vmatpush.msra.mxu0 0.0
        %1987 = vmatpush.msra.mxu0 0.0
        %1988 = vmatpush.msra.mxu0 0.0
        %1989 = vmatpush.msra.mxu0 0.0
        %1990 = vmatpush.msra.mxu0 0.0
        %1991 = vmatpush.msra.mxu0 0.0
        %1992 = vmatpush.msra.mxu0 0.0
        %1993 = vmatpush.msra.mxu0 %v1964
        %1994 = vmatpush.msra.mxu0 %v1963
        %1995 = vmatpush.msra.mxu0 %v1962
        %1996 = vmatpush.msra.mxu0 %v1961
        %1997 = vmatpush.msra.mxu0 %v1960
        %1998 = vmatpush.msra.mxu0 %v1959
        %1999 = vmatmul.f32.gmra.mxu0 %v1978
        %v2000 = vpop.f32.mrf.mxu0
        %v2001 = vadd.f32 %v1970, %v2000
        %2002 = vmatmul.f32.gmra.mxu0 %v1981
        %v2003 = vpop.f32.mrf.mxu0
        %v2004 = vadd.f32 %v1975, %v2003
        %2005 = vdwg.mxu0
        %v2006 = vmax.f32 %v2001, 0.0
        %v2007 = vmax.f32 %v2004, 0.0
        %v2008 = vld [vmem:[%s43] sm:$0xff]
        %v2009 = vld [vmem:[%s43 + $0x8] sm:$0xff]
        %v2011 = vsel %vm1197, %v2008, 0
        %v2014 = vsel %vm1197, %v2009, 0
        %2016 = vmatpush.msra.mxu0 0.0
        %2017 = vmatpush.msra.mxu0 0.0
        %2018 = vmatpush.msra.mxu0 0.0
        %2019 = vmatpush.msra.mxu0 0.0
        %2020 = vmatpush.msra.mxu0 0.0
        %2021 = vmatpush.msra.mxu0 0.0
        %2022 = vmatpush.msra.mxu0 0.0
        %2023 = vmatpush.msra.mxu0 0.0
        %2024 = vmatpush.msra.mxu0 0.0
        %2025 = vmatpush.msra.mxu0 0.0
        %2026 = vmatpush.msra.mxu0 0.0
        %2027 = vmatpush.msra.mxu0 0.0
        %2028 = vmatpush.msra.mxu0 0.0
        %2029 = vmatpush.msra.mxu0 0.0
        %2030 = vmatpush.msra.mxu0 %v2007
        %2031 = vmatpush.msra.mxu0 %v2006
        %2032 = vmatmul.f32.gmra.mxu0 %v2011
        %v2033 = vpop.f32.mrf.mxu0
        %v2034 = vadd.f32 0.0, %v2033
        %2035 = vmatmul.f32.gmra.mxu0 %v2014
        %v2036 = vpop.f32.mrf.mxu0
        %v2037 = vadd.f32 0.0, %v2036
        %2038 = vdwg.mxu0
        %v2039 = vadd.f32 %v1921, %v2034
        %v2040 = vadd.f32 %v1924, %v2037
        %v2041 = vld [vmem:[%s45] sm:$0xff]
        %v2042 = vld [vmem:[%s45 + $0x8] sm:$0xff]
        %2044 = vset.pattern.permute.xlu0 0
        %2045 = vperm.xlu0 %2044, %v2041
        %v2046 = vpop.permute.xlu0 %2045
        %2049 = vset.pattern.permute.xlu0 0
        %2050 = vperm.xlu0 %2049, %v2042
        %v2051 = vpop.permute.xlu0 %2050
        %v2053 = vadd.f32 %v2039, %v2046
        %v2054 = vadd.f32 %v2040, %v2051
        %s2055 = scalar_lea.vmem [#allocation3], 96
        %v2056 = vld [vmem:[%s2055] sm:$0xff]
        %v2057 = vld [vmem:[%s2055 + $0x8] sm:$0xff]
        %2058 = vrot.lane.b32.xlu0 %v2053, 4
        %v2059 = vpop.permute.xlu0 %2058
        %2060 = vrot.lane.b32.xlu0 %v2054, 4
        %v2061 = vpop.permute.xlu0 %2060
        %2062 = vrot.lane.b32.xlu0 %v2056, 4
        %v2063 = vpop.permute.xlu0 %2062
        %2064 = vrot.lane.b32.xlu0 %v2057, 4
        %v2065 = vpop.permute.xlu0 %2064
        %v2066 = vsel %vm1246, %v2059, %v2063
        %v2067 = vsel %vm1246, %v2061, %v2065
        %2068 = vst [vmem:[#allocation2] sm:$0xff] %v2066
        %2069 = vst [vmem:[#allocation2 + $0x8] sm:$0xff] %v2067
        %2070 = vrot.lane.b32.xlu0 %v2053, 2
        %v2071 = vpop.permute.xlu0 %2070
        %2072 = vrot.lane.b32.xlu0 %v2054, 2
        %v2073 = vpop.permute.xlu0 %2072
        %2074 = vrot.lane.b32.xlu0 %v2056, 2
        %v2075 = vpop.permute.xlu0 %2074
        %2076 = vrot.lane.b32.xlu0 %v2057, 2
        %v2077 = vpop.permute.xlu0 %2076
        %v2078 = vsel %vm1113, %v2071, %v2075
        %v2079 = vsel %vm1113, %v2073, %v2077
        %2080 = vst [vmem:[#allocation2 + $0x10] sm:$0xff] %v2078
        %2081 = vst [vmem:[#allocation2 + $0x18] sm:$0xff] %v2079
        %2082 = vst [vmem:[#allocation2 + $0x20] sm:$0xff] %v2053
        %2083 = vst [vmem:[#allocation2 + $0x28] sm:$0xff] %v2054
        %2084 = vst [vmem:[%s2055] sm:$0xff] %v2053
        %2085 = vst [vmem:[%s2055 + $0x8] sm:$0xff] %v2054
        %s2086 = scalar_lea.vmem %s39, 16
        %v2087 = vld [vmem:[%s2086] sm:$0xff]
        %v2088 = vld [vmem:[%s2086 + $0x8] sm:$0xff]
        %v2089 = vld [vmem:[#allocation2] sm:$0xff]
        %v2090 = vld [vmem:[#allocation2 + $0x8] sm:$0xff]
        %v2091 = vld [vmem:[#allocation2 + $0x10] sm:$0xff]
        %v2092 = vld [vmem:[#allocation2 + $0x18] sm:$0xff]
        %v2093 = vld [vmem:[#allocation2 + $0x20] sm:$0xff]
        %v2094 = vld [vmem:[#allocation2 + $0x28] sm:$0xff]
        %s2095 = scalar_lea.vmem %s41, 16
        %v2096 = vld [vmem:[%s2095] sm:$0xff]
        %v2097 = vld [vmem:[%s2095 + $0x8] sm:$0xff]
        %2099 = vset.pattern.permute.xlu0 0
        %2100 = vperm.xlu0 %2099, %v2096
        %v2101 = vpop.permute.xlu0 %2100
        %2104 = vset.pattern.permute.xlu0 0
        %2105 = vperm.xlu0 %2104, %v2097
        %v2106 = vpop.permute.xlu0 %2105
        %v2109 = vsel %vm1163, %v2087, 0
        %v2112 = vsel %vm1163, %v2088, 0
        %2114 = vmatpush.msra.mxu0 0.0
        %2115 = vmatpush.msra.mxu0 0.0
        %2116 = vmatpush.msra.mxu0 0.0
        %2117 = vmatpush.msra.mxu0 0.0
        %2118 = vmatpush.msra.mxu0 0.0
        %2119 = vmatpush.msra.mxu0 0.0
        %2120 = vmatpush.msra.mxu0 0.0
        %2121 = vmatpush.msra.mxu0 0.0
        %2122 = vmatpush.msra.mxu0 0.0
        %2123 = vmatpush.msra.mxu0 0.0
        %2124 = vmatpush.msra.mxu0 %v2094
        %2125 = vmatpush.msra.mxu0 %v2093
        %2126 = vmatpush.msra.mxu0 %v2092
        %2127 = vmatpush.msra.mxu0 %v2091
        %2128 = vmatpush.msra.mxu0 %v2090
        %2129 = vmatpush.msra.mxu0 %v2089
        %2130 = vmatmul.f32.gmra.mxu0 %v2109
        %v2131 = vpop.f32.mrf.mxu0
        %v2132 = vadd.f32 %v2101, %v2131
        %2133 = vmatmul.f32.gmra.mxu0 %v2112
        %v2134 = vpop.f32.mrf.mxu0
        %v2135 = vadd.f32 %v2106, %v2134
        %2136 = vdwg.mxu0
        %v2137 = vmax.f32 %v2132, 0.0
        %v2138 = vmax.f32 %v2135, 0.0
        %s2139 = scalar_lea.vmem %s43, 16
        %v2140 = vld [vmem:[%s2139] sm:$0xff]
        %v2141 = vld [vmem:[%s2139 + $0x8] sm:$0xff]
        %v2143 = vsel %vm1197, %v2140, 0
        %v2146 = vsel %vm1197, %v2141, 0
        %2148 = vmatpush.msra.mxu0 0.0
        %2149 = vmatpush.msra.mxu0 0.0
        %2150 = vmatpush.msra.mxu0 0.0
        %2151 = vmatpush.msra.mxu0 0.0
        %2152 = vmatpush.msra.mxu0 0.0
        %2153 = vmatpush.msra.mxu0 0.0
        %2154 = vmatpush.msra.mxu0 0.0
        %2155 = vmatpush.msra.mxu0 0.0
        %2156 = vmatpush.msra.mxu0 0.0
        %2157 = vmatpush.msra.mxu0 0.0
        %2158 = vmatpush.msra.mxu0 0.0
        %2159 = vmatpush.msra.mxu0 0.0
        %2160 = vmatpush.msra.mxu0 0.0
        %2161 = vmatpush.msra.mxu0 0.0
        %2162 = vmatpush.msra.mxu0 %v2138
        %2163 = vmatpush.msra.mxu0 %v2137
        %2164 = vmatmul.f32.gmra.mxu0 %v2143
        %v2165 = vpop.f32.mrf.mxu0
        %v2166 = vadd.f32 0.0, %v2165
        %2167 = vmatmul.f32.gmra.mxu0 %v2146
        %v2168 = vpop.f32.mrf.mxu0
        %v2169 = vadd.f32 0.0, %v2168
        %2170 = vdwg.mxu0
        %v2171 = vadd.f32 %v2053, %v2166
        %v2172 = vadd.f32 %v2054, %v2169
        %s2173 = scalar_lea.vmem %s45, 16
        %v2174 = vld [vmem:[%s2173] sm:$0xff]
        %v2175 = vld [vmem:[%s2173 + $0x8] sm:$0xff]
        %2177 = vset.pattern.permute.xlu0 0
        %2178 = vperm.xlu0 %2177, %v2174
        %v2179 = vpop.permute.xlu0 %2178
        %2182 = vset.pattern.permute.xlu0 0
        %2183 = vperm.xlu0 %2182, %v2175
        %v2184 = vpop.permute.xlu0 %2183
        %v2186 = vadd.f32 %v2171, %v2179
        %v2187 = vadd.f32 %v2172, %v2184
        %v2188 = vld [vmem:[%s47] sm:$0xff]
        %v2189 = vld [vmem:[%s49] sm:$0xff]
        %2191 = vset.pattern.permute.xlu0 0
        %2192 = vperm.xlu0 %2191, %v2189
        %v2193 = vpop.permute.xlu0 %2192
        %v2196 = vsel %vm1197, %v2188, 0
        %2198 = vmatpush.msra.mxu0 0.0
        %2199 = vmatpush.msra.mxu0 0.0
        %2200 = vmatpush.msra.mxu0 0.0
        %2201 = vmatpush.msra.mxu0 0.0
        %2202 = vmatpush.msra.mxu0 0.0
        %2203 = vmatpush.msra.mxu0 0.0
        %2204 = vmatpush.msra.mxu0 0.0
        %2205 = vmatpush.msra.mxu0 0.0
        %2206 = vmatpush.msra.mxu0 0.0
        %2207 = vmatpush.msra.mxu0 0.0
        %2208 = vmatpush.msra.mxu0 0.0
        %2209 = vmatpush.msra.mxu0 0.0
        %2210 = vmatpush.msra.mxu0 0.0
        %2211 = vmatpush.msra.mxu0 0.0
        %2212 = vmatpush.msra.mxu0 %v2187
        %2213 = vmatpush.msra.mxu0 %v2186
        %2214 = vmatmul.f32.gmra.mxu0 %v2196
        %v2215 = vpop.f32.mrf.mxu0
        %v2216 = vadd.f32 %v2193, %v2215
        %2217 = vdwg.mxu0
        %2218 = vst [vmem:[%s1019] sm:$0xff] %v2216
        %2219 = vst [vmem:[%s1040] sm:$0xff] %v2186
        %2220 = vst [vmem:[%s1040 + $0x8] sm:$0xff] %v2187
        %s2221 = sand.u32 %s639, 1
        %s2222 = scalar_lea.sflag [#allocation6], %s2221
        %s2223 = sand.u32 %s639, 1
        %s2224 = smul.addr %s2223, 8
        %s2225 = scalar_lea.vmem [#allocation5], %s2224
        %s2226 = sand.u32 %s85, 1
        %s2227 = scalar_lea.sflag [#allocation8], %s2226
        %s2228 = sand.u32 %s667, 1
        %s2229 = smul.addr %s2228, 8
        %s2230 = scalar_lea.vmem [#allocation7], %s2229
        %s2231 = sand.u32 %s85, 1
        %s2232 = scalar_lea.sflag [#allocation8], %s2231
        %s2233 = sand.u32 %s695, 1
        %s2234 = smul.addr %s2233, 8
        %s2235 = scalar_lea.vmem [#allocation9], %s2234
        %s2236 = sand.u32 %s85, 1
        %s2237 = scalar_lea.sflag [#allocation11], %s2236
        %s2238 = sand.u32 %s723, 1
        %s2239 = smul.addr %s2238, 16
        %s2240 = scalar_lea.vmem [#allocation10], %s2239
        %s2241 = sand.u32 %s85, 1
        %s2242 = scalar_lea.sflag [#allocation11], %s2241
        %s2243 = sand.u32 %s751, 1
        %s2244 = smul.addr %s2243, 16
        %s2245 = scalar_lea.vmem [#allocation12], %s2244
        %s2246 = sand.u32 %s779, 1
        %s2247 = scalar_lea.sflag [#allocation14], %s2246
        %s2248 = sand.u32 %s779, 1
        %s2249 = smul.addr %s2248, 16
        %s2250 = scalar_lea.vmem [#allocation13], %s2249
        // Predicated region
        $region163: #{tpu_custom_call.1} parent=153 // pred_check
          %p2251 = pneg %p649
        $region164: #{tpu_custom_call.1} parent=153 // pred_check_branch
          %2253 = sbr.rel (%p2251) target = $region166
        $region165: #{tpu_custom_call.1} parent=153 // pred_region
          %2255 = vsyncadd %s2222, 0
          %s2256 = smul.addr %s89, 2
          %s2257 = sadd.s32 %s90, %s2256
          %s2258 = smul.addr %s2257, 8
          %s2259 = scalar_lea.hbm %s51, %s2258
          %s2261 = sshll.u32 %s2225, 4
          %s2262 = int_to_ptr.vmem [resolvable:$true] %s2261
          %s2263 = sshll.u32 %s2259, 4
          %s2264 = int_to_ptr.hbm [resolvable:$true] %s2263
          %2266 = dma.vmem_to_hbm [thread:$0]  %s2262, 128, %s2264, %s2222
        $region166: #{tpu_custom_call.1} parent=153 // pred_fallthru
          _
        // Predicated region
        $region167: #{tpu_custom_call.1} parent=153 // pred_check
          %p2267 = pneg %p677
        $region168: #{tpu_custom_call.1} parent=153 // pred_check_branch
          %2269 = sbr.rel (%p2267) target = $region170
        $region169: #{tpu_custom_call.1} parent=153 // pred_region
          %2271 = vsyncadd %s2227, 0
          %s2272 = smul.addr %s89, 2
          %s2273 = sadd.s32 %s90, %s2272
          %s2274 = smul.addr %s2273, 8
          %s2275 = scalar_lea.hbm %s53, %s2274
          %s2277 = sshll.u32 %s2230, 4
          %s2278 = int_to_ptr.vmem [resolvable:$true] %s2277
          %s2279 = sshll.u32 %s2275, 4
          %s2280 = int_to_ptr.hbm [resolvable:$true] %s2279
          %2282 = dma.vmem_to_hbm [thread:$0]  %s2278, 128, %s2280, %s2227
        $region170: #{tpu_custom_call.1} parent=153 // pred_fallthru
          _
        // Predicated region
        $region171: #{tpu_custom_call.1} parent=153 // pred_check
          %p2283 = pneg %p705
        $region172: #{tpu_custom_call.1} parent=153 // pred_check_branch
          %2285 = sbr.rel (%p2283) target = $region174
        $region173: #{tpu_custom_call.1} parent=153 // pred_region
          %2287 = vsyncadd %s2232, 0
          %s2288 = smul.addr %s89, 2
          %s2289 = sadd.s32 %s90, %s2288
          %s2290 = smul.addr %s2289, 8
          %s2291 = scalar_lea.hbm %s55, %s2290
          %s2293 = sshll.u32 %s2235, 4
          %s2294 = int_to_ptr.vmem [resolvable:$true] %s2293
          %s2295 = sshll.u32 %s2291, 4
          %s2296 = int_to_ptr.hbm [resolvable:$true] %s2295
          %2298 = dma.vmem_to_hbm [thread:$0]  %s2294, 128, %s2296, %s2232
        $region174: #{tpu_custom_call.1} parent=153 // pred_fallthru
          _
        // Predicated region
        $region175: #{tpu_custom_call.1} parent=153 // pred_check
          %p2299 = pneg %p733
        $region176: #{tpu_custom_call.1} parent=153 // pred_check_branch
          %2301 = sbr.rel (%p2299) target = $region178
        $region177: #{tpu_custom_call.1} parent=153 // pred_region
          %2303 = vsyncadd %s2237, 0
          %s2304 = smul.addr %s89, 4
          %s2305 = sadd.s32 %s90, %s2304
          %s2306 = smul.addr %s2305, 8
          %s2307 = scalar_lea.hbm %s57, %s2306
          %s2308 = sshll.u32 %s2240, 4
          %s2309 = int_to_ptr.vmem [resolvable:$true] %s2308
          %s2310 = sshll.u32 %s2307, 4
          %s2311 = int_to_ptr.hbm [resolvable:$true] %s2310
          %2316 = dma.vmem_to_hbm [thread:$0]  %s2309, 256, %s2311, %s2237, 128, 256, 8
        $region178: #{tpu_custom_call.1} parent=153 // pred_fallthru
          _
        // Predicated region
        $region179: #{tpu_custom_call.1} parent=153 // pred_check
          %p2317 = pneg %p761
        $region180: #{tpu_custom_call.1} parent=153 // pred_check_branch
          %2319 = sbr.rel (%p2317) target = $region182
        $region181: #{tpu_custom_call.1} parent=153 // pred_region
          %2321 = vsyncadd %s2242, 0
          %s2322 = smul.addr %s89, 4
          %s2323 = sadd.s32 %s90, %s2322
          %s2324 = smul.addr %s2323, 8
          %s2325 = scalar_lea.hbm %s59, %s2324
          %s2326 = sshll.u32 %s2245, 4
          %s2327 = int_to_ptr.vmem [resolvable:$true] %s2326
          %s2328 = sshll.u32 %s2325, 4
          %s2329 = int_to_ptr.hbm [resolvable:$true] %s2328
          %2334 = dma.vmem_to_hbm [thread:$0]  %s2327, 256, %s2329, %s2242, 128, 256, 8
        $region182: #{tpu_custom_call.1} parent=153 // pred_fallthru
          _
        // Predicated region
        $region183: #{tpu_custom_call.1} parent=153 // pred_check
          %p2335 = pneg %p789
        $region184: #{tpu_custom_call.1} parent=153 // pred_check_branch
          %2337 = sbr.rel (%p2335) target = $region186
        $region185: #{tpu_custom_call.1} parent=153 // pred_region
          %2339 = vsyncadd %s2247, 0
          %s2340 = smul.addr %s89, 4
          %s2341 = sadd.s32 %s90, %s2340
          %s2342 = smul.addr %s2341, 8
          %s2343 = scalar_lea.hbm %s61, %s2342
          %s2344 = sshll.u32 %s2250, 4
          %s2345 = int_to_ptr.vmem [resolvable:$true] %s2344
          %s2346 = sshll.u32 %s2343, 4
          %s2347 = int_to_ptr.hbm [resolvable:$true] %s2346
          %2352 = dma.vmem_to_hbm [thread:$0]  %s2345, 256, %s2347, %s2247, 128, 256, 8
        $region186: #{tpu_custom_call.1} parent=153 // pred_fallthru
          _
      $region154: #{tpu_custom_call.1} parent=5 // pred_fallthru
        _
      %p2353 = scmp.le.s32.totalorder 2, %s80
      // Predicated region
      $region187: #{tpu_custom_call.1} parent=5 // pred_check
        %p2354 = pneg %p2353
      $region188: #{tpu_custom_call.1} parent=5 // pred_check_branch
        %2356 = sbr.rel (%p2354) target = $region190
      $region189: #{tpu_custom_call.1} parent=5 // pred_region
        %s2357 = ssub.s32 %s80, 2
        // Predicated region
        $region191: #{tpu_custom_call.1} parent=189 // pred_check
          %p2358 = pneg %p655
        $region192: #{tpu_custom_call.1} parent=189 // pred_check_branch
          %2360 = sbr.rel (%p2358) target = $region194
        $region193: #{tpu_custom_call.1} parent=189 // pred_region
          %s2361 = sand.u32 %s640, 1
          %s2362 = scalar_lea.sflag [#allocation6], %s2361
          %s2363 = sand.u32 %s640, 1
          %s2364 = smul.addr %s2363, 8
          %s2365 = scalar_lea.vmem [#allocation5], %s2364
          %2367 = dma.done %s2362, 128
        $region194: #{tpu_custom_call.1} parent=189 // pred_fallthru
          _
        // Predicated region
        $region195: #{tpu_custom_call.1} parent=189 // pred_check
          %p2368 = pneg %p683
        $region196: #{tpu_custom_call.1} parent=189 // pred_check_branch
          %2370 = sbr.rel (%p2368) target = $region198
        $region197: #{tpu_custom_call.1} parent=189 // pred_region
          %s2371 = sand.u32 %s86, 1
          %s2372 = scalar_lea.sflag [#allocation8], %s2371
          %s2373 = sand.u32 %s668, 1
          %s2374 = smul.addr %s2373, 8
          %s2375 = scalar_lea.vmem [#allocation7], %s2374
          %2377 = dma.done %s2372, 128
        $region198: #{tpu_custom_call.1} parent=189 // pred_fallthru
          _
        // Predicated region
        $region199: #{tpu_custom_call.1} parent=189 // pred_check
          %p2378 = pneg %p711
        $region200: #{tpu_custom_call.1} parent=189 // pred_check_branch
          %2380 = sbr.rel (%p2378) target = $region202
        $region201: #{tpu_custom_call.1} parent=189 // pred_region
          %s2381 = sand.u32 %s86, 1
          %s2382 = scalar_lea.sflag [#allocation8], %s2381
          %s2383 = sand.u32 %s696, 1
          %s2384 = smul.addr %s2383, 8
          %s2385 = scalar_lea.vmem [#allocation9], %s2384
          %2387 = dma.done %s2382, 128
        $region202: #{tpu_custom_call.1} parent=189 // pred_fallthru
          _
        // Predicated region
        $region203: #{tpu_custom_call.1} parent=189 // pred_check
          %p2388 = pneg %p739
        $region204: #{tpu_custom_call.1} parent=189 // pred_check_branch
          %2390 = sbr.rel (%p2388) target = $region206
        $region205: #{tpu_custom_call.1} parent=189 // pred_region
          %s2391 = sand.u32 %s86, 1
          %s2392 = scalar_lea.sflag [#allocation11], %s2391
          %s2393 = sand.u32 %s724, 1
          %s2394 = smul.addr %s2393, 16
          %s2395 = scalar_lea.vmem [#allocation10], %s2394
          %2397 = dma.done %s2392, 256
        $region206: #{tpu_custom_call.1} parent=189 // pred_fallthru
          _
        // Predicated region
        $region207: #{tpu_custom_call.1} parent=189 // pred_check
          %p2398 = pneg %p767
        $region208: #{tpu_custom_call.1} parent=189 // pred_check_branch
          %2400 = sbr.rel (%p2398) target = $region210
        $region209: #{tpu_custom_call.1} parent=189 // pred_region
          %s2401 = sand.u32 %s86, 1
          %s2402 = scalar_lea.sflag [#allocation11], %s2401
          %s2403 = sand.u32 %s752, 1
          %s2404 = smul.addr %s2403, 16
          %s2405 = scalar_lea.vmem [#allocation12], %s2404
          %2407 = dma.done %s2402, 256
        $region210: #{tpu_custom_call.1} parent=189 // pred_fallthru
          _
        // Predicated region
        $region211: #{tpu_custom_call.1} parent=189 // pred_check
          %p2408 = pneg %p795
        $region212: #{tpu_custom_call.1} parent=189 // pred_check_branch
          %2410 = sbr.rel (%p2408) target = $region214
        $region213: #{tpu_custom_call.1} parent=189 // pred_region
          %s2411 = sand.u32 %s780, 1
          %s2412 = scalar_lea.sflag [#allocation14], %s2411
          %s2413 = sand.u32 %s780, 1
          %s2414 = smul.addr %s2413, 16
          %s2415 = scalar_lea.vmem [#allocation13], %s2414
          %2417 = dma.done %s2412, 256
        $region214: #{tpu_custom_call.1} parent=189 // pred_fallthru
          _
      $region190: #{tpu_custom_call.1} parent=5 // pred_fallthru
        _
    $region6: #{tpu_custom_call.1} parent=1 // loop_footer
      %s84 = sadd.s32 1, %s80
    $region7: #{tpu_custom_call.1} parent=1 // loop_footer_branch
      %79 = sbr.rel target = $region3
    $region8: #{tpu_custom_call.1} parent=1 // loop_exit
      _
    %2418 = vsyncpa [#allocation6], 1
    %s2419 = scalar_lea.sflag [#allocation6], 1
    %2420 = vsyncpa %s2419, 1
    %2421 = vsyncpa [#allocation8], 1
    %s2422 = scalar_lea.sflag [#allocation8], 1
    %2423 = vsyncpa %s2422, 1
    %2424 = vsyncpa [#allocation11], 1
    %s2425 = scalar_lea.sflag [#allocation11], 1
    %2426 = vsyncpa %s2425, 1
    %2427 = vsyncpa [#allocation14], 1
    %s2428 = scalar_lea.sflag [#allocation14], 1
    %2429 = vsyncpa %s2428, 1

</llo_original>
